<compile_context>
chip_gen: v7x
topology: tpu7x:2x2x1
jax: 0.10.0
libtpu: 0.0.40
codegen_flags: <defaults>
</compile_context>

<pallas_src>
import functools
import math

import jax
import jax.numpy as jnp
from jax.experimental import pallas as pl
from jax.experimental.pallas import tpu as pltpu

# ---------------- config (mirrors the ESMBottleneck config) ----------------
D_INIT = 48          # config.d_init
D_MODEL = 32         # config.d_model
NHEAD = 4            # config.nhead
DIM_FF = 64          # config.dim_feedforward
NUM_LAYERS = 2       # config.num_encoder_layers
RETURN_TYPE = "token"  # config.return_type
LN_EPS = 1e-5
NEG_INF = -1e30      # additive mask value for padded / cross-batch keys


# ------------------------------ kernel --------------------------------------
def _layernorm(x, w, b):
    mu = jnp.mean(x, axis=-1, keepdims=True)
    xc = x - mu
    var = jnp.mean(xc * xc, axis=-1, keepdims=True)
    return xc * jax.lax.rsqrt(var + LN_EPS) * w + b


def fused_kernel(x_ref, kmask_ref, misc_ref, wbig_ref, out_ref, *,
                 nhead, bsz, seq_len, num_layers):
    f32 = jnp.float32
    n_tok = x_ref.shape[0]
    dm = D_MODEL
    ff = DIM_FF
    dh = dm // nhead

    # ---- block-diagonal additive attention mask, built in-kernel ----------
    # token layout: rows [0, bsz) = guidance tokens (batch b -> row b),
    #               rows [bsz + b*L, bsz + (b+1)*L) = sequence tokens of batch b.
    rid = jax.lax.broadcasted_iota(jnp.int32, (n_tok, n_tok), 0)
    cid = jax.lax.broadcasted_iota(jnp.int32, (n_tok, n_tok), 1)
    inv_l = 1.0 / float(seq_len)

    def batch_of(idx):
        idxf = idx.astype(f32)
        # guidance rows: batch == row;  sequence rows: (row - bsz) // seq_len
        return jnp.where(idx < bsz, idxf,
                         jnp.floor((idxf - float(bsz) + 0.5) * inv_l))

    same_batch = batch_of(rid) == batch_of(cid)
    madd = jnp.where(same_batch, 0.0, NEG_INF) + kmask_ref[...]   # (N, N)

    # ---- global weights / vectors ------------------------------------------
    proj_w = misc_ref[0:D_INIT, :]                 # (d_init, d_model)
    proj_b = misc_ref[D_INIT:D_INIT + 1, :]        # (1, d_model)
    guid = misc_ref[D_INIT + 1:D_INIT + 2, :]      # guidance embedding
    fln_w = misc_ref[D_INIT + 2:D_INIT + 3, :]     # final encoder LN weight
    fln_b = misc_ref[D_INIT + 3:D_INIT + 4, :]     # final encoder LN bias

    # ---- input projection + guidance-token rows ----------------------------
    x = jnp.dot(x_ref[...], proj_w, preferred_element_type=f32) + proj_b
    row = jax.lax.broadcasted_iota(jnp.int32, (n_tok, dm), 0)
    x = jnp.where(row < bsz, jnp.broadcast_to(guid, x.shape), x)

    # ---- encoder layers (norm_first) ----------------------------------------
    for l in range(num_layers):                    # static unrolled loop
        wqkv = wbig_ref[l, 0:dm, 0:3 * dm]         # (dm, 3dm), Q block pre-scaled
        wo = wbig_ref[l, dm:2 * dm, 0:dm]          # (dm, dm)   (in, out)
        w1 = wbig_ref[l, 2 * dm:3 * dm, 0:ff]      # (dm, ff)   (in, out)
        w2 = wbig_ref[l, 3 * dm:4 * dm, 0:ff]      # (dm, ff)   torch layout
        bqkv = wbig_ref[l, 4 * dm + 0:4 * dm + 1, 0:3 * dm]
        b1 = wbig_ref[l, 4 * dm + 1:4 * dm + 2, 0:ff]
        ln1w = wbig_ref[l, 4 * dm + 2:4 * dm + 3, 0:dm]
        ln1b = wbig_ref[l, 4 * dm + 3:4 * dm + 4, 0:dm]
        ln2w = wbig_ref[l, 4 * dm + 4:4 * dm + 5, 0:dm]
        ln2b = wbig_ref[l, 4 * dm + 5:4 * dm + 6, 0:dm]
        bo = wbig_ref[l, 4 * dm + 6:4 * dm + 7, 0:dm]
        b2 = wbig_ref[l, 4 * dm + 7:4 * dm + 8, 0:dm]

        # -- self-attention block: x = x + MHA(LN1(x)) --
        h = _layernorm(x, ln1w, ln1b)
        qkv = jnp.dot(h, wqkv, preferred_element_type=f32) + bqkv   # (N, 3dm)
        q = qkv[:, :dm]
        k = qkv[:, dm:2 * dm]
        v = qkv[:, 2 * dm:]

        ctxs = []
        for hh in range(nhead):                    # static, tiny head count
            sl = slice(hh * dh, (hh + 1) * dh)
            # Q_h @ K_h^T without materializing a transpose
            s = jax.lax.dot_general(
                q[:, sl], k[:, sl],
                dimension_numbers=(((1,), (1,)), ((), ())),
                preferred_element_type=f32) + madd
            s = s - jnp.max(s, axis=-1, keepdims=True)
            p = jnp.exp(s)
            p = p * pl.reciprocal(jnp.sum(p, axis=-1, keepdims=True), approx=True)
            ctxs.append(jnp.dot(p, v[:, sl], preferred_element_type=f32))
        ctx = jnp.concatenate(ctxs, axis=1)        # (N, dm), lane concat
        x = x + jnp.dot(ctx, wo, preferred_element_type=f32) + bo   # dropout = id

        # -- feed-forward block: x = x + W2 relu(W1 LN2(x) + b1) + b2 --
        h2 = _layernorm(x, ln2w, ln2b)
        f = jnp.maximum(jnp.dot(h2, w1, preferred_element_type=f32) + b1, 0.0)
        x = x + jax.lax.dot_general(
            f, w2, dimension_numbers=(((1,), (1,)), ((), ())),
            preferred_element_type=f32) + b2

    # ---- token-0 readout (static slice, rows 0..B-1) + final LayerNorm -----
    tok = x[0:bsz, :]                              # (B, dm)
    out_ref[...] = _layernorm(tok, fln_w, fln_b)


# -------------------------- parameter construction --------------------------
def init_params(key):
    """Parameters in torch (nn.Linear) layout, mirroring the PyTorch module."""
    keys = iter(jax.random.split(key, 8 + NUM_LAYERS * 16))

    def nrm(shape):
        return (0.02 * jax.random.normal(next(keys), shape)).astype(jnp.float32)

    params = {
        "guidance_embedding": nrm((1, D_MODEL)),      # nn.Embedding(1, d_model)
        "proj_w": nrm((D_MODEL, D_INIT)),             # nn.Linear(d_init, d_model)
        "proj_b": nrm((1, D_MODEL)),
        "final_ln_w": jnp.ones((1, D_MODEL), jnp.float32),
        "final_ln_b": jnp.zeros((1, D_MODEL), jnp.float32),
        "layers": [],
    }
    for _ in range(NUM_LAYERS):
        layer = [
            jnp.ones((1, D_MODEL), jnp.float32), jnp.zeros((1, D_MODEL), jnp.float32),  # ln1
            nrm((D_MODEL, D_MODEL)), nrm((1, D_MODEL)),   # Wq, bq
            nrm((D_MODEL, D_MODEL)), nrm((1, D_MODEL)),   # Wk, bk
            nrm((D_MODEL, D_MODEL)), nrm((1, D_MODEL)),   # Wv, bv
            nrm((D_MODEL, D_MODEL)), nrm((1, D_MODEL)),   # out_proj
            jnp.ones((1, D_MODEL), jnp.float32), jnp.zeros((1, D_MODEL), jnp.float32),  # ln2
            nrm((DIM_FF, D_MODEL)), nrm((1, DIM_FF)),     # linear1 (out, in)
            nrm((D_MODEL, DIM_FF)), nrm((1, D_MODEL)),    # linear2 (out, in)
        ]
        params["layers"].append(layer)
    return params


def pack_params(params):
    """Pack everything into two f32 slabs: misc (52, 32) and wbig (L, 136, 128)."""
    dh = D_MODEL // NHEAD
    scale = 1.0 / math.sqrt(dh)
    width = 4 * D_MODEL          # 128-lane slab width (lane-tile aligned)

    def pad_lanes(a):
        return jnp.pad(a, ((0, 0), (0, width - a.shape[1])))

    misc = jnp.concatenate([
        params["proj_w"].T,              # rows 0:48   (d_init, d_model)
        params["proj_b"],                # row 48
        params["guidance_embedding"],    # row 49
        params["final_ln_w"],            # row 50
        params["final_ln_b"],            # row 51
    ], axis=0)                           # (52, 32)

    layers = []
    for (ln1w, ln1b, wq, bq, wk, bk, wv, bv, wo_l, bo,
         ln2w, ln2b, w1_l, b1_l, w2_l, b2) in params["layers"]:
        wqkv = jnp.concatenate([wq.T * scale, wk.T, wv.T], axis=1)   # (32, 96)
        bqkv = jnp.concatenate([bq * scale, bk, bv], axis=1)         # (1, 96)
        rows = [
            pad_lanes(wqkv),        # rows 0:32
            pad_lanes(wo_l.T),      # rows 32:64   (in, out)
            pad_lanes(w1_l.T),      # rows 64:96   (in, out)
            pad_lanes(w2_l),        # rows 96:128  torch layout (d_model, ff)
            pad_lanes(bqkv),        # row 128
            pad_lanes(b1_l),        # row 129
            pad_lanes(ln1w), pad_lanes(ln1b),   # rows 130, 131
            pad_lanes(ln2w), pad_lanes(ln2b),   # rows 132, 133
            pad_lanes(bo), pad_lanes(b2),       # rows 134, 135
        ]
        layers.append(jnp.concatenate(rows, axis=0))   # (136, 128)
    wbig = jnp.stack(layers)                           # (L, 136, 128)

    return {"misc": misc, "wbig": wbig}


# ------------------------------ forward -------------------------------------
def esm_bottleneck_forward(packed, seqs, mask, sequence_condition_probability=1.0):
    """seqs: (B, L, d_init) float32; mask: (B, L) bool, True = valid token."""
    bsz, seq_len, _ = seqs.shape
    n_tok = bsz * (seq_len + 1)

    # token reordering: guidance placeholders (zeros) first, then all seq tokens
    x_full = jnp.concatenate(
        [jnp.zeros((bsz, D_INIT), seqs.dtype),
         seqs.reshape(bsz * seq_len, D_INIT)], axis=0)               # (N, d_init)

    # per-key additive validity mask (guidance keys always valid)
    seq_add = jnp.where(mask.reshape(-1), 0.0, NEG_INF).astype(jnp.float32)
    kmask = jnp.concatenate(
        [jnp.zeros((bsz,), jnp.float32), seq_add], axis=0)[None, :]  # (1, N)

    vmem = pltpu.MemorySpace.VMEM
    out = pl.pallas_call(
        functools.partial(fused_kernel, nhead=NHEAD, bsz=bsz,
                          seq_len=seq_len, num_layers=NUM_LAYERS),
        out_shape=jax.ShapeDtypeStruct((bsz, D_MODEL), jnp.float32),
        in_specs=[pl.BlockSpec(memory_space=vmem)] * 4,
        out_specs=pl.BlockSpec(memory_space=vmem),
    )(x_full, kmask, packed["misc"], packed["wbig"])

    seqs_out = out[:, None, :]                       # (B, 1, d_model)
    mask_out = jnp.ones((bsz, 1), dtype=bool)

    # TODO(synk): return_type 'mean'/'full' paths and the classifier-free-guidance
    # random zeroing for sequence_condition_probability < 1.0 are not exercised by
    # the configured module (return_type='token', prob=1.0) and are omitted here.
    return seqs_out, mask_out


# ------------------------------ demo ----------------------------------------
if __name__ == "__main__":
    key = jax.random.PRNGKey(0)
    k_params, k_seqs = jax.random.split(key)

    params = init_params(k_params)
    packed = pack_params(params)

    B, L = 2, 8
    seqs = jax.random.normal(k_seqs, (B, L, D_INIT), dtype=jnp.float32)
    lengths = jnp.array([L, 5])
    mask = jnp.arange(L)[None, :] < lengths[:, None]   # (B, L) bool, True = valid

    fwd = jax.jit(functools.partial(esm_bottleneck_forward, packed))
    out_seqs, out_mask = fwd(seqs, mask)
    (out_seqs, out_mask) = jax.block_until_ready((out_seqs, out_mask))

    assert out_seqs.shape == (B, 1, D_MODEL), out_seqs.shape
    assert out_mask.shape == (B, 1) and out_mask.dtype == jnp.bool_
    assert bool(jnp.all(jnp.isfinite(out_seqs)))
    print("KERNEL_OK")
</pallas_src>

<mosaic_0001>
module attributes {stable_mosaic.version = 11 : i64} {
  func.func @fused_kernel(%arg0: memref<18x48xf32, #tpu.memory_space<vmem>>, %arg1: memref<1x18xf32, #tpu.memory_space<vmem>>, %arg2: memref<52x32xf32, #tpu.memory_space<vmem>>, %arg3: memref<2x136x128xf32, #tpu.memory_space<vmem>>, %arg4: memref<2x32xf32, #tpu.memory_space<vmem>>) attributes {dimension_semantics = [], scalar_prefetch = 0 : i64, scratch_operands = 0 : i64, tpu.core_type = #tpu.core_type<tc>} {
    %0 = tpu.iota {dimensions = array<i32: 0>} : vector<18x18xi32>
    %1 = tpu.iota {dimensions = array<i32: 1>} : vector<18x18xi32>
    %2 = arith.sitofp %0 : vector<18x18xi32> to vector<18x18xf32>
    %c2_i32 = arith.constant 2 : i32
    %3 = vector.broadcast %c2_i32 : i32 to vector<18x18xi32>
    %4 = arith.cmpi slt, %0, %3 : vector<18x18xi32>
    %cst = arith.constant 2.000000e+00 : f32
    %5 = vector.broadcast %cst : f32 to vector<18x18xf32>
    %6 = arith.subf %2, %5 : vector<18x18xf32>
    %cst_0 = arith.constant 5.000000e-01 : f32
    %7 = vector.broadcast %cst_0 : f32 to vector<18x18xf32>
    %8 = arith.addf %6, %7 : vector<18x18xf32>
    %cst_1 = arith.constant 1.250000e-01 : f32
    %9 = vector.broadcast %cst_1 : f32 to vector<18x18xf32>
    %10 = arith.mulf %8, %9 : vector<18x18xf32>
    %11 = math.floor %10 : vector<18x18xf32>
    %12 = arith.select %4, %2, %11 : vector<18x18xi1>, vector<18x18xf32>
    %13 = arith.sitofp %1 : vector<18x18xi32> to vector<18x18xf32>
    %c2_i32_2 = arith.constant 2 : i32
    %14 = vector.broadcast %c2_i32_2 : i32 to vector<18x18xi32>
    %15 = arith.cmpi slt, %1, %14 : vector<18x18xi32>
    %cst_3 = arith.constant 2.000000e+00 : f32
    %16 = vector.broadcast %cst_3 : f32 to vector<18x18xf32>
    %17 = arith.subf %13, %16 : vector<18x18xf32>
    %cst_4 = arith.constant 5.000000e-01 : f32
    %18 = vector.broadcast %cst_4 : f32 to vector<18x18xf32>
    %19 = arith.addf %17, %18 : vector<18x18xf32>
    %cst_5 = arith.constant 1.250000e-01 : f32
    %20 = vector.broadcast %cst_5 : f32 to vector<18x18xf32>
    %21 = arith.mulf %19, %20 : vector<18x18xf32>
    %22 = math.floor %21 : vector<18x18xf32>
    %23 = arith.select %15, %13, %22 : vector<18x18xi1>, vector<18x18xf32>
    %24 = arith.cmpf oeq, %12, %23 : vector<18x18xf32>
    %cst_6 = arith.constant 0.000000e+00 : f32
    %cst_7 = arith.constant -1.000000e+30 : f32
    %25 = vector.broadcast %cst_6 : f32 to vector<18x18xf32>
    %26 = vector.broadcast %cst_7 : f32 to vector<18x18xf32>
    %27 = arith.select %24, %25, %26 : vector<18x18xi1>, vector<18x18xf32>
    %c0 = arith.constant 0 : index
    %c0_8 = arith.constant 0 : index
    %28 = vector.load %arg1[%c0, %c0_8] : memref<1x18xf32, #tpu.memory_space<vmem>>, vector<1x18xf32>
    %29 = vector.broadcast %28 : vector<1x18xf32> to vector<18x18xf32>
    %30 = arith.addf %27, %29 : vector<18x18xf32>
    %c0_9 = arith.constant 0 : index
    %c0_10 = arith.constant 0 : index
    %31 = vector.load %arg2[%c0_9, %c0_10] : memref<52x32xf32, #tpu.memory_space<vmem>>, vector<48x32xf32>
    %c48 = arith.constant 48 : index
    %c0_11 = arith.constant 0 : index
    %32 = vector.load %arg2[%c48, %c0_11] : memref<52x32xf32, #tpu.memory_space<vmem>>, vector<1x32xf32>
    %c49 = arith.constant 49 : index
    %c0_12 = arith.constant 0 : index
    %33 = vector.load %arg2[%c49, %c0_12] : memref<52x32xf32, #tpu.memory_space<vmem>>, vector<1x32xf32>
    %c50 = arith.constant 50 : index
    %c0_13 = arith.constant 0 : index
    %34 = vector.load %arg2[%c50, %c0_13] : memref<52x32xf32, #tpu.memory_space<vmem>>, vector<1x32xf32>
    %c51 = arith.constant 51 : index
    %c0_14 = arith.constant 0 : index
    %35 = vector.load %arg2[%c51, %c0_14] : memref<52x32xf32, #tpu.memory_space<vmem>>, vector<1x32xf32>
    %c0_15 = arith.constant 0 : index
    %c0_16 = arith.constant 0 : index
    %36 = vector.load %arg0[%c0_15, %c0_16] : memref<18x48xf32, #tpu.memory_space<vmem>>, vector<18x48xf32>
    %cst_17 = arith.constant dense<0.000000e+00> : vector<18x32xf32>
    %37 = tpu.matmul %36, %31, %cst_17 {dimension_numbers = #tpu.dot_dimension_numbers<[1], [0], [0], [1], [0, 0, 1, 1], [], []>} : vector<18x48xf32>, vector<48x32xf32>, vector<18x32xf32> -> vector<18x32xf32>
    %38 = vector.broadcast %32 : vector<1x32xf32> to vector<18x32xf32>
    %39 = arith.addf %37, %38 : vector<18x32xf32>
    %40 = tpu.iota {dimensions = array<i32: 0>} : vector<18x32xi32>
    %c2_i32_18 = arith.constant 2 : i32
    %41 = vector.broadcast %c2_i32_18 : i32 to vector<18x32xi32>
    %42 = arith.cmpi slt, %40, %41 : vector<18x32xi32>
    %43 = vector.shape_cast %33 : vector<1x32xf32> to vector<1x32xf32>
    %44 = vector.broadcast %43 : vector<1x32xf32> to vector<18x32xf32>
    %45 = arith.select %42, %44, %39 : vector<18x32xi1>, vector<18x32xf32>
    %c0_19 = arith.constant 0 : index
    %c0_20 = arith.constant 0 : index
    %c0_21 = arith.constant 0 : index
    %46 = vector.load %arg3[%c0_19, %c0_20, %c0_21] : memref<2x136x128xf32, #tpu.memory_space<vmem>>, vector<1x32x96xf32>
    %47 = vector.shape_cast %46 : vector<1x32x96xf32> to vector<32x96xf32>
    %c0_22 = arith.constant 0 : index
    %c32 = arith.constant 32 : index
    %c0_23 = arith.constant 0 : index
    %48 = vector.load %arg3[%c0_22, %c32, %c0_23] : memref<2x136x128xf32, #tpu.memory_space<vmem>>, vector<1x32x32xf32>
    %49 = vector.shape_cast %48 : vector<1x32x32xf32> to vector<32x32xf32>
    %c0_24 = arith.constant 0 : index
    %c64 = arith.constant 64 : index
    %c0_25 = arith.constant 0 : index
    %50 = vector.load %arg3[%c0_24, %c64, %c0_25] : memref<2x136x128xf32, #tpu.memory_space<vmem>>, vector<1x32x64xf32>
    %51 = vector.shape_cast %50 : vector<1x32x64xf32> to vector<32x64xf32>
    %c0_26 = arith.constant 0 : index
    %c96 = arith.constant 96 : index
    %c0_27 = arith.constant 0 : index
    %52 = vector.load %arg3[%c0_26, %c96, %c0_27] : memref<2x136x128xf32, #tpu.memory_space<vmem>>, vector<1x32x64xf32>
    %53 = vector.shape_cast %52 : vector<1x32x64xf32> to vector<32x64xf32>
    %c0_28 = arith.constant 0 : index
    %c128 = arith.constant 128 : index
    %c0_29 = arith.constant 0 : index
    %54 = vector.load %arg3[%c0_28, %c128, %c0_29] : memref<2x136x128xf32, #tpu.memory_space<vmem>>, vector<1x1x96xf32>
    %55 = vector.shape_cast %54 : vector<1x1x96xf32> to vector<1x96xf32>
    %c0_30 = arith.constant 0 : index
    %c129 = arith.constant 129 : index
    %c0_31 = arith.constant 0 : index
    %56 = vector.load %arg3[%c0_30, %c129, %c0_31] : memref<2x136x128xf32, #tpu.memory_space<vmem>>, vector<1x1x64xf32>
    %57 = vector.shape_cast %56 : vector<1x1x64xf32> to vector<1x64xf32>
    %c0_32 = arith.constant 0 : index
    %c130 = arith.constant 130 : index
    %c0_33 = arith.constant 0 : index
    %58 = vector.load %arg3[%c0_32, %c130, %c0_33] : memref<2x136x128xf32, #tpu.memory_space<vmem>>, vector<1x1x32xf32>
    %59 = vector.shape_cast %58 : vector<1x1x32xf32> to vector<1x32xf32>
    %c0_34 = arith.constant 0 : index
    %c131 = arith.constant 131 : index
    %c0_35 = arith.constant 0 : index
    %60 = vector.load %arg3[%c0_34, %c131, %c0_35] : memref<2x136x128xf32, #tpu.memory_space<vmem>>, vector<1x1x32xf32>
    %61 = vector.shape_cast %60 : vector<1x1x32xf32> to vector<1x32xf32>
    %c0_36 = arith.constant 0 : index
    %c132 = arith.constant 132 : index
    %c0_37 = arith.constant 0 : index
    %62 = vector.load %arg3[%c0_36, %c132, %c0_37] : memref<2x136x128xf32, #tpu.memory_space<vmem>>, vector<1x1x32xf32>
    %63 = vector.shape_cast %62 : vector<1x1x32xf32> to vector<1x32xf32>
    %c0_38 = arith.constant 0 : index
    %c133 = arith.constant 133 : index
    %c0_39 = arith.constant 0 : index
    %64 = vector.load %arg3[%c0_38, %c133, %c0_39] : memref<2x136x128xf32, #tpu.memory_space<vmem>>, vector<1x1x32xf32>
    %65 = vector.shape_cast %64 : vector<1x1x32xf32> to vector<1x32xf32>
    %c0_40 = arith.constant 0 : index
    %c134 = arith.constant 134 : index
    %c0_41 = arith.constant 0 : index
    %66 = vector.load %arg3[%c0_40, %c134, %c0_41] : memref<2x136x128xf32, #tpu.memory_space<vmem>>, vector<1x1x32xf32>
    %67 = vector.shape_cast %66 : vector<1x1x32xf32> to vector<1x32xf32>
    %c0_42 = arith.constant 0 : index
    %c135 = arith.constant 135 : index
    %c0_43 = arith.constant 0 : index
    %68 = vector.load %arg3[%c0_42, %c135, %c0_43] : memref<2x136x128xf32, #tpu.memory_space<vmem>>, vector<1x1x32xf32>
    %69 = vector.shape_cast %68 : vector<1x1x32xf32> to vector<1x32xf32>
    %cst_44 = arith.constant dense<0.000000e+00> : vector<18xf32>
    %70 = vector.multi_reduction <add>, %45, %cst_44 [1] : vector<18x32xf32> to vector<18xf32>
    %71 = vector.shape_cast %70 : vector<18xf32> to vector<18x1xf32>
    %cst_45 = arith.constant 3.200000e+01 : f32
    %72 = vector.broadcast %cst_45 : f32 to vector<18x1xf32>
    %73 = arith.divf %71, %72 : vector<18x1xf32>
    %74 = vector.broadcast %73 : vector<18x1xf32> to vector<18x32xf32>
    %75 = arith.subf %45, %74 : vector<18x32xf32>
    %76 = arith.mulf %75, %75 : vector<18x32xf32>
    %cst_46 = arith.constant dense<0.000000e+00> : vector<18xf32>
    %77 = vector.multi_reduction <add>, %76, %cst_46 [1] : vector<18x32xf32> to vector<18xf32>
    %78 = vector.shape_cast %77 : vector<18xf32> to vector<18x1xf32>
    %cst_47 = arith.constant 3.200000e+01 : f32
    %79 = vector.broadcast %cst_47 : f32 to vector<18x1xf32>
    %80 = arith.divf %78, %79 : vector<18x1xf32>
    %cst_48 = arith.constant 9.99999974E-6 : f32
    %81 = vector.broadcast %cst_48 : f32 to vector<18x1xf32>
    %82 = arith.addf %80, %81 : vector<18x1xf32>
    %83 = math.rsqrt %82 : vector<18x1xf32>
    %84 = vector.broadcast %83 : vector<18x1xf32> to vector<18x32xf32>
    %85 = arith.mulf %75, %84 : vector<18x32xf32>
    %86 = vector.broadcast %59 : vector<1x32xf32> to vector<18x32xf32>
    %87 = arith.mulf %85, %86 : vector<18x32xf32>
    %88 = vector.broadcast %61 : vector<1x32xf32> to vector<18x32xf32>
    %89 = arith.addf %87, %88 : vector<18x32xf32>
    %cst_49 = arith.constant dense<0.000000e+00> : vector<18x96xf32>
    %90 = tpu.matmul %89, %47, %cst_49 {dimension_numbers = #tpu.dot_dimension_numbers<[1], [0], [0], [1], [0, 0, 1, 1], [], []>} : vector<18x32xf32>, vector<32x96xf32>, vector<18x96xf32> -> vector<18x96xf32>
    %91 = vector.broadcast %55 : vector<1x96xf32> to vector<18x96xf32>
    %92 = arith.addf %90, %91 : vector<18x96xf32>
    %93 = vector.extract_strided_slice %92 {offsets = [0, 0], sizes = [18, 32], strides = [1, 1]} : vector<18x96xf32> to vector<18x32xf32>
    %94 = vector.extract_strided_slice %92 {offsets = [0, 32], sizes = [18, 32], strides = [1, 1]} : vector<18x96xf32> to vector<18x32xf32>
    %95 = vector.extract_strided_slice %92 {offsets = [0, 64], sizes = [18, 32], strides = [1, 1]} : vector<18x96xf32> to vector<18x32xf32>
    %96 = vector.extract_strided_slice %93 {offsets = [0, 0], sizes = [18, 8], strides = [1, 1]} : vector<18x32xf32> to vector<18x8xf32>
    %97 = vector.extract_strided_slice %94 {offsets = [0, 0], sizes = [18, 8], strides = [1, 1]} : vector<18x32xf32> to vector<18x8xf32>
    %cst_50 = arith.constant dense<0.000000e+00> : vector<18x18xf32>
    %98 = tpu.matmul %96, %97, %cst_50 {dimension_numbers = #tpu.dot_dimension_numbers<[1], [1], [0], [0], [0, 0, 1, 0], [], []>} : vector<18x8xf32>, vector<18x8xf32>, vector<18x18xf32> -> vector<18x18xf32>
    %99 = arith.addf %98, %30 : vector<18x18xf32>
    %cst_51 = arith.constant dense<0xFF800000> : vector<18xf32>
    %100 = vector.multi_reduction <maximumf>, %99, %cst_51 [1] : vector<18x18xf32> to vector<18xf32>
    %101 = vector.shape_cast %100 : vector<18xf32> to vector<18x1xf32>
    %102 = vector.broadcast %101 : vector<18x1xf32> to vector<18x18xf32>
    %103 = arith.subf %99, %102 : vector<18x18xf32>
    %104 = math.exp %103 : vector<18x18xf32>
    %cst_52 = arith.constant dense<0.000000e+00> : vector<18xf32>
    %105 = vector.multi_reduction <add>, %104, %cst_52 [1] : vector<18x18xf32> to vector<18xf32>
    %106 = vector.shape_cast %105 : vector<18xf32> to vector<18x1xf32>
    %107 = tpu.reciprocal %106 {approx = true} : vector<18x1xf32> -> vector<18x1xf32>
    %108 = vector.broadcast %107 : vector<18x1xf32> to vector<18x18xf32>
    %109 = arith.mulf %104, %108 : vector<18x18xf32>
    %110 = vector.extract_strided_slice %95 {offsets = [0, 0], sizes = [18, 8], strides = [1, 1]} : vector<18x32xf32> to vector<18x8xf32>
    %cst_53 = arith.constant dense<0.000000e+00> : vector<18x8xf32>
    %111 = tpu.matmul %109, %110, %cst_53 {dimension_numbers = #tpu.dot_dimension_numbers<[1], [0], [0], [1], [0, 0, 1, 1], [], []>} : vector<18x18xf32>, vector<18x8xf32>, vector<18x8xf32> -> vector<18x8xf32>
    %112 = vector.extract_strided_slice %93 {offsets = [0, 8], sizes = [18, 8], strides = [1, 1]} : vector<18x32xf32> to vector<18x8xf32>
    %113 = vector.extract_strided_slice %94 {offsets = [0, 8], sizes = [18, 8], strides = [1, 1]} : vector<18x32xf32> to vector<18x8xf32>
    %cst_54 = arith.constant dense<0.000000e+00> : vector<18x18xf32>
    %114 = tpu.matmul %112, %113, %cst_54 {dimension_numbers = #tpu.dot_dimension_numbers<[1], [1], [0], [0], [0, 0, 1, 0], [], []>} : vector<18x8xf32>, vector<18x8xf32>, vector<18x18xf32> -> vector<18x18xf32>
    %115 = arith.addf %114, %30 : vector<18x18xf32>
    %cst_55 = arith.constant dense<0xFF800000> : vector<18xf32>
    %116 = vector.multi_reduction <maximumf>, %115, %cst_55 [1] : vector<18x18xf32> to vector<18xf32>
    %117 = vector.shape_cast %116 : vector<18xf32> to vector<18x1xf32>
    %118 = vector.broadcast %117 : vector<18x1xf32> to vector<18x18xf32>
    %119 = arith.subf %115, %118 : vector<18x18xf32>
    %120 = math.exp %119 : vector<18x18xf32>
    %cst_56 = arith.constant dense<0.000000e+00> : vector<18xf32>
    %121 = vector.multi_reduction <add>, %120, %cst_56 [1] : vector<18x18xf32> to vector<18xf32>
    %122 = vector.shape_cast %121 : vector<18xf32> to vector<18x1xf32>
    %123 = tpu.reciprocal %122 {approx = true} : vector<18x1xf32> -> vector<18x1xf32>
    %124 = vector.broadcast %123 : vector<18x1xf32> to vector<18x18xf32>
    %125 = arith.mulf %120, %124 : vector<18x18xf32>
    %126 = vector.extract_strided_slice %95 {offsets = [0, 8], sizes = [18, 8], strides = [1, 1]} : vector<18x32xf32> to vector<18x8xf32>
    %cst_57 = arith.constant dense<0.000000e+00> : vector<18x8xf32>
    %127 = tpu.matmul %125, %126, %cst_57 {dimension_numbers = #tpu.dot_dimension_numbers<[1], [0], [0], [1], [0, 0, 1, 1], [], []>} : vector<18x18xf32>, vector<18x8xf32>, vector<18x8xf32> -> vector<18x8xf32>
    %128 = vector.extract_strided_slice %93 {offsets = [0, 16], sizes = [18, 8], strides = [1, 1]} : vector<18x32xf32> to vector<18x8xf32>
    %129 = vector.extract_strided_slice %94 {offsets = [0, 16], sizes = [18, 8], strides = [1, 1]} : vector<18x32xf32> to vector<18x8xf32>
    %cst_58 = arith.constant dense<0.000000e+00> : vector<18x18xf32>
    %130 = tpu.matmul %128, %129, %cst_58 {dimension_numbers = #tpu.dot_dimension_numbers<[1], [1], [0], [0], [0, 0, 1, 0], [], []>} : vector<18x8xf32>, vector<18x8xf32>, vector<18x18xf32> -> vector<18x18xf32>
    %131 = arith.addf %130, %30 : vector<18x18xf32>
    %cst_59 = arith.constant dense<0xFF800000> : vector<18xf32>
    %132 = vector.multi_reduction <maximumf>, %131, %cst_59 [1] : vector<18x18xf32> to vector<18xf32>
    %133 = vector.shape_cast %132 : vector<18xf32> to vector<18x1xf32>
    %134 = vector.broadcast %133 : vector<18x1xf32> to vector<18x18xf32>
    %135 = arith.subf %131, %134 : vector<18x18xf32>
    %136 = math.exp %135 : vector<18x18xf32>
    %cst_60 = arith.constant dense<0.000000e+00> : vector<18xf32>
    %137 = vector.multi_reduction <add>, %136, %cst_60 [1] : vector<18x18xf32> to vector<18xf32>
    %138 = vector.shape_cast %137 : vector<18xf32> to vector<18x1xf32>
    %139 = tpu.reciprocal %138 {approx = true} : vector<18x1xf32> -> vector<18x1xf32>
    %140 = vector.broadcast %139 : vector<18x1xf32> to vector<18x18xf32>
    %141 = arith.mulf %136, %140 : vector<18x18xf32>
    %142 = vector.extract_strided_slice %95 {offsets = [0, 16], sizes = [18, 8], strides = [1, 1]} : vector<18x32xf32> to vector<18x8xf32>
    %cst_61 = arith.constant dense<0.000000e+00> : vector<18x8xf32>
    %143 = tpu.matmul %141, %142, %cst_61 {dimension_numbers = #tpu.dot_dimension_numbers<[1], [0], [0], [1], [0, 0, 1, 1], [], []>} : vector<18x18xf32>, vector<18x8xf32>, vector<18x8xf32> -> vector<18x8xf32>
    %144 = vector.extract_strided_slice %93 {offsets = [0, 24], sizes = [18, 8], strides = [1, 1]} : vector<18x32xf32> to vector<18x8xf32>
    %145 = vector.extract_strided_slice %94 {offsets = [0, 24], sizes = [18, 8], strides = [1, 1]} : vector<18x32xf32> to vector<18x8xf32>
    %cst_62 = arith.constant dense<0.000000e+00> : vector<18x18xf32>
    %146 = tpu.matmul %144, %145, %cst_62 {dimension_numbers = #tpu.dot_dimension_numbers<[1], [1], [0], [0], [0, 0, 1, 0], [], []>} : vector<18x8xf32>, vector<18x8xf32>, vector<18x18xf32> -> vector<18x18xf32>
    %147 = arith.addf %146, %30 : vector<18x18xf32>
    %cst_63 = arith.constant dense<0xFF800000> : vector<18xf32>
    %148 = vector.multi_reduction <maximumf>, %147, %cst_63 [1] : vector<18x18xf32> to vector<18xf32>
    %149 = vector.shape_cast %148 : vector<18xf32> to vector<18x1xf32>
    %150 = vector.broadcast %149 : vector<18x1xf32> to vector<18x18xf32>
    %151 = arith.subf %147, %150 : vector<18x18xf32>
    %152 = math.exp %151 : vector<18x18xf32>
    %cst_64 = arith.constant dense<0.000000e+00> : vector<18xf32>
    %153 = vector.multi_reduction <add>, %152, %cst_64 [1] : vector<18x18xf32> to vector<18xf32>
    %154 = vector.shape_cast %153 : vector<18xf32> to vector<18x1xf32>
    %155 = tpu.reciprocal %154 {approx = true} : vector<18x1xf32> -> vector<18x1xf32>
    %156 = vector.broadcast %155 : vector<18x1xf32> to vector<18x18xf32>
    %157 = arith.mulf %152, %156 : vector<18x18xf32>
    %158 = vector.extract_strided_slice %95 {offsets = [0, 24], sizes = [18, 8], strides = [1, 1]} : vector<18x32xf32> to vector<18x8xf32>
    %cst_65 = arith.constant dense<0.000000e+00> : vector<18x8xf32>
    %159 = tpu.matmul %157, %158, %cst_65 {dimension_numbers = #tpu.dot_dimension_numbers<[1], [0], [0], [1], [0, 0, 1, 1], [], []>} : vector<18x18xf32>, vector<18x8xf32>, vector<18x8xf32> -> vector<18x8xf32>
    %160 = tpu.concatenate %111, %127, %143, %159 in 1 : vector<18x8xf32>, vector<18x8xf32>, vector<18x8xf32>, vector<18x8xf32> -> vector<18x32xf32>
    %cst_66 = arith.constant dense<0.000000e+00> : vector<18x32xf32>
    %161 = tpu.matmul %160, %49, %cst_66 {dimension_numbers = #tpu.dot_dimension_numbers<[1], [0], [0], [1], [0, 0, 1, 1], [], []>} : vector<18x32xf32>, vector<32x32xf32>, vector<18x32xf32> -> vector<18x32xf32>
    %162 = arith.addf %45, %161 : vector<18x32xf32>
    %163 = vector.broadcast %67 : vector<1x32xf32> to vector<18x32xf32>
    %164 = arith.addf %162, %163 : vector<18x32xf32>
    %cst_67 = arith.constant dense<0.000000e+00> : vector<18xf32>
    %165 = vector.multi_reduction <add>, %164, %cst_67 [1] : vector<18x32xf32> to vector<18xf32>
    %166 = vector.shape_cast %165 : vector<18xf32> to vector<18x1xf32>
    %cst_68 = arith.constant 3.200000e+01 : f32
    %167 = vector.broadcast %cst_68 : f32 to vector<18x1xf32>
    %168 = arith.divf %166, %167 : vector<18x1xf32>
    %169 = vector.broadcast %168 : vector<18x1xf32> to vector<18x32xf32>
    %170 = arith.subf %164, %169 : vector<18x32xf32>
    %171 = arith.mulf %170, %170 : vector<18x32xf32>
    %cst_69 = arith.constant dense<0.000000e+00> : vector<18xf32>
    %172 = vector.multi_reduction <add>, %171, %cst_69 [1] : vector<18x32xf32> to vector<18xf32>
    %173 = vector.shape_cast %172 : vector<18xf32> to vector<18x1xf32>
    %cst_70 = arith.constant 3.200000e+01 : f32
    %174 = vector.broadcast %cst_70 : f32 to vector<18x1xf32>
    %175 = arith.divf %173, %174 : vector<18x1xf32>
    %cst_71 = arith.constant 9.99999974E-6 : f32
    %176 = vector.broadcast %cst_71 : f32 to vector<18x1xf32>
    %177 = arith.addf %175, %176 : vector<18x1xf32>
    %178 = math.rsqrt %177 : vector<18x1xf32>
    %179 = vector.broadcast %178 : vector<18x1xf32> to vector<18x32xf32>
    %180 = arith.mulf %170, %179 : vector<18x32xf32>
    %181 = vector.broadcast %63 : vector<1x32xf32> to vector<18x32xf32>
    %182 = arith.mulf %180, %181 : vector<18x32xf32>
    %183 = vector.broadcast %65 : vector<1x32xf32> to vector<18x32xf32>
    %184 = arith.addf %182, %183 : vector<18x32xf32>
    %cst_72 = arith.constant dense<0.000000e+00> : vector<18x64xf32>
    %185 = tpu.matmul %184, %51, %cst_72 {dimension_numbers = #tpu.dot_dimension_numbers<[1], [0], [0], [1], [0, 0, 1, 1], [], []>} : vector<18x32xf32>, vector<32x64xf32>, vector<18x64xf32> -> vector<18x64xf32>
    %186 = vector.broadcast %57 : vector<1x64xf32> to vector<18x64xf32>
    %187 = arith.addf %185, %186 : vector<18x64xf32>
    %cst_73 = arith.constant 0.000000e+00 : f32
    %188 = vector.broadcast %cst_73 : f32 to vector<18x64xf32>
    %189 = arith.maximumf %187, %188 : vector<18x64xf32>
    %cst_74 = arith.constant dense<0.000000e+00> : vector<18x32xf32>
    %190 = tpu.matmul %189, %53, %cst_74 {dimension_numbers = #tpu.dot_dimension_numbers<[1], [1], [0], [0], [0, 0, 1, 0], [], []>} : vector<18x64xf32>, vector<32x64xf32>, vector<18x32xf32> -> vector<18x32xf32>
    %191 = arith.addf %164, %190 : vector<18x32xf32>
    %192 = vector.broadcast %69 : vector<1x32xf32> to vector<18x32xf32>
    %193 = arith.addf %191, %192 : vector<18x32xf32>
    %c1 = arith.constant 1 : index
    %c0_75 = arith.constant 0 : index
    %c0_76 = arith.constant 0 : index
    %194 = vector.load %arg3[%c1, %c0_75, %c0_76] : memref<2x136x128xf32, #tpu.memory_space<vmem>>, vector<1x32x96xf32>
    %195 = vector.shape_cast %194 : vector<1x32x96xf32> to vector<32x96xf32>
    %c1_77 = arith.constant 1 : index
    %c32_78 = arith.constant 32 : index
    %c0_79 = arith.constant 0 : index
    %196 = vector.load %arg3[%c1_77, %c32_78, %c0_79] : memref<2x136x128xf32, #tpu.memory_space<vmem>>, vector<1x32x32xf32>
    %197 = vector.shape_cast %196 : vector<1x32x32xf32> to vector<32x32xf32>
    %c1_80 = arith.constant 1 : index
    %c64_81 = arith.constant 64 : index
    %c0_82 = arith.constant 0 : index
    %198 = vector.load %arg3[%c1_80, %c64_81, %c0_82] : memref<2x136x128xf32, #tpu.memory_space<vmem>>, vector<1x32x64xf32>
    %199 = vector.shape_cast %198 : vector<1x32x64xf32> to vector<32x64xf32>
    %c1_83 = arith.constant 1 : index
    %c96_84 = arith.constant 96 : index
    %c0_85 = arith.constant 0 : index
    %200 = vector.load %arg3[%c1_83, %c96_84, %c0_85] : memref<2x136x128xf32, #tpu.memory_space<vmem>>, vector<1x32x64xf32>
    %201 = vector.shape_cast %200 : vector<1x32x64xf32> to vector<32x64xf32>
    %c1_86 = arith.constant 1 : index
    %c128_87 = arith.constant 128 : index
    %c0_88 = arith.constant 0 : index
    %202 = vector.load %arg3[%c1_86, %c128_87, %c0_88] : memref<2x136x128xf32, #tpu.memory_space<vmem>>, vector<1x1x96xf32>
    %203 = vector.shape_cast %202 : vector<1x1x96xf32> to vector<1x96xf32>
    %c1_89 = arith.constant 1 : index
    %c129_90 = arith.constant 129 : index
    %c0_91 = arith.constant 0 : index
    %204 = vector.load %arg3[%c1_89, %c129_90, %c0_91] : memref<2x136x128xf32, #tpu.memory_space<vmem>>, vector<1x1x64xf32>
    %205 = vector.shape_cast %204 : vector<1x1x64xf32> to vector<1x64xf32>
    %c1_92 = arith.constant 1 : index
    %c130_93 = arith.constant 130 : index
    %c0_94 = arith.constant 0 : index
    %206 = vector.load %arg3[%c1_92, %c130_93, %c0_94] : memref<2x136x128xf32, #tpu.memory_space<vmem>>, vector<1x1x32xf32>
    %207 = vector.shape_cast %206 : vector<1x1x32xf32> to vector<1x32xf32>
    %c1_95 = arith.constant 1 : index
    %c131_96 = arith.constant 131 : index
    %c0_97 = arith.constant 0 : index
    %208 = vector.load %arg3[%c1_95, %c131_96, %c0_97] : memref<2x136x128xf32, #tpu.memory_space<vmem>>, vector<1x1x32xf32>
    %209 = vector.shape_cast %208 : vector<1x1x32xf32> to vector<1x32xf32>
    %c1_98 = arith.constant 1 : index
    %c132_99 = arith.constant 132 : index
    %c0_100 = arith.constant 0 : index
    %210 = vector.load %arg3[%c1_98, %c132_99, %c0_100] : memref<2x136x128xf32, #tpu.memory_space<vmem>>, vector<1x1x32xf32>
    %211 = vector.shape_cast %210 : vector<1x1x32xf32> to vector<1x32xf32>
    %c1_101 = arith.constant 1 : index
    %c133_102 = arith.constant 133 : index
    %c0_103 = arith.constant 0 : index
    %212 = vector.load %arg3[%c1_101, %c133_102, %c0_103] : memref<2x136x128xf32, #tpu.memory_space<vmem>>, vector<1x1x32xf32>
    %213 = vector.shape_cast %212 : vector<1x1x32xf32> to vector<1x32xf32>
    %c1_104 = arith.constant 1 : index
    %c134_105 = arith.constant 134 : index
    %c0_106 = arith.constant 0 : index
    %214 = vector.load %arg3[%c1_104, %c134_105, %c0_106] : memref<2x136x128xf32, #tpu.memory_space<vmem>>, vector<1x1x32xf32>
    %215 = vector.shape_cast %214 : vector<1x1x32xf32> to vector<1x32xf32>
    %c1_107 = arith.constant 1 : index
    %c135_108 = arith.constant 135 : index
    %c0_109 = arith.constant 0 : index
    %216 = vector.load %arg3[%c1_107, %c135_108, %c0_109] : memref<2x136x128xf32, #tpu.memory_space<vmem>>, vector<1x1x32xf32>
    %217 = vector.shape_cast %216 : vector<1x1x32xf32> to vector<1x32xf32>
    %cst_110 = arith.constant dense<0.000000e+00> : vector<18xf32>
    %218 = vector.multi_reduction <add>, %193, %cst_110 [1] : vector<18x32xf32> to vector<18xf32>
    %219 = vector.shape_cast %218 : vector<18xf32> to vector<18x1xf32>
    %cst_111 = arith.constant 3.200000e+01 : f32
    %220 = vector.broadcast %cst_111 : f32 to vector<18x1xf32>
    %221 = arith.divf %219, %220 : vector<18x1xf32>
    %222 = vector.broadcast %221 : vector<18x1xf32> to vector<18x32xf32>
    %223 = arith.subf %193, %222 : vector<18x32xf32>
    %224 = arith.mulf %223, %223 : vector<18x32xf32>
    %cst_112 = arith.constant dense<0.000000e+00> : vector<18xf32>
    %225 = vector.multi_reduction <add>, %224, %cst_112 [1] : vector<18x32xf32> to vector<18xf32>
    %226 = vector.shape_cast %225 : vector<18xf32> to vector<18x1xf32>
    %cst_113 = arith.constant 3.200000e+01 : f32
    %227 = vector.broadcast %cst_113 : f32 to vector<18x1xf32>
    %228 = arith.divf %226, %227 : vector<18x1xf32>
    %cst_114 = arith.constant 9.99999974E-6 : f32
    %229 = vector.broadcast %cst_114 : f32 to vector<18x1xf32>
    %230 = arith.addf %228, %229 : vector<18x1xf32>
    %231 = math.rsqrt %230 : vector<18x1xf32>
    %232 = vector.broadcast %231 : vector<18x1xf32> to vector<18x32xf32>
    %233 = arith.mulf %223, %232 : vector<18x32xf32>
    %234 = vector.broadcast %207 : vector<1x32xf32> to vector<18x32xf32>
    %235 = arith.mulf %233, %234 : vector<18x32xf32>
    %236 = vector.broadcast %209 : vector<1x32xf32> to vector<18x32xf32>
    %237 = arith.addf %235, %236 : vector<18x32xf32>
    %cst_115 = arith.constant dense<0.000000e+00> : vector<18x96xf32>
    %238 = tpu.matmul %237, %195, %cst_115 {dimension_numbers = #tpu.dot_dimension_numbers<[1], [0], [0], [1], [0, 0, 1, 1], [], []>} : vector<18x32xf32>, vector<32x96xf32>, vector<18x96xf32> -> vector<18x96xf32>
    %239 = vector.broadcast %203 : vector<1x96xf32> to vector<18x96xf32>
    %240 = arith.addf %238, %239 : vector<18x96xf32>
    %241 = vector.extract_strided_slice %240 {offsets = [0, 0], sizes = [18, 32], strides = [1, 1]} : vector<18x96xf32> to vector<18x32xf32>
    %242 = vector.extract_strided_slice %240 {offsets = [0, 32], sizes = [18, 32], strides = [1, 1]} : vector<18x96xf32> to vector<18x32xf32>
    %243 = vector.extract_strided_slice %240 {offsets = [0, 64], sizes = [18, 32], strides = [1, 1]} : vector<18x96xf32> to vector<18x32xf32>
    %244 = vector.extract_strided_slice %241 {offsets = [0, 0], sizes = [18, 8], strides = [1, 1]} : vector<18x32xf32> to vector<18x8xf32>
    %245 = vector.extract_strided_slice %242 {offsets = [0, 0], sizes = [18, 8], strides = [1, 1]} : vector<18x32xf32> to vector<18x8xf32>
    %cst_116 = arith.constant dense<0.000000e+00> : vector<18x18xf32>
    %246 = tpu.matmul %244, %245, %cst_116 {dimension_numbers = #tpu.dot_dimension_numbers<[1], [1], [0], [0], [0, 0, 1, 0], [], []>} : vector<18x8xf32>, vector<18x8xf32>, vector<18x18xf32> -> vector<18x18xf32>
    %247 = arith.addf %246, %30 : vector<18x18xf32>
    %cst_117 = arith.constant dense<0xFF800000> : vector<18xf32>
    %248 = vector.multi_reduction <maximumf>, %247, %cst_117 [1] : vector<18x18xf32> to vector<18xf32>
    %249 = vector.shape_cast %248 : vector<18xf32> to vector<18x1xf32>
    %250 = vector.broadcast %249 : vector<18x1xf32> to vector<18x18xf32>
    %251 = arith.subf %247, %250 : vector<18x18xf32>
    %252 = math.exp %251 : vector<18x18xf32>
    %cst_118 = arith.constant dense<0.000000e+00> : vector<18xf32>
    %253 = vector.multi_reduction <add>, %252, %cst_118 [1] : vector<18x18xf32> to vector<18xf32>
    %254 = vector.shape_cast %253 : vector<18xf32> to vector<18x1xf32>
    %255 = tpu.reciprocal %254 {approx = true} : vector<18x1xf32> -> vector<18x1xf32>
    %256 = vector.broadcast %255 : vector<18x1xf32> to vector<18x18xf32>
    %257 = arith.mulf %252, %256 : vector<18x18xf32>
    %258 = vector.extract_strided_slice %243 {offsets = [0, 0], sizes = [18, 8], strides = [1, 1]} : vector<18x32xf32> to vector<18x8xf32>
    %cst_119 = arith.constant dense<0.000000e+00> : vector<18x8xf32>
    %259 = tpu.matmul %257, %258, %cst_119 {dimension_numbers = #tpu.dot_dimension_numbers<[1], [0], [0], [1], [0, 0, 1, 1], [], []>} : vector<18x18xf32>, vector<18x8xf32>, vector<18x8xf32> -> vector<18x8xf32>
    %260 = vector.extract_strided_slice %241 {offsets = [0, 8], sizes = [18, 8], strides = [1, 1]} : vector<18x32xf32> to vector<18x8xf32>
    %261 = vector.extract_strided_slice %242 {offsets = [0, 8], sizes = [18, 8], strides = [1, 1]} : vector<18x32xf32> to vector<18x8xf32>
    %cst_120 = arith.constant dense<0.000000e+00> : vector<18x18xf32>
    %262 = tpu.matmul %260, %261, %cst_120 {dimension_numbers = #tpu.dot_dimension_numbers<[1], [1], [0], [0], [0, 0, 1, 0], [], []>} : vector<18x8xf32>, vector<18x8xf32>, vector<18x18xf32> -> vector<18x18xf32>
    %263 = arith.addf %262, %30 : vector<18x18xf32>
    %cst_121 = arith.constant dense<0xFF800000> : vector<18xf32>
    %264 = vector.multi_reduction <maximumf>, %263, %cst_121 [1] : vector<18x18xf32> to vector<18xf32>
    %265 = vector.shape_cast %264 : vector<18xf32> to vector<18x1xf32>
    %266 = vector.broadcast %265 : vector<18x1xf32> to vector<18x18xf32>
    %267 = arith.subf %263, %266 : vector<18x18xf32>
    %268 = math.exp %267 : vector<18x18xf32>
    %cst_122 = arith.constant dense<0.000000e+00> : vector<18xf32>
    %269 = vector.multi_reduction <add>, %268, %cst_122 [1] : vector<18x18xf32> to vector<18xf32>
    %270 = vector.shape_cast %269 : vector<18xf32> to vector<18x1xf32>
    %271 = tpu.reciprocal %270 {approx = true} : vector<18x1xf32> -> vector<18x1xf32>
    %272 = vector.broadcast %271 : vector<18x1xf32> to vector<18x18xf32>
    %273 = arith.mulf %268, %272 : vector<18x18xf32>
    %274 = vector.extract_strided_slice %243 {offsets = [0, 8], sizes = [18, 8], strides = [1, 1]} : vector<18x32xf32> to vector<18x8xf32>
    %cst_123 = arith.constant dense<0.000000e+00> : vector<18x8xf32>
    %275 = tpu.matmul %273, %274, %cst_123 {dimension_numbers = #tpu.dot_dimension_numbers<[1], [0], [0], [1], [0, 0, 1, 1], [], []>} : vector<18x18xf32>, vector<18x8xf32>, vector<18x8xf32> -> vector<18x8xf32>
    %276 = vector.extract_strided_slice %241 {offsets = [0, 16], sizes = [18, 8], strides = [1, 1]} : vector<18x32xf32> to vector<18x8xf32>
    %277 = vector.extract_strided_slice %242 {offsets = [0, 16], sizes = [18, 8], strides = [1, 1]} : vector<18x32xf32> to vector<18x8xf32>
    %cst_124 = arith.constant dense<0.000000e+00> : vector<18x18xf32>
    %278 = tpu.matmul %276, %277, %cst_124 {dimension_numbers = #tpu.dot_dimension_numbers<[1], [1], [0], [0], [0, 0, 1, 0], [], []>} : vector<18x8xf32>, vector<18x8xf32>, vector<18x18xf32> -> vector<18x18xf32>
    %279 = arith.addf %278, %30 : vector<18x18xf32>
    %cst_125 = arith.constant dense<0xFF800000> : vector<18xf32>
    %280 = vector.multi_reduction <maximumf>, %279, %cst_125 [1] : vector<18x18xf32> to vector<18xf32>
    %281 = vector.shape_cast %280 : vector<18xf32> to vector<18x1xf32>
    %282 = vector.broadcast %281 : vector<18x1xf32> to vector<18x18xf32>
    %283 = arith.subf %279, %282 : vector<18x18xf32>
    %284 = math.exp %283 : vector<18x18xf32>
    %cst_126 = arith.constant dense<0.000000e+00> : vector<18xf32>
    %285 = vector.multi_reduction <add>, %284, %cst_126 [1] : vector<18x18xf32> to vector<18xf32>
    %286 = vector.shape_cast %285 : vector<18xf32> to vector<18x1xf32>
    %287 = tpu.reciprocal %286 {approx = true} : vector<18x1xf32> -> vector<18x1xf32>
    %288 = vector.broadcast %287 : vector<18x1xf32> to vector<18x18xf32>
    %289 = arith.mulf %284, %288 : vector<18x18xf32>
    %290 = vector.extract_strided_slice %243 {offsets = [0, 16], sizes = [18, 8], strides = [1, 1]} : vector<18x32xf32> to vector<18x8xf32>
    %cst_127 = arith.constant dense<0.000000e+00> : vector<18x8xf32>
    %291 = tpu.matmul %289, %290, %cst_127 {dimension_numbers = #tpu.dot_dimension_numbers<[1], [0], [0], [1], [0, 0, 1, 1], [], []>} : vector<18x18xf32>, vector<18x8xf32>, vector<18x8xf32> -> vector<18x8xf32>
    %292 = vector.extract_strided_slice %241 {offsets = [0, 24], sizes = [18, 8], strides = [1, 1]} : vector<18x32xf32> to vector<18x8xf32>
    %293 = vector.extract_strided_slice %242 {offsets = [0, 24], sizes = [18, 8], strides = [1, 1]} : vector<18x32xf32> to vector<18x8xf32>
    %cst_128 = arith.constant dense<0.000000e+00> : vector<18x18xf32>
    %294 = tpu.matmul %292, %293, %cst_128 {dimension_numbers = #tpu.dot_dimension_numbers<[1], [1], [0], [0], [0, 0, 1, 0], [], []>} : vector<18x8xf32>, vector<18x8xf32>, vector<18x18xf32> -> vector<18x18xf32>
    %295 = arith.addf %294, %30 : vector<18x18xf32>
    %cst_129 = arith.constant dense<0xFF800000> : vector<18xf32>
    %296 = vector.multi_reduction <maximumf>, %295, %cst_129 [1] : vector<18x18xf32> to vector<18xf32>
    %297 = vector.shape_cast %296 : vector<18xf32> to vector<18x1xf32>
    %298 = vector.broadcast %297 : vector<18x1xf32> to vector<18x18xf32>
    %299 = arith.subf %295, %298 : vector<18x18xf32>
    %300 = math.exp %299 : vector<18x18xf32>
    %cst_130 = arith.constant dense<0.000000e+00> : vector<18xf32>
    %301 = vector.multi_reduction <add>, %300, %cst_130 [1] : vector<18x18xf32> to vector<18xf32>
    %302 = vector.shape_cast %301 : vector<18xf32> to vector<18x1xf32>
    %303 = tpu.reciprocal %302 {approx = true} : vector<18x1xf32> -> vector<18x1xf32>
    %304 = vector.broadcast %303 : vector<18x1xf32> to vector<18x18xf32>
    %305 = arith.mulf %300, %304 : vector<18x18xf32>
    %306 = vector.extract_strided_slice %243 {offsets = [0, 24], sizes = [18, 8], strides = [1, 1]} : vector<18x32xf32> to vector<18x8xf32>
    %cst_131 = arith.constant dense<0.000000e+00> : vector<18x8xf32>
    %307 = tpu.matmul %305, %306, %cst_131 {dimension_numbers = #tpu.dot_dimension_numbers<[1], [0], [0], [1], [0, 0, 1, 1], [], []>} : vector<18x18xf32>, vector<18x8xf32>, vector<18x8xf32> -> vector<18x8xf32>
    %308 = tpu.concatenate %259, %275, %291, %307 in 1 : vector<18x8xf32>, vector<18x8xf32>, vector<18x8xf32>, vector<18x8xf32> -> vector<18x32xf32>
    %cst_132 = arith.constant dense<0.000000e+00> : vector<18x32xf32>
    %309 = tpu.matmul %308, %197, %cst_132 {dimension_numbers = #tpu.dot_dimension_numbers<[1], [0], [0], [1], [0, 0, 1, 1], [], []>} : vector<18x32xf32>, vector<32x32xf32>, vector<18x32xf32> -> vector<18x32xf32>
    %310 = arith.addf %193, %309 : vector<18x32xf32>
    %311 = vector.broadcast %215 : vector<1x32xf32> to vector<18x32xf32>
    %312 = arith.addf %310, %311 : vector<18x32xf32>
    %cst_133 = arith.constant dense<0.000000e+00> : vector<18xf32>
    %313 = vector.multi_reduction <add>, %312, %cst_133 [1] : vector<18x32xf32> to vector<18xf32>
    %314 = vector.shape_cast %313 : vector<18xf32> to vector<18x1xf32>
    %cst_134 = arith.constant 3.200000e+01 : f32
    %315 = vector.broadcast %cst_134 : f32 to vector<18x1xf32>
    %316 = arith.divf %314, %315 : vector<18x1xf32>
    %317 = vector.broadcast %316 : vector<18x1xf32> to vector<18x32xf32>
    %318 = arith.subf %312, %317 : vector<18x32xf32>
    %319 = arith.mulf %318, %318 : vector<18x32xf32>
    %cst_135 = arith.constant dense<0.000000e+00> : vector<18xf32>
    %320 = vector.multi_reduction <add>, %319, %cst_135 [1] : vector<18x32xf32> to vector<18xf32>
    %321 = vector.shape_cast %320 : vector<18xf32> to vector<18x1xf32>
    %cst_136 = arith.constant 3.200000e+01 : f32
    %322 = vector.broadcast %cst_136 : f32 to vector<18x1xf32>
    %323 = arith.divf %321, %322 : vector<18x1xf32>
    %cst_137 = arith.constant 9.99999974E-6 : f32
    %324 = vector.broadcast %cst_137 : f32 to vector<18x1xf32>
    %325 = arith.addf %323, %324 : vector<18x1xf32>
    %326 = math.rsqrt %325 : vector<18x1xf32>
    %327 = vector.broadcast %326 : vector<18x1xf32> to vector<18x32xf32>
    %328 = arith.mulf %318, %327 : vector<18x32xf32>
    %329 = vector.broadcast %211 : vector<1x32xf32> to vector<18x32xf32>
    %330 = arith.mulf %328, %329 : vector<18x32xf32>
    %331 = vector.broadcast %213 : vector<1x32xf32> to vector<18x32xf32>
    %332 = arith.addf %330, %331 : vector<18x32xf32>
    %cst_138 = arith.constant dense<0.000000e+00> : vector<18x64xf32>
    %333 = tpu.matmul %332, %199, %cst_138 {dimension_numbers = #tpu.dot_dimension_numbers<[1], [0], [0], [1], [0, 0, 1, 1], [], []>} : vector<18x32xf32>, vector<32x64xf32>, vector<18x64xf32> -> vector<18x64xf32>
    %334 = vector.broadcast %205 : vector<1x64xf32> to vector<18x64xf32>
    %335 = arith.addf %333, %334 : vector<18x64xf32>
    %cst_139 = arith.constant 0.000000e+00 : f32
    %336 = vector.broadcast %cst_139 : f32 to vector<18x64xf32>
    %337 = arith.maximumf %335, %336 : vector<18x64xf32>
    %cst_140 = arith.constant dense<0.000000e+00> : vector<18x32xf32>
    %338 = tpu.matmul %337, %201, %cst_140 {dimension_numbers = #tpu.dot_dimension_numbers<[1], [1], [0], [0], [0, 0, 1, 0], [], []>} : vector<18x64xf32>, vector<32x64xf32>, vector<18x32xf32> -> vector<18x32xf32>
    %339 = arith.addf %312, %338 : vector<18x32xf32>
    %340 = vector.broadcast %217 : vector<1x32xf32> to vector<18x32xf32>
    %341 = arith.addf %339, %340 : vector<18x32xf32>
    %342 = vector.extract_strided_slice %341 {offsets = [0, 0], sizes = [2, 32], strides = [1, 1]} : vector<18x32xf32> to vector<2x32xf32>
    %cst_141 = arith.constant dense<0.000000e+00> : vector<2xf32>
    %343 = vector.multi_reduction <add>, %342, %cst_141 [1] : vector<2x32xf32> to vector<2xf32>
    %344 = vector.shape_cast %343 : vector<2xf32> to vector<2x1xf32>
    %cst_142 = arith.constant 3.200000e+01 : f32
    %345 = vector.broadcast %cst_142 : f32 to vector<2x1xf32>
    %346 = arith.divf %344, %345 : vector<2x1xf32>
    %347 = vector.broadcast %346 : vector<2x1xf32> to vector<2x32xf32>
    %348 = arith.subf %342, %347 : vector<2x32xf32>
    %349 = arith.mulf %348, %348 : vector<2x32xf32>
    %cst_143 = arith.constant dense<0.000000e+00> : vector<2xf32>
    %350 = vector.multi_reduction <add>, %349, %cst_143 [1] : vector<2x32xf32> to vector<2xf32>
    %351 = vector.shape_cast %350 : vector<2xf32> to vector<2x1xf32>
    %cst_144 = arith.constant 3.200000e+01 : f32
    %352 = vector.broadcast %cst_144 : f32 to vector<2x1xf32>
    %353 = arith.divf %351, %352 : vector<2x1xf32>
    %cst_145 = arith.constant 9.99999974E-6 : f32
    %354 = vector.broadcast %cst_145 : f32 to vector<2x1xf32>
    %355 = arith.addf %353, %354 : vector<2x1xf32>
    %356 = math.rsqrt %355 : vector<2x1xf32>
    %357 = vector.broadcast %356 : vector<2x1xf32> to vector<2x32xf32>
    %358 = arith.mulf %348, %357 : vector<2x32xf32>
    %359 = vector.broadcast %34 : vector<1x32xf32> to vector<2x32xf32>
    %360 = arith.mulf %358, %359 : vector<2x32xf32>
    %361 = vector.broadcast %35 : vector<1x32xf32> to vector<2x32xf32>
    %362 = arith.addf %360, %361 : vector<2x32xf32>
    %c0_146 = arith.constant 0 : index
    %c0_147 = arith.constant 0 : index
    %363 = vector.load %arg4[%c0_146, %c0_147] : memref<2x32xf32, #tpu.memory_space<vmem>>, vector<2x32xf32>
    tpu.vector_store %arg4[%c0_146, %c0_147], %362 {strides = array<i32>} : memref<2x32xf32, #tpu.memory_space<vmem>>, vector<2x32xf32>,
    return
  }
}

</mosaic_0001>

<llo_original>
// kernel: esm_bottleneck_forward.1
$region0: #{esm_bottleneck_forward.1}
  #allocation0 [shape = 'u32[]', space=smem, size = 0x4, offset = 0x4, fixed_abs, tag = 'smem constant byte address 0x4 - core index']
  #allocation1 [shape = 'u32[144,128]{1,0:T(1,128)}', space=vmem, size = 0x12000, scoped, tag = 'internal scratch']
  %s0 = inlined_call_operand.vmem [shape: f32[18,48], index: 0, kind: input, shape index: {}]
  %s1 = inlined_call_operand.vmem [shape: f32[1,18], index: 1, kind: input, shape index: {}]
  %s2 = inlined_call_operand.vmem [shape: f32[52,32], index: 2, kind: input, shape index: {}]
  %s3 = inlined_call_operand.hbm [shape: f32[2,136,128], index: 3, kind: input, shape index: {}]
  %s4 = inlined_call_operand.hbm [shape: f32[2,32], index: 4, kind: output, shape index: {}]
  %s5 = sld [smem:[#allocation0]]
  $region30: #{esm_bottleneck_forward.1} parent=0
    _
  %s7 = ssub.s32 1, %s5
  %s8 = scalar_select 0, %s7, %s5
  $region1: #{esm_bottleneck_forward.1} parent=0
    #allocation2 [shape = 'u8[139264]{0}', space=vmem, size = 0x22000, scoped, tag = 'input window, operand 3, single buffered']
    #allocation3 [shape = 's32[1]{0}', space=sflag, size = 0x4, scoped, tag = 'scoped memory for esm_bottleneck_forward.1']
    #allocation4 [shape = 's32[1]{0}', space=sflag, size = 0x4, scoped, tag = 'scoped memory for esm_bottleneck_forward.1']
    #allocation5 [shape = 'u8[1024]{0}', space=vmem, size = 0x400, scoped, tag = 'output window, operand 0, single buffered']
    %9 = vsyncpa [#allocation3], 0
    %10 = vsyncpa [#allocation4], 0
    // Predicated region
    $region2: #{esm_bottleneck_forward.1} parent=1 // pred_check
      _
    $region3: #{esm_bottleneck_forward.1} parent=1 // pred_check_branch
      %12 = sbr.rel (0) target = $region5
    $region4: #{esm_bottleneck_forward.1} parent=1 // pred_region
      _
    $region5: #{esm_bottleneck_forward.1} parent=1 // pred_fallthru
      _
    // Predicated region
    $region6: #{esm_bottleneck_forward.1} parent=1 // pred_check
      _
    $region7: #{esm_bottleneck_forward.1} parent=1 // pred_check_branch
      %14 = sbr.rel (0) target = $region9
    $region8: #{esm_bottleneck_forward.1} parent=1 // pred_region
      _
    $region9: #{esm_bottleneck_forward.1} parent=1 // pred_fallthru
      _
    // Predicated region
    $region10: #{esm_bottleneck_forward.1} parent=1 // pred_check
      _
    $region11: #{esm_bottleneck_forward.1} parent=1 // pred_check_branch
      %16 = sbr.rel (0) target = $region13
    $region12: #{esm_bottleneck_forward.1} parent=1 // pred_region
      _
    $region13: #{esm_bottleneck_forward.1} parent=1 // pred_fallthru
      _
    // Predicated region
    $region14: #{esm_bottleneck_forward.1} parent=1 // pred_check
      _
    $region15: #{esm_bottleneck_forward.1} parent=1 // pred_check_branch
      %18 = sbr.rel (0) target = $region17
    $region16: #{esm_bottleneck_forward.1} parent=1 // pred_region
      %s20 = ssub.s32 4352, 4352
      %21 = vsyncadd [#allocation3], %s20
      %s22 = sshll.u32 [#allocation2], 4
      %s23 = int_to_ptr.vmem [resolvable:$true] %s22
      %28 = dma.hbm_to_vmem [thread:$0]  %s3, 4352, %s23, [#allocation3], 128, 128, 8
    $region17: #{esm_bottleneck_forward.1} parent=1 // pred_fallthru
      _
    // Predicated region
    $region18: #{esm_bottleneck_forward.1} parent=1 // pred_check
      _
    $region19: #{esm_bottleneck_forward.1} parent=1 // pred_check_branch
      %30 = sbr.rel (0) target = $region21
    $region20: #{esm_bottleneck_forward.1} parent=1 // pred_region
      %31 = dma.done [#allocation3], 4352
    $region21: #{esm_bottleneck_forward.1} parent=1 // pred_fallthru
      _
    %v32 = vlaneseq
    %v33 = vshrl.u32 %v32, 7
    %v34 = vadd.s32 %v33, 8
    %v35 = vadd.s32 %v33, 16
    %v36 = vlaneseq
    %v37 = vand.u32 %v36, 127
    %v38 = vcvt.s32.f32 %v33
    %v39 = vcvt.s32.f32 %v34
    %v40 = vcvt.s32.f32 %v35
    %vm41 = vcmp.lt.s32.totalorder %v33, 2
    %vm42 = vcmp.lt.s32.totalorder %v34, 2
    %vm43 = vcmp.lt.s32.totalorder %v35, 2
    %v44 = vsub.f32 %v38, 2.0
    %v45 = vsub.f32 %v39, 2.0
    %v46 = vsub.f32 %v40, 2.0
    %v47 = vadd.f32 %v44, 0.5
    %v48 = vadd.f32 %v45, 0.5
    %v49 = vadd.f32 %v46, 0.5
    %v50 = vmul.f32 %v47, 0.125
    %v51 = vmul.f32 %v48, 0.125
    %v52 = vmul.f32 %v49, 0.125
    %v53 = vfloor.f32 %v50
    %v54 = vfloor.f32 %v51
    %v55 = vfloor.f32 %v52
    %v56 = vsel %vm41, %v38, %v53
    %v57 = vsel %vm42, %v39, %v54
    %v58 = vsel %vm43, %v40, %v55
    %v59 = vcvt.s32.f32 %v37
    %vm60 = vcmp.lt.s32.totalorder %v37, 2
    %v61 = vsub.f32 %v59, 2.0
    %v62 = vadd.f32 %v61, 0.5
    %v63 = vmul.f32 %v62, 0.125
    %v64 = vfloor.f32 %v63
    %v65 = vsel %vm60, %v59, %v64
    %vm66 = vcmp.eq.f32.partialorder %v56, %v65
    %vm67 = vcmp.eq.f32.partialorder %v57, %v65
    %vm68 = vcmp.eq.f32.partialorder %v58, %v65
    %v69 = vsel %vm66, 0.0, -1e+30
    %v70 = vsel %vm67, 0.0, -1e+30
    %v71 = vsel %vm68, 0.0, -1e+30
    %v72 = vld [vmem:[%s1] sm:$0x1]
    %v74 = vlaneseq
    %v75 = vshrl.u32 %v74, 7
    %v76 = vsub.s32 0, %v75
    %v77 = vrot.slane %v72, %v76
    %v79 = vadd.f32 %v69, %v77
    %v80 = vadd.f32 %v70, %v77
    %v81 = vadd.f32 %v71, %v77
    %v82 = vld [vmem:[%s2] sm:$0xff]
    %v83 = vld [vmem:[%s2 + $0x8] sm:$0xff]
    %v84 = vld [vmem:[%s2 + $0x10] sm:$0xff]
    %v85 = vld [vmem:[%s2 + $0x18] sm:$0xff]
    %v86 = vld [vmem:[%s2 + $0x20] sm:$0xff]
    %v87 = vld [vmem:[%s2 + $0x28] sm:$0xff]
    %v88 = vld [vmem:[%s2 + $0x30] sm:$0x1]
    %v89 = vld [vmem:[%s2 + $0x31] sm:$0x1]
    %v90 = vld [vmem:[%s2 + $0x32] sm:$0x1]
    %v91 = vld [vmem:[%s2 + $0x33] sm:$0x1]
    %v92 = vld [vmem:[%s0] sm:$0xff]
    %v93 = vld [vmem:[%s0 + $0x8] sm:$0xff]
    %v94 = vld [vmem:[%s0 + $0x10] sm:$0x3]
    %v95 = vlaneseq
    %v96 = vshrl.u32 %v95, 7
    %v97 = vsub.s32 0, %v96
    %v98 = vrot.slane %v88, %v97
    %vm99 = vcmask 392192
    %v101 = vsel %vm99, %v92, 0
    %v104 = vsel %vm99, %v93, 0
    %v107 = vsel %vm99, %v94, 0
    %109 = vmatprep.subr.mxu0 0.0
    %110 = vmatpush1.msra.mxu0 %v82
    %111 = vmatprep.subr.mxu0 0.0
    %112 = vmatpush1.msra.mxu0 %v83
    %113 = vmatprep.subr.mxu0 0.0
    %114 = vmatpush1.msra.mxu0 %v84
    %115 = vmatprep.subr.mxu0 0.0
    %116 = vmatpush1.msra.mxu0 %v85
    %117 = vmatprep.subr.mxu0 0.0
    %118 = vmatpush1.msra.mxu0 %v86
    %119 = vmatprep.subr.mxu0 0.0
    %120 = vmatpush1.msra.mxu0 %v87
    %121 = vmatprep.subr.mxu0 0.0
    %122 = vmatpush1.msra.mxu0 0.0
    %123 = vmatprep.subr.mxu0 0.0
    %124 = vmatpush1.msra.mxu0 0.0
    %125 = vmatprep.subr.mxu0 0.0
    %126 = vmatpush1.msra.mxu0 0.0
    %127 = vmatprep.subr.mxu0 0.0
    %128 = vmatpush1.msra.mxu0 0.0
    %129 = vmatprep.subr.mxu0 0.0
    %130 = vmatpush1.msra.mxu0 0.0
    %131 = vmatprep.subr.mxu0 0.0
    %132 = vmatpush1.msra.mxu0 0.0
    %133 = vmatprep.subr.mxu0 0.0
    %134 = vmatpush1.msra.mxu0 0.0
    %135 = vmatprep.subr.mxu0 0.0
    %136 = vmatpush1.msra.mxu0 0.0
    %137 = vmatprep.subr.mxu0 0.0
    %138 = vmatpush1.msra.mxu0 0.0
    %139 = vmatprep.subr.mxu0 0.0
    %140 = vmatpush1.msra.mxu0 0.0
    %141 = vmatprep.subr.mxu0 0.0
    %142 = vmatpush1.msra.mxu0 0.0
    %143 = vmatprep.subr.mxu0 0.0
    %144 = vmatpush1.msra.mxu0 0.0
    %145 = vmatprep.subr.mxu0 0.0
    %146 = vmatpush1.msra.mxu0 0.0
    %147 = vmatprep.subr.mxu0 0.0
    %148 = vmatpush1.msra.mxu0 0.0
    %149 = vmatprep.subr.mxu0 0.0
    %150 = vmatpush1.msra.mxu0 0.0
    %151 = vmatprep.subr.mxu0 0.0
    %152 = vmatpush1.msra.mxu0 0.0
    %153 = vmatprep.subr.mxu0 0.0
    %154 = vmatpush1.msra.mxu0 0.0
    %155 = vmatprep.subr.mxu0 0.0
    %156 = vmatpush1.msra.mxu0 0.0
    %157 = vmatprep.subr.mxu0 0.0
    %158 = vmatpush1.msra.mxu0 0.0
    %159 = vmatprep.subr.mxu0 0.0
    %160 = vmatpush1.msra.mxu0 0.0
    %161 = vmatprep.subr.mxu0 0.0
    %162 = vmatpush1.msra.mxu0 0.0
    %163 = vmatprep.subr.mxu0 0.0
    %164 = vmatpush1.msra.mxu0 0.0
    %165 = vmatprep.subr.mxu0 0.0
    %166 = vmatpush1.msra.mxu0 0.0
    %167 = vmatprep.subr.mxu0 0.0
    %168 = vmatpush1.msra.mxu0 0.0
    %169 = vmatprep.subr.mxu0 0.0
    %170 = vmatpush1.msra.mxu0 0.0
    %171 = vmatprep.subr.mxu0 0.0
    %172 = vmatpush1.msra.mxu0 0.0
    %173 = vmatprep.mubr.f32.mxu0 0.0
    %174 = vmatmul.mubr.f32.gmra.mrb[0].mxu0 %v101
    %v175 = vpop.f32.mrb[0].mxu0
    %v176 = vadd.f32 %v98, %v175
    %v177 = vpop.f32.mrb[0].mxu0
    %178 = vmatprep.mubr.f32.mxu0 0.0
    %179 = vmatmul.mubr.f32.gmra.mrb[0].mxu0 %v104
    %v180 = vpop.f32.mrb[0].mxu0
    %v181 = vadd.f32 %v98, %v180
    %v182 = vpop.f32.mrb[0].mxu0
    %183 = vmatprep.mubr.f32.mxu0 0.0
    %184 = vmatmul.mubr.f32.gmra.mrb[0].mxu0 %v107
    %v185 = vpop.f32.mrb[0].mxu0
    %v186 = vadd.f32 %v98, %v185
    %v187 = vpop.f32.mrb[0].mxu0
    %188 = vdwg.mxu0
    %v189 = vlaneseq
    %v190 = vshrl.u32 %v189, 7
    %v191 = vsub.s32 0, %v190
    %v192 = vrot.slane %v89, %v191
    %v193 = vsel %vm41, %v192, %v176
    %v194 = vsel %vm42, %v192, %v181
    %v195 = vsel %vm43, %v192, %v186
    %v196 = vld [vmem:[#allocation2] sm:$0xff]
    %v197 = vld [vmem:[#allocation2 + $0x8] sm:$0xff]
    %v198 = vld [vmem:[#allocation2 + $0x10] sm:$0xff]
    %v199 = vld [vmem:[#allocation2 + $0x18] sm:$0xff]
    %v200 = vld [vmem:[#allocation2 + $0x20] sm:$0xff]
    %v201 = vld [vmem:[#allocation2 + $0x28] sm:$0xff]
    %v202 = vld [vmem:[#allocation2 + $0x30] sm:$0xff]
    %v203 = vld [vmem:[#allocation2 + $0x38] sm:$0xff]
    %v204 = vld [vmem:[#allocation2 + $0x40] sm:$0xff]
    %v205 = vld [vmem:[#allocation2 + $0x48] sm:$0xff]
    %v206 = vld [vmem:[#allocation2 + $0x50] sm:$0xff]
    %v207 = vld [vmem:[#allocation2 + $0x58] sm:$0xff]
    %v208 = vld [vmem:[#allocation2 + $0x60] sm:$0xff]
    %v209 = vld [vmem:[#allocation2 + $0x68] sm:$0xff]
    %v210 = vld [vmem:[#allocation2 + $0x70] sm:$0xff]
    %v211 = vld [vmem:[#allocation2 + $0x78] sm:$0xff]
    %v212 = vld [vmem:[#allocation2 + $0x80] sm:$0x1]
    %v213 = vld [vmem:[#allocation2 + $0x81] sm:$0x1]
    %v214 = vld [vmem:[#allocation2 + $0x82] sm:$0x1]
    %v215 = vld [vmem:[#allocation2 + $0x83] sm:$0x1]
    %v216 = vld [vmem:[#allocation2 + $0x84] sm:$0x1]
    %v217 = vld [vmem:[#allocation2 + $0x85] sm:$0x1]
    %v218 = vld [vmem:[#allocation2 + $0x86] sm:$0x1]
    %v219 = vld [vmem:[#allocation2 + $0x87] sm:$0x1]
    %vm220 = vcmask 261120
    %v221 = vsel %vm220, %v193, 0.0
    %222 = vadd.xlane.f32.xlu0 %v221
    %v223 = vpop.xlane.xlu0 %222
    %v224 = vsel %vm220, %v194, 0.0
    %225 = vadd.xlane.f32.xlu0 %v224
    %v226 = vpop.xlane.xlu0 %225
    %vm227 = vcmask 254976
    %v228 = vsel %vm227, %v195, 0.0
    %229 = vadd.xlane.f32.xlu0 %v228
    %v230 = vpop.xlane.xlu0 %229
    %v231 = vrcp.pop 32.0
    %v232 = vmul.f32 %v223, %v231
    %v233 = vmul.f32 %v226, %v231
    %v234 = vmul.f32 %v230, %v231
    %v235 = vsub.f32 %v193, %v232
    %v236 = vsub.f32 %v194, %v233
    %v237 = vsub.f32 %v195, %v234
    %v238 = vmul.f32 %v235, %v235
    %v239 = vmul.f32 %v236, %v236
    %v240 = vmul.f32 %v237, %v237
    %v241 = vsel %vm220, %v238, 0.0
    %242 = vadd.xlane.f32.xlu0 %v241
    %v243 = vpop.xlane.xlu0 %242
    %v244 = vsel %vm220, %v239, 0.0
    %245 = vadd.xlane.f32.xlu0 %v244
    %v246 = vpop.xlane.xlu0 %245
    %v247 = vsel %vm227, %v240, 0.0
    %248 = vadd.xlane.f32.xlu0 %v247
    %v249 = vpop.xlane.xlu0 %248
    %v250 = vmul.f32 %v243, %v231
    %v251 = vmul.f32 %v246, %v231
    %v252 = vmul.f32 %v249, %v231
    %v253 = vadd.f32 %v250, 1e-05
    %v254 = vadd.f32 %v251, 1e-05
    %v255 = vadd.f32 %v252, 1e-05
    %v256 = vrsqrt.pop %v253
    %v257 = vrsqrt.pop %v254
    %v258 = vrsqrt.pop %v255
    %v259 = vmul.f32 %v235, %v256
    %v260 = vmul.f32 %v236, %v257
    %v261 = vmul.f32 %v237, %v258
    %v262 = vlaneseq
    %v263 = vshrl.u32 %v262, 7
    %v264 = vsub.s32 0, %v263
    %v265 = vrot.slane %v214, %v264
    %v266 = vmul.f32 %v259, %v265
    %v267 = vmul.f32 %v260, %v265
    %v268 = vmul.f32 %v261, %v265
    %v269 = vlaneseq
    %v270 = vshrl.u32 %v269, 7
    %v271 = vsub.s32 0, %v270
    %v272 = vrot.slane %v215, %v271
    %v273 = vadd.f32 %v266, %v272
    %v274 = vadd.f32 %v267, %v272
    %v275 = vadd.f32 %v268, %v272
    %v276 = vlaneseq
    %v277 = vshrl.u32 %v276, 7
    %v278 = vsub.s32 0, %v277
    %v279 = vrot.slane %v212, %v278
    %v281 = vsel %vm220, %v273, 0
    %v284 = vsel %vm220, %v274, 0
    %v287 = vsel %vm220, %v275, 0
    %289 = vmatprep.subr.mxu0 0.0
    %290 = vmatpush1.msra.mxu0 %v196
    %291 = vmatprep.subr.mxu0 0.0
    %292 = vmatpush1.msra.mxu0 %v197
    %293 = vmatprep.subr.mxu0 0.0
    %294 = vmatpush1.msra.mxu0 %v198
    %295 = vmatprep.subr.mxu0 0.0
    %296 = vmatpush1.msra.mxu0 %v199
    %297 = vmatprep.subr.mxu0 0.0
    %298 = vmatpush1.msra.mxu0 0.0
    %299 = vmatprep.subr.mxu0 0.0
    %300 = vmatpush1.msra.mxu0 0.0
    %301 = vmatprep.subr.mxu0 0.0
    %302 = vmatpush1.msra.mxu0 0.0
    %303 = vmatprep.subr.mxu0 0.0
    %304 = vmatpush1.msra.mxu0 0.0
    %305 = vmatprep.subr.mxu0 0.0
    %306 = vmatpush1.msra.mxu0 0.0
    %307 = vmatprep.subr.mxu0 0.0
    %308 = vmatpush1.msra.mxu0 0.0
    %309 = vmatprep.subr.mxu0 0.0
    %310 = vmatpush1.msra.mxu0 0.0
    %311 = vmatprep.subr.mxu0 0.0
    %312 = vmatpush1.msra.mxu0 0.0
    %313 = vmatprep.subr.mxu0 0.0
    %314 = vmatpush1.msra.mxu0 0.0
    %315 = vmatprep.subr.mxu0 0.0
    %316 = vmatpush1.msra.mxu0 0.0
    %317 = vmatprep.subr.mxu0 0.0
    %318 = vmatpush1.msra.mxu0 0.0
    %319 = vmatprep.subr.mxu0 0.0
    %320 = vmatpush1.msra.mxu0 0.0
    %321 = vmatprep.subr.mxu0 0.0
    %322 = vmatpush1.msra.mxu0 0.0
    %323 = vmatprep.subr.mxu0 0.0
    %324 = vmatpush1.msra.mxu0 0.0
    %325 = vmatprep.subr.mxu0 0.0
    %326 = vmatpush1.msra.mxu0 0.0
    %327 = vmatprep.subr.mxu0 0.0
    %328 = vmatpush1.msra.mxu0 0.0
    %329 = vmatprep.subr.mxu0 0.0
    %330 = vmatpush1.msra.mxu0 0.0
    %331 = vmatprep.subr.mxu0 0.0
    %332 = vmatpush1.msra.mxu0 0.0
    %333 = vmatprep.subr.mxu0 0.0
    %334 = vmatpush1.msra.mxu0 0.0
    %335 = vmatprep.subr.mxu0 0.0
    %336 = vmatpush1.msra.mxu0 0.0
    %337 = vmatprep.subr.mxu0 0.0
    %338 = vmatpush1.msra.mxu0 0.0
    %339 = vmatprep.subr.mxu0 0.0
    %340 = vmatpush1.msra.mxu0 0.0
    %341 = vmatprep.subr.mxu0 0.0
    %342 = vmatpush1.msra.mxu0 0.0
    %343 = vmatprep.subr.mxu0 0.0
    %344 = vmatpush1.msra.mxu0 0.0
    %345 = vmatprep.subr.mxu0 0.0
    %346 = vmatpush1.msra.mxu0 0.0
    %347 = vmatprep.subr.mxu0 0.0
    %348 = vmatpush1.msra.mxu0 0.0
    %349 = vmatprep.subr.mxu0 0.0
    %350 = vmatpush1.msra.mxu0 0.0
    %351 = vmatprep.subr.mxu0 0.0
    %352 = vmatpush1.msra.mxu0 0.0
    %353 = vmatprep.mubr.f32.mxu0 0.0
    %354 = vmatmul.mubr.f32.gmra.mrb[0].mxu0 %v281
    %v355 = vpop.f32.mrb[0].mxu0
    %v356 = vadd.f32 %v279, %v355
    %v357 = vpop.f32.mrb[0].mxu0
    %358 = vmatprep.mubr.f32.mxu0 0.0
    %359 = vmatmul.mubr.f32.gmra.mrb[0].mxu0 %v284
    %v360 = vpop.f32.mrb[0].mxu0
    %v361 = vadd.f32 %v279, %v360
    %v362 = vpop.f32.mrb[0].mxu0
    %363 = vmatprep.mubr.f32.mxu0 0.0
    %364 = vmatmul.mubr.f32.gmra.mrb[0].mxu0 %v287
    %v365 = vpop.f32.mrb[0].mxu0
    %v366 = vadd.f32 %v279, %v365
    %v367 = vpop.f32.mrb[0].mxu0
    %368 = vdwg.mxu0
    %372 = vrot.lane.b32.xlu0 %v356, 96
    %v373 = vpop.permute.xlu0 %372
    %374 = vrot.lane.b32.xlu0 %v361, 96
    %v375 = vpop.permute.xlu0 %374
    %376 = vrot.lane.b32.xlu0 %v366, 96
    %v377 = vpop.permute.xlu0 %376
    %vm378 = vcmask 64512
    %v379 = vsel %vm378, %v356, 0
    %v381 = vsel %vm378, %v361, 0
    %v383 = vsel %vm378, %v366, 0
    %v385 = vsel %vm378, %v373, 0
    %v387 = vsel %vm378, %v375, 0
    %v389 = vsel %vm378, %v377, 0
    %391 = vmatprep.subr.mxu0 0.0
    %392 = vmatpush1.xpose.msra.mxu0 %v385
    %393 = vmatprep.subr.mxu0 0.0
    %394 = vmatpush1.xpose.msra.mxu0 %v387
    %395 = vmatprep.subr.mxu0 0.0
    %396 = vmatpush1.xpose.msra.mxu0 %v389
    %397 = vmatprep.subr.mxu0 0.0
    %398 = vmatpush1.xpose.msra.mxu0 0.0
    %399 = vmatprep.subr.mxu0 0.0
    %400 = vmatpush1.xpose.msra.mxu0 0.0
    %401 = vmatprep.subr.mxu0 0.0
    %402 = vmatpush1.xpose.msra.mxu0 0.0
    %403 = vmatprep.subr.mxu0 0.0
    %404 = vmatpush1.xpose.msra.mxu0 0.0
    %405 = vmatprep.subr.mxu0 0.0
    %406 = vmatpush1.xpose.msra.mxu0 0.0
    %407 = vmatprep.subr.mxu0 0.0
    %408 = vmatpush1.xpose.msra.mxu0 0.0
    %409 = vmatprep.subr.mxu0 0.0
    %410 = vmatpush1.xpose.msra.mxu0 0.0
    %411 = vmatprep.subr.mxu0 0.0
    %412 = vmatpush1.xpose.msra.mxu0 0.0
    %413 = vmatprep.subr.mxu0 0.0
    %414 = vmatpush1.xpose.msra.mxu0 0.0
    %415 = vmatprep.subr.mxu0 0.0
    %416 = vmatpush1.xpose.msra.mxu0 0.0
    %417 = vmatprep.subr.mxu0 0.0
    %418 = vmatpush1.xpose.msra.mxu0 0.0
    %419 = vmatprep.subr.mxu0 0.0
    %420 = vmatpush1.xpose.msra.mxu0 0.0
    %421 = vmatprep.subr.mxu0 0.0
    %422 = vmatpush1.xpose.msra.mxu0 0.0
    %423 = vmatprep.subr.mxu0 0.0
    %424 = vmatpush1.xpose.msra.mxu0 0.0
    %425 = vmatprep.subr.mxu0 0.0
    %426 = vmatpush1.xpose.msra.mxu0 0.0
    %427 = vmatprep.subr.mxu0 0.0
    %428 = vmatpush1.xpose.msra.mxu0 0.0
    %429 = vmatprep.subr.mxu0 0.0
    %430 = vmatpush1.xpose.msra.mxu0 0.0
    %431 = vmatprep.subr.mxu0 0.0
    %432 = vmatpush1.xpose.msra.mxu0 0.0
    %433 = vmatprep.subr.mxu0 0.0
    %434 = vmatpush1.xpose.msra.mxu0 0.0
    %435 = vmatprep.subr.mxu0 0.0
    %436 = vmatpush1.xpose.msra.mxu0 0.0
    %437 = vmatprep.subr.mxu0 0.0
    %438 = vmatpush1.xpose.msra.mxu0 0.0
    %439 = vmatprep.subr.mxu0 0.0
    %440 = vmatpush1.xpose.msra.mxu0 0.0
    %441 = vmatprep.subr.mxu0 0.0
    %442 = vmatpush1.xpose.msra.mxu0 0.0
    %443 = vmatprep.subr.mxu0 0.0
    %444 = vmatpush1.xpose.msra.mxu0 0.0
    %445 = vmatprep.subr.mxu0 0.0
    %446 = vmatpush1.xpose.msra.mxu0 0.0
    %447 = vmatprep.subr.mxu0 0.0
    %448 = vmatpush1.xpose.msra.mxu0 0.0
    %449 = vmatprep.subr.mxu0 0.0
    %450 = vmatpush1.xpose.msra.mxu0 0.0
    %451 = vmatprep.subr.mxu0 0.0
    %452 = vmatpush1.xpose.msra.mxu0 0.0
    %453 = vmatprep.subr.mxu0 0.0
    %454 = vmatpush1.xpose.msra.mxu0 0.0
    %455 = vmatprep.mubr.f32.mxu0 0.0
    %456 = vmatmul.mubr.f32.gmra.mrb[0].mxu0 %v379
    %v457 = vpop.f32.mrb[0].mxu0
    %v458 = vadd.f32 %v79, %v457
    %v459 = vpop.f32.mrb[0].mxu0
    %460 = vmatprep.mubr.f32.mxu0 0.0
    %461 = vmatmul.mubr.f32.gmra.mrb[0].mxu0 %v381
    %v462 = vpop.f32.mrb[0].mxu0
    %v463 = vadd.f32 %v80, %v462
    %v464 = vpop.f32.mrb[0].mxu0
    %465 = vmatprep.mubr.f32.mxu0 0.0
    %466 = vmatmul.mubr.f32.gmra.mrb[0].mxu0 %v383
    %v467 = vpop.f32.mrb[0].mxu0
    %v468 = vadd.f32 %v81, %v467
    %v469 = vpop.f32.mrb[0].mxu0
    %470 = vdwg.mxu0
    %vm471 = vcmask 146432
    %v472 = vsel %vm471, %v458, -inf
    %473 = vmax.xlane.f32.xlu0 %v472
    %v474 = vpop.xlane.xlu0 %473
    %v475 = vsel %vm471, %v463, -inf
    %476 = vmax.xlane.f32.xlu0 %v475
    %v477 = vpop.xlane.xlu0 %476
    %vm478 = vcmask 140288
    %v479 = vsel %vm478, %v468, -inf
    %480 = vmax.xlane.f32.xlu0 %v479
    %v481 = vpop.xlane.xlu0 %480
    %v482 = vsub.f32 %v458, %v474
    %v483 = vsub.f32 %v463, %v477
    %v484 = vsub.f32 %v468, %v481
    %v485 = vmul.f32 %v482, 1.442695
    %v486 = vpow.pop %v485
    %v487 = vmul.f32 %v483, 1.442695
    %v488 = vpow.pop %v487
    %v489 = vmul.f32 %v484, 1.442695
    %v490 = vpow.pop %v489
    %v491 = vsel %vm471, %v486, 0.0
    %492 = vadd.xlane.f32.xlu0 %v491
    %v493 = vpop.xlane.xlu0 %492
    %v494 = vsel %vm471, %v488, 0.0
    %495 = vadd.xlane.f32.xlu0 %v494
    %v496 = vpop.xlane.xlu0 %495
    %v497 = vsel %vm478, %v490, 0.0
    %498 = vadd.xlane.f32.xlu0 %v497
    %v499 = vpop.xlane.xlu0 %498
    %v500 = vrcp.pop %v493
    %v501 = vrcp.pop %v496
    %v502 = vrcp.pop %v499
    %v503 = vmul.f32 %v486, %v500
    %v504 = vmul.f32 %v488, %v501
    %v505 = vmul.f32 %v490, %v502
    %506 = vrot.lane.b32.xlu0 %v356, 64
    %v507 = vpop.permute.xlu0 %506
    %508 = vrot.lane.b32.xlu0 %v361, 64
    %v509 = vpop.permute.xlu0 %508
    %510 = vrot.lane.b32.xlu0 %v366, 64
    %v511 = vpop.permute.xlu0 %510
    %v515 = vsel %vm471, %v503, 0
    %v518 = vsel %vm471, %v504, 0
    %v521 = vsel %vm471, %v505, 0
    %vm523 = vcmask 1041408
    %v524 = vsel %vm523, %v511, 0
    %526 = vmatprep.subr.mxu0 0.0
    %527 = vmatpush1.msra.mxu0 %v507
    %528 = vmatprep.subr.mxu0 0.0
    %529 = vmatpush1.msra.mxu0 %v509
    %530 = vmatprep.subr.mxu0 0.0
    %531 = vmatpush1.msra.mxu0 %v524
    %532 = vmatprep.subr.mxu0 0.0
    %533 = vmatpush1.msra.mxu0 0.0
    %534 = vmatprep.subr.mxu0 0.0
    %535 = vmatpush1.msra.mxu0 0.0
    %536 = vmatprep.subr.mxu0 0.0
    %537 = vmatpush1.msra.mxu0 0.0
    %538 = vmatprep.subr.mxu0 0.0
    %539 = vmatpush1.msra.mxu0 0.0
    %540 = vmatprep.subr.mxu0 0.0
    %541 = vmatpush1.msra.mxu0 0.0
    %542 = vmatprep.subr.mxu0 0.0
    %543 = vmatpush1.msra.mxu0 0.0
    %544 = vmatprep.subr.mxu0 0.0
    %545 = vmatpush1.msra.mxu0 0.0
    %546 = vmatprep.subr.mxu0 0.0
    %547 = vmatpush1.msra.mxu0 0.0
    %548 = vmatprep.subr.mxu0 0.0
    %549 = vmatpush1.msra.mxu0 0.0
    %550 = vmatprep.subr.mxu0 0.0
    %551 = vmatpush1.msra.mxu0 0.0
    %552 = vmatprep.subr.mxu0 0.0
    %553 = vmatpush1.msra.mxu0 0.0
    %554 = vmatprep.subr.mxu0 0.0
    %555 = vmatpush1.msra.mxu0 0.0
    %556 = vmatprep.subr.mxu0 0.0
    %557 = vmatpush1.msra.mxu0 0.0
    %558 = vmatprep.subr.mxu0 0.0
    %559 = vmatpush1.msra.mxu0 0.0
    %560 = vmatprep.subr.mxu0 0.0
    %561 = vmatpush1.msra.mxu0 0.0
    %562 = vmatprep.subr.mxu0 0.0
    %563 = vmatpush1.msra.mxu0 0.0
    %564 = vmatprep.subr.mxu0 0.0
    %565 = vmatpush1.msra.mxu0 0.0
    %566 = vmatprep.subr.mxu0 0.0
    %567 = vmatpush1.msra.mxu0 0.0
    %568 = vmatprep.subr.mxu0 0.0
    %569 = vmatpush1.msra.mxu0 0.0
    %570 = vmatprep.subr.mxu0 0.0
    %571 = vmatpush1.msra.mxu0 0.0
    %572 = vmatprep.subr.mxu0 0.0
    %573 = vmatpush1.msra.mxu0 0.0
    %574 = vmatprep.subr.mxu0 0.0
    %575 = vmatpush1.msra.mxu0 0.0
    %576 = vmatprep.subr.mxu0 0.0
    %577 = vmatpush1.msra.mxu0 0.0
    %578 = vmatprep.subr.mxu0 0.0
    %579 = vmatpush1.msra.mxu0 0.0
    %580 = vmatprep.subr.mxu0 0.0
    %581 = vmatpush1.msra.mxu0 0.0
    %582 = vmatprep.subr.mxu0 0.0
    %583 = vmatpush1.msra.mxu0 0.0
    %584 = vmatprep.subr.mxu0 0.0
    %585 = vmatpush1.msra.mxu0 0.0
    %586 = vmatprep.subr.mxu0 0.0
    %587 = vmatpush1.msra.mxu0 0.0
    %588 = vmatprep.subr.mxu0 0.0
    %589 = vmatpush1.msra.mxu0 0.0
    %590 = vmatprep.mubr.f32.mxu0 0.0
    %591 = vmatmul.mubr.f32.gmra.mrb[0].mxu0 %v515
    %v592 = vpop.f32.mrb[0].mxu0
    %v593 = vadd.f32 0.0, %v592
    %v594 = vpop.f32.mrb[0].mxu0
    %595 = vmatprep.mubr.f32.mxu0 0.0
    %596 = vmatmul.mubr.f32.gmra.mrb[0].mxu0 %v518
    %v597 = vpop.f32.mrb[0].mxu0
    %v598 = vadd.f32 0.0, %v597
    %v599 = vpop.f32.mrb[0].mxu0
    %600 = vmatprep.mubr.f32.mxu0 0.0
    %601 = vmatmul.mubr.f32.gmra.mrb[0].mxu0 %v521
    %v602 = vpop.f32.mrb[0].mxu0
    %v603 = vadd.f32 0.0, %v602
    %v604 = vpop.f32.mrb[0].mxu0
    %605 = vdwg.mxu0
    %606 = vrot.lane.b32.xlu0 %v356, 120
    %v607 = vpop.permute.xlu0 %606
    %608 = vrot.lane.b32.xlu0 %v361, 120
    %v609 = vpop.permute.xlu0 %608
    %610 = vrot.lane.b32.xlu0 %v366, 120
    %v611 = vpop.permute.xlu0 %610
    %612 = vrot.lane.b32.xlu0 %v356, 88
    %v613 = vpop.permute.xlu0 %612
    %614 = vrot.lane.b32.xlu0 %v361, 88
    %v615 = vpop.permute.xlu0 %614
    %616 = vrot.lane.b32.xlu0 %v366, 88
    %v617 = vpop.permute.xlu0 %616
    %v618 = vsel %vm378, %v607, 0
    %v620 = vsel %vm378, %v609, 0
    %v622 = vsel %vm378, %v611, 0
    %v624 = vsel %vm378, %v613, 0
    %v626 = vsel %vm378, %v615, 0
    %v628 = vsel %vm378, %v617, 0
    %630 = vmatprep.subr.mxu0 0.0
    %631 = vmatpush1.xpose.msra.mxu0 %v624
    %632 = vmatprep.subr.mxu0 0.0
    %633 = vmatpush1.xpose.msra.mxu0 %v626
    %634 = vmatprep.subr.mxu0 0.0
    %635 = vmatpush1.xpose.msra.mxu0 %v628
    %636 = vmatprep.subr.mxu0 0.0
    %637 = vmatpush1.xpose.msra.mxu0 0.0
    %638 = vmatprep.subr.mxu0 0.0
    %639 = vmatpush1.xpose.msra.mxu0 0.0
    %640 = vmatprep.subr.mxu0 0.0
    %641 = vmatpush1.xpose.msra.mxu0 0.0
    %642 = vmatprep.subr.mxu0 0.0
    %643 = vmatpush1.xpose.msra.mxu0 0.0
    %644 = vmatprep.subr.mxu0 0.0
    %645 = vmatpush1.xpose.msra.mxu0 0.0
    %646 = vmatprep.subr.mxu0 0.0
    %647 = vmatpush1.xpose.msra.mxu0 0.0
    %648 = vmatprep.subr.mxu0 0.0
    %649 = vmatpush1.xpose.msra.mxu0 0.0
    %650 = vmatprep.subr.mxu0 0.0
    %651 = vmatpush1.xpose.msra.mxu0 0.0
    %652 = vmatprep.subr.mxu0 0.0
    %653 = vmatpush1.xpose.msra.mxu0 0.0
    %654 = vmatprep.subr.mxu0 0.0
    %655 = vmatpush1.xpose.msra.mxu0 0.0
    %656 = vmatprep.subr.mxu0 0.0
    %657 = vmatpush1.xpose.msra.mxu0 0.0
    %658 = vmatprep.subr.mxu0 0.0
    %659 = vmatpush1.xpose.msra.mxu0 0.0
    %660 = vmatprep.subr.mxu0 0.0
    %661 = vmatpush1.xpose.msra.mxu0 0.0
    %662 = vmatprep.subr.mxu0 0.0
    %663 = vmatpush1.xpose.msra.mxu0 0.0
    %664 = vmatprep.subr.mxu0 0.0
    %665 = vmatpush1.xpose.msra.mxu0 0.0
    %666 = vmatprep.subr.mxu0 0.0
    %667 = vmatpush1.xpose.msra.mxu0 0.0
    %668 = vmatprep.subr.mxu0 0.0
    %669 = vmatpush1.xpose.msra.mxu0 0.0
    %670 = vmatprep.subr.mxu0 0.0
    %671 = vmatpush1.xpose.msra.mxu0 0.0
    %672 = vmatprep.subr.mxu0 0.0
    %673 = vmatpush1.xpose.msra.mxu0 0.0
    %674 = vmatprep.subr.mxu0 0.0
    %675 = vmatpush1.xpose.msra.mxu0 0.0
    %676 = vmatprep.subr.mxu0 0.0
    %677 = vmatpush1.xpose.msra.mxu0 0.0
    %678 = vmatprep.subr.mxu0 0.0
    %679 = vmatpush1.xpose.msra.mxu0 0.0
    %680 = vmatprep.subr.mxu0 0.0
    %681 = vmatpush1.xpose.msra.mxu0 0.0
    %682 = vmatprep.subr.mxu0 0.0
    %683 = vmatpush1.xpose.msra.mxu0 0.0
    %684 = vmatprep.subr.mxu0 0.0
    %685 = vmatpush1.xpose.msra.mxu0 0.0
    %686 = vmatprep.subr.mxu0 0.0
    %687 = vmatpush1.xpose.msra.mxu0 0.0
    %688 = vmatprep.subr.mxu0 0.0
    %689 = vmatpush1.xpose.msra.mxu0 0.0
    %690 = vmatprep.subr.mxu0 0.0
    %691 = vmatpush1.xpose.msra.mxu0 0.0
    %692 = vmatprep.subr.mxu0 0.0
    %693 = vmatpush1.xpose.msra.mxu0 0.0
    %694 = vmatprep.mubr.f32.mxu0 0.0
    %695 = vmatmul.mubr.f32.gmra.mrb[0].mxu0 %v618
    %v696 = vpop.f32.mrb[0].mxu0
    %v697 = vadd.f32 %v79, %v696
    %v698 = vpop.f32.mrb[0].mxu0
    %699 = vmatprep.mubr.f32.mxu0 0.0
    %700 = vmatmul.mubr.f32.gmra.mrb[0].mxu0 %v620
    %v701 = vpop.f32.mrb[0].mxu0
    %v702 = vadd.f32 %v80, %v701
    %v703 = vpop.f32.mrb[0].mxu0
    %704 = vmatprep.mubr.f32.mxu0 0.0
    %705 = vmatmul.mubr.f32.gmra.mrb[0].mxu0 %v622
    %v706 = vpop.f32.mrb[0].mxu0
    %v707 = vadd.f32 %v81, %v706
    %v708 = vpop.f32.mrb[0].mxu0
    %709 = vdwg.mxu0
    %v710 = vsel %vm471, %v697, -inf
    %711 = vmax.xlane.f32.xlu0 %v710
    %v712 = vpop.xlane.xlu0 %711
    %v713 = vsel %vm471, %v702, -inf
    %714 = vmax.xlane.f32.xlu0 %v713
    %v715 = vpop.xlane.xlu0 %714
    %v716 = vsel %vm478, %v707, -inf
    %717 = vmax.xlane.f32.xlu0 %v716
    %v718 = vpop.xlane.xlu0 %717
    %v719 = vsub.f32 %v697, %v712
    %v720 = vsub.f32 %v702, %v715
    %v721 = vsub.f32 %v707, %v718
    %v722 = vmul.f32 %v719, 1.442695
    %v723 = vpow.pop %v722
    %v724 = vmul.f32 %v720, 1.442695
    %v725 = vpow.pop %v724
    %v726 = vmul.f32 %v721, 1.442695
    %v727 = vpow.pop %v726
    %v728 = vsel %vm471, %v723, 0.0
    %729 = vadd.xlane.f32.xlu0 %v728
    %v730 = vpop.xlane.xlu0 %729
    %v731 = vsel %vm471, %v725, 0.0
    %732 = vadd.xlane.f32.xlu0 %v731
    %v733 = vpop.xlane.xlu0 %732
    %v734 = vsel %vm478, %v727, 0.0
    %735 = vadd.xlane.f32.xlu0 %v734
    %v736 = vpop.xlane.xlu0 %735
    %v737 = vrcp.pop %v730
    %v738 = vrcp.pop %v733
    %v739 = vrcp.pop %v736
    %v740 = vmul.f32 %v723, %v737
    %v741 = vmul.f32 %v725, %v738
    %v742 = vmul.f32 %v727, %v739
    %743 = vrot.lane.b32.xlu0 %v356, 56
    %v744 = vpop.permute.xlu0 %743
    %745 = vrot.lane.b32.xlu0 %v361, 56
    %v746 = vpop.permute.xlu0 %745
    %747 = vrot.lane.b32.xlu0 %v366, 56
    %v748 = vpop.permute.xlu0 %747
    %v752 = vsel %vm471, %v740, 0
    %v755 = vsel %vm471, %v741, 0
    %v758 = vsel %vm471, %v742, 0
    %v760 = vsel %vm523, %v748, 0
    %762 = vmatprep.subr.mxu0 0.0
    %763 = vmatpush1.msra.mxu0 %v744
    %764 = vmatprep.subr.mxu0 0.0
    %765 = vmatpush1.msra.mxu0 %v746
    %766 = vmatprep.subr.mxu0 0.0
    %767 = vmatpush1.msra.mxu0 %v760
    %768 = vmatprep.subr.mxu0 0.0
    %769 = vmatpush1.msra.mxu0 0.0
    %770 = vmatprep.subr.mxu0 0.0
    %771 = vmatpush1.msra.mxu0 0.0
    %772 = vmatprep.subr.mxu0 0.0
    %773 = vmatpush1.msra.mxu0 0.0
    %774 = vmatprep.subr.mxu0 0.0
    %775 = vmatpush1.msra.mxu0 0.0
    %776 = vmatprep.subr.mxu0 0.0
    %777 = vmatpush1.msra.mxu0 0.0
    %778 = vmatprep.subr.mxu0 0.0
    %779 = vmatpush1.msra.mxu0 0.0
    %780 = vmatprep.subr.mxu0 0.0
    %781 = vmatpush1.msra.mxu0 0.0
    %782 = vmatprep.subr.mxu0 0.0
    %783 = vmatpush1.msra.mxu0 0.0
    %784 = vmatprep.subr.mxu0 0.0
    %785 = vmatpush1.msra.mxu0 0.0
    %786 = vmatprep.subr.mxu0 0.0
    %787 = vmatpush1.msra.mxu0 0.0
    %788 = vmatprep.subr.mxu0 0.0
    %789 = vmatpush1.msra.mxu0 0.0
    %790 = vmatprep.subr.mxu0 0.0
    %791 = vmatpush1.msra.mxu0 0.0
    %792 = vmatprep.subr.mxu0 0.0
    %793 = vmatpush1.msra.mxu0 0.0
    %794 = vmatprep.subr.mxu0 0.0
    %795 = vmatpush1.msra.mxu0 0.0
    %796 = vmatprep.subr.mxu0 0.0
    %797 = vmatpush1.msra.mxu0 0.0
    %798 = vmatprep.subr.mxu0 0.0
    %799 = vmatpush1.msra.mxu0 0.0
    %800 = vmatprep.subr.mxu0 0.0
    %801 = vmatpush1.msra.mxu0 0.0
    %802 = vmatprep.subr.mxu0 0.0
    %803 = vmatpush1.msra.mxu0 0.0
    %804 = vmatprep.subr.mxu0 0.0
    %805 = vmatpush1.msra.mxu0 0.0
    %806 = vmatprep.subr.mxu0 0.0
    %807 = vmatpush1.msra.mxu0 0.0
    %808 = vmatprep.subr.mxu0 0.0
    %809 = vmatpush1.msra.mxu0 0.0
    %810 = vmatprep.subr.mxu0 0.0
    %811 = vmatpush1.msra.mxu0 0.0
    %812 = vmatprep.subr.mxu0 0.0
    %813 = vmatpush1.msra.mxu0 0.0
    %814 = vmatprep.subr.mxu0 0.0
    %815 = vmatpush1.msra.mxu0 0.0
    %816 = vmatprep.subr.mxu0 0.0
    %817 = vmatpush1.msra.mxu0 0.0
    %818 = vmatprep.subr.mxu0 0.0
    %819 = vmatpush1.msra.mxu0 0.0
    %820 = vmatprep.subr.mxu0 0.0
    %821 = vmatpush1.msra.mxu0 0.0
    %822 = vmatprep.subr.mxu0 0.0
    %823 = vmatpush1.msra.mxu0 0.0
    %824 = vmatprep.subr.mxu0 0.0
    %825 = vmatpush1.msra.mxu0 0.0
    %826 = vmatprep.mubr.f32.mxu0 0.0
    %827 = vmatmul.mubr.f32.gmra.mrb[0].mxu0 %v752
    %v828 = vpop.f32.mrb[0].mxu0
    %v829 = vadd.f32 0.0, %v828
    %v830 = vpop.f32.mrb[0].mxu0
    %831 = vmatprep.mubr.f32.mxu0 0.0
    %832 = vmatmul.mubr.f32.gmra.mrb[0].mxu0 %v755
    %v833 = vpop.f32.mrb[0].mxu0
    %v834 = vadd.f32 0.0, %v833
    %v835 = vpop.f32.mrb[0].mxu0
    %836 = vmatprep.mubr.f32.mxu0 0.0
    %837 = vmatmul.mubr.f32.gmra.mrb[0].mxu0 %v758
    %v838 = vpop.f32.mrb[0].mxu0
    %v839 = vadd.f32 0.0, %v838
    %v840 = vpop.f32.mrb[0].mxu0
    %841 = vdwg.mxu0
    %842 = vrot.lane.b32.xlu0 %v356, 112
    %v843 = vpop.permute.xlu0 %842
    %844 = vrot.lane.b32.xlu0 %v361, 112
    %v845 = vpop.permute.xlu0 %844
    %846 = vrot.lane.b32.xlu0 %v366, 112
    %v847 = vpop.permute.xlu0 %846
    %848 = vrot.lane.b32.xlu0 %v356, 80
    %v849 = vpop.permute.xlu0 %848
    %850 = vrot.lane.b32.xlu0 %v361, 80
    %v851 = vpop.permute.xlu0 %850
    %852 = vrot.lane.b32.xlu0 %v366, 80
    %v853 = vpop.permute.xlu0 %852
    %v854 = vsel %vm378, %v843, 0
    %v856 = vsel %vm378, %v845, 0
    %v858 = vsel %vm378, %v847, 0
    %v860 = vsel %vm378, %v849, 0
    %v862 = vsel %vm378, %v851, 0
    %v864 = vsel %vm378, %v853, 0
    %866 = vmatprep.subr.mxu0 0.0
    %867 = vmatpush1.xpose.msra.mxu0 %v860
    %868 = vmatprep.subr.mxu0 0.0
    %869 = vmatpush1.xpose.msra.mxu0 %v862
    %870 = vmatprep.subr.mxu0 0.0
    %871 = vmatpush1.xpose.msra.mxu0 %v864
    %872 = vmatprep.subr.mxu0 0.0
    %873 = vmatpush1.xpose.msra.mxu0 0.0
    %874 = vmatprep.subr.mxu0 0.0
    %875 = vmatpush1.xpose.msra.mxu0 0.0
    %876 = vmatprep.subr.mxu0 0.0
    %877 = vmatpush1.xpose.msra.mxu0 0.0
    %878 = vmatprep.subr.mxu0 0.0
    %879 = vmatpush1.xpose.msra.mxu0 0.0
    %880 = vmatprep.subr.mxu0 0.0
    %881 = vmatpush1.xpose.msra.mxu0 0.0
    %882 = vmatprep.subr.mxu0 0.0
    %883 = vmatpush1.xpose.msra.mxu0 0.0
    %884 = vmatprep.subr.mxu0 0.0
    %885 = vmatpush1.xpose.msra.mxu0 0.0
    %886 = vmatprep.subr.mxu0 0.0
    %887 = vmatpush1.xpose.msra.mxu0 0.0
    %888 = vmatprep.subr.mxu0 0.0
    %889 = vmatpush1.xpose.msra.mxu0 0.0
    %890 = vmatprep.subr.mxu0 0.0
    %891 = vmatpush1.xpose.msra.mxu0 0.0
    %892 = vmatprep.subr.mxu0 0.0
    %893 = vmatpush1.xpose.msra.mxu0 0.0
    %894 = vmatprep.subr.mxu0 0.0
    %895 = vmatpush1.xpose.msra.mxu0 0.0
    %896 = vmatprep.subr.mxu0 0.0
    %897 = vmatpush1.xpose.msra.mxu0 0.0
    %898 = vmatprep.subr.mxu0 0.0
    %899 = vmatpush1.xpose.msra.mxu0 0.0
    %900 = vmatprep.subr.mxu0 0.0
    %901 = vmatpush1.xpose.msra.mxu0 0.0
    %902 = vmatprep.subr.mxu0 0.0
    %903 = vmatpush1.xpose.msra.mxu0 0.0
    %904 = vmatprep.subr.mxu0 0.0
    %905 = vmatpush1.xpose.msra.mxu0 0.0
    %906 = vmatprep.subr.mxu0 0.0
    %907 = vmatpush1.xpose.msra.mxu0 0.0
    %908 = vmatprep.subr.mxu0 0.0
    %909 = vmatpush1.xpose.msra.mxu0 0.0
    %910 = vmatprep.subr.mxu0 0.0
    %911 = vmatpush1.xpose.msra.mxu0 0.0
    %912 = vmatprep.subr.mxu0 0.0
    %913 = vmatpush1.xpose.msra.mxu0 0.0
    %914 = vmatprep.subr.mxu0 0.0
    %915 = vmatpush1.xpose.msra.mxu0 0.0
    %916 = vmatprep.subr.mxu0 0.0
    %917 = vmatpush1.xpose.msra.mxu0 0.0
    %918 = vmatprep.subr.mxu0 0.0
    %919 = vmatpush1.xpose.msra.mxu0 0.0
    %920 = vmatprep.subr.mxu0 0.0
    %921 = vmatpush1.xpose.msra.mxu0 0.0
    %922 = vmatprep.subr.mxu0 0.0
    %923 = vmatpush1.xpose.msra.mxu0 0.0
    %924 = vmatprep.subr.mxu0 0.0
    %925 = vmatpush1.xpose.msra.mxu0 0.0
    %926 = vmatprep.subr.mxu0 0.0
    %927 = vmatpush1.xpose.msra.mxu0 0.0
    %928 = vmatprep.subr.mxu0 0.0
    %929 = vmatpush1.xpose.msra.mxu0 0.0
    %930 = vmatprep.mubr.f32.mxu0 0.0
    %931 = vmatmul.mubr.f32.gmra.mrb[0].mxu0 %v854
    %v932 = vpop.f32.mrb[0].mxu0
    %v933 = vadd.f32 %v79, %v932
    %v934 = vpop.f32.mrb[0].mxu0
    %935 = vmatprep.mubr.f32.mxu0 0.0
    %936 = vmatmul.mubr.f32.gmra.mrb[0].mxu0 %v856
    %v937 = vpop.f32.mrb[0].mxu0
    %v938 = vadd.f32 %v80, %v937
    %v939 = vpop.f32.mrb[0].mxu0
    %940 = vmatprep.mubr.f32.mxu0 0.0
    %941 = vmatmul.mubr.f32.gmra.mrb[0].mxu0 %v858
    %v942 = vpop.f32.mrb[0].mxu0
    %v943 = vadd.f32 %v81, %v942
    %v944 = vpop.f32.mrb[0].mxu0
    %945 = vdwg.mxu0
    %v946 = vsel %vm471, %v933, -inf
    %947 = vmax.xlane.f32.xlu0 %v946
    %v948 = vpop.xlane.xlu0 %947
    %v949 = vsel %vm471, %v938, -inf
    %950 = vmax.xlane.f32.xlu0 %v949
    %v951 = vpop.xlane.xlu0 %950
    %v952 = vsel %vm478, %v943, -inf
    %953 = vmax.xlane.f32.xlu0 %v952
    %v954 = vpop.xlane.xlu0 %953
    %v955 = vsub.f32 %v933, %v948
    %v956 = vsub.f32 %v938, %v951
    %v957 = vsub.f32 %v943, %v954
    %v958 = vmul.f32 %v955, 1.442695
    %v959 = vpow.pop %v958
    %v960 = vmul.f32 %v956, 1.442695
    %v961 = vpow.pop %v960
    %v962 = vmul.f32 %v957, 1.442695
    %v963 = vpow.pop %v962
    %v964 = vsel %vm471, %v959, 0.0
    %965 = vadd.xlane.f32.xlu0 %v964
    %v966 = vpop.xlane.xlu0 %965
    %v967 = vsel %vm471, %v961, 0.0
    %968 = vadd.xlane.f32.xlu0 %v967
    %v969 = vpop.xlane.xlu0 %968
    %v970 = vsel %vm478, %v963, 0.0
    %971 = vadd.xlane.f32.xlu0 %v970
    %v972 = vpop.xlane.xlu0 %971
    %v973 = vrcp.pop %v966
    %v974 = vrcp.pop %v969
    %v975 = vrcp.pop %v972
    %v976 = vmul.f32 %v959, %v973
    %v977 = vmul.f32 %v961, %v974
    %v978 = vmul.f32 %v963, %v975
    %979 = vrot.lane.b32.xlu0 %v356, 48
    %v980 = vpop.permute.xlu0 %979
    %981 = vrot.lane.b32.xlu0 %v361, 48
    %v982 = vpop.permute.xlu0 %981
    %983 = vrot.lane.b32.xlu0 %v366, 48
    %v984 = vpop.permute.xlu0 %983
    %v988 = vsel %vm471, %v976, 0
    %v991 = vsel %vm471, %v977, 0
    %v994 = vsel %vm471, %v978, 0
    %v996 = vsel %vm523, %v984, 0
    %998 = vmatprep.subr.mxu0 0.0
    %999 = vmatpush1.msra.mxu0 %v980
    %1000 = vmatprep.subr.mxu0 0.0
    %1001 = vmatpush1.msra.mxu0 %v982
    %1002 = vmatprep.subr.mxu0 0.0
    %1003 = vmatpush1.msra.mxu0 %v996
    %1004 = vmatprep.subr.mxu0 0.0
    %1005 = vmatpush1.msra.mxu0 0.0
    %1006 = vmatprep.subr.mxu0 0.0
    %1007 = vmatpush1.msra.mxu0 0.0
    %1008 = vmatprep.subr.mxu0 0.0
    %1009 = vmatpush1.msra.mxu0 0.0
    %1010 = vmatprep.subr.mxu0 0.0
    %1011 = vmatpush1.msra.mxu0 0.0
    %1012 = vmatprep.subr.mxu0 0.0
    %1013 = vmatpush1.msra.mxu0 0.0
    %1014 = vmatprep.subr.mxu0 0.0
    %1015 = vmatpush1.msra.mxu0 0.0
    %1016 = vmatprep.subr.mxu0 0.0
    %1017 = vmatpush1.msra.mxu0 0.0
    %1018 = vmatprep.subr.mxu0 0.0
    %1019 = vmatpush1.msra.mxu0 0.0
    %1020 = vmatprep.subr.mxu0 0.0
    %1021 = vmatpush1.msra.mxu0 0.0
    %1022 = vmatprep.subr.mxu0 0.0
    %1023 = vmatpush1.msra.mxu0 0.0
    %1024 = vmatprep.subr.mxu0 0.0
    %1025 = vmatpush1.msra.mxu0 0.0
    %1026 = vmatprep.subr.mxu0 0.0
    %1027 = vmatpush1.msra.mxu0 0.0
    %1028 = vmatprep.subr.mxu0 0.0
    %1029 = vmatpush1.msra.mxu0 0.0
    %1030 = vmatprep.subr.mxu0 0.0
    %1031 = vmatpush1.msra.mxu0 0.0
    %1032 = vmatprep.subr.mxu0 0.0
    %1033 = vmatpush1.msra.mxu0 0.0
    %1034 = vmatprep.subr.mxu0 0.0
    %1035 = vmatpush1.msra.mxu0 0.0
    %1036 = vmatprep.subr.mxu0 0.0
    %1037 = vmatpush1.msra.mxu0 0.0
    %1038 = vmatprep.subr.mxu0 0.0
    %1039 = vmatpush1.msra.mxu0 0.0
    %1040 = vmatprep.subr.mxu0 0.0
    %1041 = vmatpush1.msra.mxu0 0.0
    %1042 = vmatprep.subr.mxu0 0.0
    %1043 = vmatpush1.msra.mxu0 0.0
    %1044 = vmatprep.subr.mxu0 0.0
    %1045 = vmatpush1.msra.mxu0 0.0
    %1046 = vmatprep.subr.mxu0 0.0
    %1047 = vmatpush1.msra.mxu0 0.0
    %1048 = vmatprep.subr.mxu0 0.0
    %1049 = vmatpush1.msra.mxu0 0.0
    %1050 = vmatprep.subr.mxu0 0.0
    %1051 = vmatpush1.msra.mxu0 0.0
    %1052 = vmatprep.subr.mxu0 0.0
    %1053 = vmatpush1.msra.mxu0 0.0
    %1054 = vmatprep.subr.mxu0 0.0
    %1055 = vmatpush1.msra.mxu0 0.0
    %1056 = vmatprep.subr.mxu0 0.0
    %1057 = vmatpush1.msra.mxu0 0.0
    %1058 = vmatprep.subr.mxu0 0.0
    %1059 = vmatpush1.msra.mxu0 0.0
    %1060 = vmatprep.subr.mxu0 0.0
    %1061 = vmatpush1.msra.mxu0 0.0
    %1062 = vmatprep.mubr.f32.mxu0 0.0
    %1063 = vmatmul.mubr.f32.gmra.mrb[0].mxu0 %v988
    %v1064 = vpop.f32.mrb[0].mxu0
    %v1065 = vadd.f32 0.0, %v1064
    %v1066 = vpop.f32.mrb[0].mxu0
    %1067 = vmatprep.mubr.f32.mxu0 0.0
    %1068 = vmatmul.mubr.f32.gmra.mrb[0].mxu0 %v991
    %v1069 = vpop.f32.mrb[0].mxu0
    %v1070 = vadd.f32 0.0, %v1069
    %v1071 = vpop.f32.mrb[0].mxu0
    %1072 = vmatprep.mubr.f32.mxu0 0.0
    %1073 = vmatmul.mubr.f32.gmra.mrb[0].mxu0 %v994
    %v1074 = vpop.f32.mrb[0].mxu0
    %v1075 = vadd.f32 0.0, %v1074
    %v1076 = vpop.f32.mrb[0].mxu0
    %1077 = vdwg.mxu0
    %1078 = vrot.lane.b32.xlu0 %v356, 104
    %v1079 = vpop.permute.xlu0 %1078
    %1080 = vrot.lane.b32.xlu0 %v361, 104
    %v1081 = vpop.permute.xlu0 %1080
    %1082 = vrot.lane.b32.xlu0 %v366, 104
    %v1083 = vpop.permute.xlu0 %1082
    %1084 = vrot.lane.b32.xlu0 %v356, 72
    %v1085 = vpop.permute.xlu0 %1084
    %1086 = vrot.lane.b32.xlu0 %v361, 72
    %v1087 = vpop.permute.xlu0 %1086
    %1088 = vrot.lane.b32.xlu0 %v366, 72
    %v1089 = vpop.permute.xlu0 %1088
    %v1090 = vsel %vm378, %v1079, 0
    %v1092 = vsel %vm378, %v1081, 0
    %v1094 = vsel %vm378, %v1083, 0
    %v1096 = vsel %vm378, %v1085, 0
    %v1098 = vsel %vm378, %v1087, 0
    %v1100 = vsel %vm378, %v1089, 0
    %1102 = vmatprep.subr.mxu0 0.0
    %1103 = vmatpush1.xpose.msra.mxu0 %v1096
    %1104 = vmatprep.subr.mxu0 0.0
    %1105 = vmatpush1.xpose.msra.mxu0 %v1098
    %1106 = vmatprep.subr.mxu0 0.0
    %1107 = vmatpush1.xpose.msra.mxu0 %v1100
    %1108 = vmatprep.subr.mxu0 0.0
    %1109 = vmatpush1.xpose.msra.mxu0 0.0
    %1110 = vmatprep.subr.mxu0 0.0
    %1111 = vmatpush1.xpose.msra.mxu0 0.0
    %1112 = vmatprep.subr.mxu0 0.0
    %1113 = vmatpush1.xpose.msra.mxu0 0.0
    %1114 = vmatprep.subr.mxu0 0.0
    %1115 = vmatpush1.xpose.msra.mxu0 0.0
    %1116 = vmatprep.subr.mxu0 0.0
    %1117 = vmatpush1.xpose.msra.mxu0 0.0
    %1118 = vmatprep.subr.mxu0 0.0
    %1119 = vmatpush1.xpose.msra.mxu0 0.0
    %1120 = vmatprep.subr.mxu0 0.0
    %1121 = vmatpush1.xpose.msra.mxu0 0.0
    %1122 = vmatprep.subr.mxu0 0.0
    %1123 = vmatpush1.xpose.msra.mxu0 0.0
    %1124 = vmatprep.subr.mxu0 0.0
    %1125 = vmatpush1.xpose.msra.mxu0 0.0
    %1126 = vmatprep.subr.mxu0 0.0
    %1127 = vmatpush1.xpose.msra.mxu0 0.0
    %1128 = vmatprep.subr.mxu0 0.0
    %1129 = vmatpush1.xpose.msra.mxu0 0.0
    %1130 = vmatprep.subr.mxu0 0.0
    %1131 = vmatpush1.xpose.msra.mxu0 0.0
    %1132 = vmatprep.subr.mxu0 0.0
    %1133 = vmatpush1.xpose.msra.mxu0 0.0
    %1134 = vmatprep.subr.mxu0 0.0
    %1135 = vmatpush1.xpose.msra.mxu0 0.0
    %1136 = vmatprep.subr.mxu0 0.0
    %1137 = vmatpush1.xpose.msra.mxu0 0.0
    %1138 = vmatprep.subr.mxu0 0.0
    %1139 = vmatpush1.xpose.msra.mxu0 0.0
    %1140 = vmatprep.subr.mxu0 0.0
    %1141 = vmatpush1.xpose.msra.mxu0 0.0
    %1142 = vmatprep.subr.mxu0 0.0
    %1143 = vmatpush1.xpose.msra.mxu0 0.0
    %1144 = vmatprep.subr.mxu0 0.0
    %1145 = vmatpush1.xpose.msra.mxu0 0.0
    %1146 = vmatprep.subr.mxu0 0.0
    %1147 = vmatpush1.xpose.msra.mxu0 0.0
    %1148 = vmatprep.subr.mxu0 0.0
    %1149 = vmatpush1.xpose.msra.mxu0 0.0
    %1150 = vmatprep.subr.mxu0 0.0
    %1151 = vmatpush1.xpose.msra.mxu0 0.0
    %1152 = vmatprep.subr.mxu0 0.0
    %1153 = vmatpush1.xpose.msra.mxu0 0.0
    %1154 = vmatprep.subr.mxu0 0.0
    %1155 = vmatpush1.xpose.msra.mxu0 0.0
    %1156 = vmatprep.subr.mxu0 0.0
    %1157 = vmatpush1.xpose.msra.mxu0 0.0
    %1158 = vmatprep.subr.mxu0 0.0
    %1159 = vmatpush1.xpose.msra.mxu0 0.0
    %1160 = vmatprep.subr.mxu0 0.0
    %1161 = vmatpush1.xpose.msra.mxu0 0.0
    %1162 = vmatprep.subr.mxu0 0.0
    %1163 = vmatpush1.xpose.msra.mxu0 0.0
    %1164 = vmatprep.subr.mxu0 0.0
    %1165 = vmatpush1.xpose.msra.mxu0 0.0
    %1166 = vmatprep.mubr.f32.mxu0 0.0
    %1167 = vmatmul.mubr.f32.gmra.mrb[0].mxu0 %v1090
    %v1168 = vpop.f32.mrb[0].mxu0
    %v1169 = vadd.f32 %v79, %v1168
    %v1170 = vpop.f32.mrb[0].mxu0
    %1171 = vmatprep.mubr.f32.mxu0 0.0
    %1172 = vmatmul.mubr.f32.gmra.mrb[0].mxu0 %v1092
    %v1173 = vpop.f32.mrb[0].mxu0
    %v1174 = vadd.f32 %v80, %v1173
    %v1175 = vpop.f32.mrb[0].mxu0
    %1176 = vmatprep.mubr.f32.mxu0 0.0
    %1177 = vmatmul.mubr.f32.gmra.mrb[0].mxu0 %v1094
    %v1178 = vpop.f32.mrb[0].mxu0
    %v1179 = vadd.f32 %v81, %v1178
    %v1180 = vpop.f32.mrb[0].mxu0
    %1181 = vdwg.mxu0
    %v1182 = vsel %vm471, %v1169, -inf
    %1183 = vmax.xlane.f32.xlu0 %v1182
    %v1184 = vpop.xlane.xlu0 %1183
    %v1185 = vsel %vm471, %v1174, -inf
    %1186 = vmax.xlane.f32.xlu0 %v1185
    %v1187 = vpop.xlane.xlu0 %1186
    %v1188 = vsel %vm478, %v1179, -inf
    %1189 = vmax.xlane.f32.xlu0 %v1188
    %v1190 = vpop.xlane.xlu0 %1189
    %v1191 = vsub.f32 %v1169, %v1184
    %v1192 = vsub.f32 %v1174, %v1187
    %v1193 = vsub.f32 %v1179, %v1190
    %v1194 = vmul.f32 %v1191, 1.442695
    %v1195 = vpow.pop %v1194
    %v1196 = vmul.f32 %v1192, 1.442695
    %v1197 = vpow.pop %v1196
    %v1198 = vmul.f32 %v1193, 1.442695
    %v1199 = vpow.pop %v1198
    %v1200 = vsel %vm471, %v1195, 0.0
    %1201 = vadd.xlane.f32.xlu0 %v1200
    %v1202 = vpop.xlane.xlu0 %1201
    %v1203 = vsel %vm471, %v1197, 0.0
    %1204 = vadd.xlane.f32.xlu0 %v1203
    %v1205 = vpop.xlane.xlu0 %1204
    %v1206 = vsel %vm478, %v1199, 0.0
    %1207 = vadd.xlane.f32.xlu0 %v1206
    %v1208 = vpop.xlane.xlu0 %1207
    %v1209 = vrcp.pop %v1202
    %v1210 = vrcp.pop %v1205
    %v1211 = vrcp.pop %v1208
    %v1212 = vmul.f32 %v1195, %v1209
    %v1213 = vmul.f32 %v1197, %v1210
    %v1214 = vmul.f32 %v1199, %v1211
    %1215 = vrot.lane.b32.xlu0 %v356, 40
    %v1216 = vpop.permute.xlu0 %1215
    %1217 = vrot.lane.b32.xlu0 %v361, 40
    %v1218 = vpop.permute.xlu0 %1217
    %1219 = vrot.lane.b32.xlu0 %v366, 40
    %v1220 = vpop.permute.xlu0 %1219
    %v1224 = vsel %vm471, %v1212, 0
    %v1227 = vsel %vm471, %v1213, 0
    %v1230 = vsel %vm471, %v1214, 0
    %v1232 = vsel %vm523, %v1220, 0
    %1234 = vmatprep.subr.mxu0 0.0
    %1235 = vmatpush1.msra.mxu0 %v1216
    %1236 = vmatprep.subr.mxu0 0.0
    %1237 = vmatpush1.msra.mxu0 %v1218
    %1238 = vmatprep.subr.mxu0 0.0
    %1239 = vmatpush1.msra.mxu0 %v1232
    %1240 = vmatprep.subr.mxu0 0.0
    %1241 = vmatpush1.msra.mxu0 0.0
    %1242 = vmatprep.subr.mxu0 0.0
    %1243 = vmatpush1.msra.mxu0 0.0
    %1244 = vmatprep.subr.mxu0 0.0
    %1245 = vmatpush1.msra.mxu0 0.0
    %1246 = vmatprep.subr.mxu0 0.0
    %1247 = vmatpush1.msra.mxu0 0.0
    %1248 = vmatprep.subr.mxu0 0.0
    %1249 = vmatpush1.msra.mxu0 0.0
    %1250 = vmatprep.subr.mxu0 0.0
    %1251 = vmatpush1.msra.mxu0 0.0
    %1252 = vmatprep.subr.mxu0 0.0
    %1253 = vmatpush1.msra.mxu0 0.0
    %1254 = vmatprep.subr.mxu0 0.0
    %1255 = vmatpush1.msra.mxu0 0.0
    %1256 = vmatprep.subr.mxu0 0.0
    %1257 = vmatpush1.msra.mxu0 0.0
    %1258 = vmatprep.subr.mxu0 0.0
    %1259 = vmatpush1.msra.mxu0 0.0
    %1260 = vmatprep.subr.mxu0 0.0
    %1261 = vmatpush1.msra.mxu0 0.0
    %1262 = vmatprep.subr.mxu0 0.0
    %1263 = vmatpush1.msra.mxu0 0.0
    %1264 = vmatprep.subr.mxu0 0.0
    %1265 = vmatpush1.msra.mxu0 0.0
    %1266 = vmatprep.subr.mxu0 0.0
    %1267 = vmatpush1.msra.mxu0 0.0
    %1268 = vmatprep.subr.mxu0 0.0
    %1269 = vmatpush1.msra.mxu0 0.0
    %1270 = vmatprep.subr.mxu0 0.0
    %1271 = vmatpush1.msra.mxu0 0.0
    %1272 = vmatprep.subr.mxu0 0.0
    %1273 = vmatpush1.msra.mxu0 0.0
    %1274 = vmatprep.subr.mxu0 0.0
    %1275 = vmatpush1.msra.mxu0 0.0
    %1276 = vmatprep.subr.mxu0 0.0
    %1277 = vmatpush1.msra.mxu0 0.0
    %1278 = vmatprep.subr.mxu0 0.0
    %1279 = vmatpush1.msra.mxu0 0.0
    %1280 = vmatprep.subr.mxu0 0.0
    %1281 = vmatpush1.msra.mxu0 0.0
    %1282 = vmatprep.subr.mxu0 0.0
    %1283 = vmatpush1.msra.mxu0 0.0
    %1284 = vmatprep.subr.mxu0 0.0
    %1285 = vmatpush1.msra.mxu0 0.0
    %1286 = vmatprep.subr.mxu0 0.0
    %1287 = vmatpush1.msra.mxu0 0.0
    %1288 = vmatprep.subr.mxu0 0.0
    %1289 = vmatpush1.msra.mxu0 0.0
    %1290 = vmatprep.subr.mxu0 0.0
    %1291 = vmatpush1.msra.mxu0 0.0
    %1292 = vmatprep.subr.mxu0 0.0
    %1293 = vmatpush1.msra.mxu0 0.0
    %1294 = vmatprep.subr.mxu0 0.0
    %1295 = vmatpush1.msra.mxu0 0.0
    %1296 = vmatprep.subr.mxu0 0.0
    %1297 = vmatpush1.msra.mxu0 0.0
    %1298 = vmatprep.mubr.f32.mxu0 0.0
    %1299 = vmatmul.mubr.f32.gmra.mrb[0].mxu0 %v1224
    %v1300 = vpop.f32.mrb[0].mxu0
    %v1301 = vadd.f32 0.0, %v1300
    %v1302 = vpop.f32.mrb[0].mxu0
    %1303 = vmatprep.mubr.f32.mxu0 0.0
    %1304 = vmatmul.mubr.f32.gmra.mrb[0].mxu0 %v1227
    %v1305 = vpop.f32.mrb[0].mxu0
    %v1306 = vadd.f32 0.0, %v1305
    %v1307 = vpop.f32.mrb[0].mxu0
    %1308 = vmatprep.mubr.f32.mxu0 0.0
    %1309 = vmatmul.mubr.f32.gmra.mrb[0].mxu0 %v1230
    %v1310 = vpop.f32.mrb[0].mxu0
    %v1311 = vadd.f32 0.0, %v1310
    %v1312 = vpop.f32.mrb[0].mxu0
    %1313 = vdwg.mxu0
    %1317 = vrot.lane.b32.xlu0 %v829, 8
    %v1318 = vpop.permute.xlu0 %1317
    %1319 = vrot.lane.b32.xlu0 %v834, 8
    %v1320 = vpop.permute.xlu0 %1319
    %1321 = vrot.lane.b32.xlu0 %v839, 8
    %v1322 = vpop.permute.xlu0 %1321
    %1329 = vrot.lane.b32.xlu0 %v1065, 16
    %v1330 = vpop.permute.xlu0 %1329
    %1331 = vrot.lane.b32.xlu0 %v1070, 16
    %v1332 = vpop.permute.xlu0 %1331
    %1333 = vrot.lane.b32.xlu0 %v1075, 16
    %v1334 = vpop.permute.xlu0 %1333
    %1341 = vrot.lane.b32.xlu0 %v1301, 24
    %v1342 = vpop.permute.xlu0 %1341
    %1343 = vrot.lane.b32.xlu0 %v1306, 24
    %v1344 = vpop.permute.xlu0 %1343
    %1345 = vrot.lane.b32.xlu0 %v1311, 24
    %v1346 = vpop.permute.xlu0 %1345
    %v1350 = vsel %vm378, %v593, %v1318
    %v1351 = vsel %vm378, %v598, %v1320
    %v1352 = vsel %vm378, %v603, %v1322
    %vm1353 = vcmask 130048
    %v1354 = vsel %vm1353, %v1350, %v1330
    %v1355 = vsel %vm1353, %v1351, %v1332
    %v1356 = vsel %vm1353, %v1352, %v1334
    %vm1357 = vcmask 195584
    %v1358 = vsel %vm1357, %v1354, %v1342
    %v1359 = vsel %vm1357, %v1355, %v1344
    %v1360 = vsel %vm1357, %v1356, %v1346
    %v1362 = vsel %vm220, %v1358, 0
    %v1365 = vsel %vm220, %v1359, 0
    %v1368 = vsel %vm220, %v1360, 0
    %1370 = vmatprep.subr.mxu0 0.0
    %1371 = vmatpush1.msra.mxu0 %v200
    %1372 = vmatprep.subr.mxu0 0.0
    %1373 = vmatpush1.msra.mxu0 %v201
    %1374 = vmatprep.subr.mxu0 0.0
    %1375 = vmatpush1.msra.mxu0 %v202
    %1376 = vmatprep.subr.mxu0 0.0
    %1377 = vmatpush1.msra.mxu0 %v203
    %1378 = vmatprep.subr.mxu0 0.0
    %1379 = vmatpush1.msra.mxu0 0.0
    %1380 = vmatprep.subr.mxu0 0.0
    %1381 = vmatpush1.msra.mxu0 0.0
    %1382 = vmatprep.subr.mxu0 0.0
    %1383 = vmatpush1.msra.mxu0 0.0
    %1384 = vmatprep.subr.mxu0 0.0
    %1385 = vmatpush1.msra.mxu0 0.0
    %1386 = vmatprep.subr.mxu0 0.0
    %1387 = vmatpush1.msra.mxu0 0.0
    %1388 = vmatprep.subr.mxu0 0.0
    %1389 = vmatpush1.msra.mxu0 0.0
    %1390 = vmatprep.subr.mxu0 0.0
    %1391 = vmatpush1.msra.mxu0 0.0
    %1392 = vmatprep.subr.mxu0 0.0
    %1393 = vmatpush1.msra.mxu0 0.0
    %1394 = vmatprep.subr.mxu0 0.0
    %1395 = vmatpush1.msra.mxu0 0.0
    %1396 = vmatprep.subr.mxu0 0.0
    %1397 = vmatpush1.msra.mxu0 0.0
    %1398 = vmatprep.subr.mxu0 0.0
    %1399 = vmatpush1.msra.mxu0 0.0
    %1400 = vmatprep.subr.mxu0 0.0
    %1401 = vmatpush1.msra.mxu0 0.0
    %1402 = vmatprep.subr.mxu0 0.0
    %1403 = vmatpush1.msra.mxu0 0.0
    %1404 = vmatprep.subr.mxu0 0.0
    %1405 = vmatpush1.msra.mxu0 0.0
    %1406 = vmatprep.subr.mxu0 0.0
    %1407 = vmatpush1.msra.mxu0 0.0
    %1408 = vmatprep.subr.mxu0 0.0
    %1409 = vmatpush1.msra.mxu0 0.0
    %1410 = vmatprep.subr.mxu0 0.0
    %1411 = vmatpush1.msra.mxu0 0.0
    %1412 = vmatprep.subr.mxu0 0.0
    %1413 = vmatpush1.msra.mxu0 0.0
    %1414 = vmatprep.subr.mxu0 0.0
    %1415 = vmatpush1.msra.mxu0 0.0
    %1416 = vmatprep.subr.mxu0 0.0
    %1417 = vmatpush1.msra.mxu0 0.0
    %1418 = vmatprep.subr.mxu0 0.0
    %1419 = vmatpush1.msra.mxu0 0.0
    %1420 = vmatprep.subr.mxu0 0.0
    %1421 = vmatpush1.msra.mxu0 0.0
    %1422 = vmatprep.subr.mxu0 0.0
    %1423 = vmatpush1.msra.mxu0 0.0
    %1424 = vmatprep.subr.mxu0 0.0
    %1425 = vmatpush1.msra.mxu0 0.0
    %1426 = vmatprep.subr.mxu0 0.0
    %1427 = vmatpush1.msra.mxu0 0.0
    %1428 = vmatprep.subr.mxu0 0.0
    %1429 = vmatpush1.msra.mxu0 0.0
    %1430 = vmatprep.subr.mxu0 0.0
    %1431 = vmatpush1.msra.mxu0 0.0
    %1432 = vmatprep.subr.mxu0 0.0
    %1433 = vmatpush1.msra.mxu0 0.0
    %1434 = vmatprep.mubr.f32.mxu0 0.0
    %1435 = vmatmul.mubr.f32.gmra.mrb[0].mxu0 %v1362
    %v1436 = vpop.f32.mrb[0].mxu0
    %v1437 = vadd.f32 0.0, %v1436
    %v1438 = vpop.f32.mrb[0].mxu0
    %1439 = vmatprep.mubr.f32.mxu0 0.0
    %1440 = vmatmul.mubr.f32.gmra.mrb[0].mxu0 %v1365
    %v1441 = vpop.f32.mrb[0].mxu0
    %v1442 = vadd.f32 0.0, %v1441
    %v1443 = vpop.f32.mrb[0].mxu0
    %1444 = vmatprep.mubr.f32.mxu0 0.0
    %1445 = vmatmul.mubr.f32.gmra.mrb[0].mxu0 %v1368
    %v1446 = vpop.f32.mrb[0].mxu0
    %v1447 = vadd.f32 0.0, %v1446
    %v1448 = vpop.f32.mrb[0].mxu0
    %1449 = vdwg.mxu0
    %v1450 = vadd.f32 %v193, %v1437
    %v1451 = vadd.f32 %v194, %v1442
    %v1452 = vadd.f32 %v195, %v1447
    %v1453 = vlaneseq
    %v1454 = vshrl.u32 %v1453, 7
    %v1455 = vsub.s32 0, %v1454
    %v1456 = vrot.slane %v218, %v1455
    %v1457 = vadd.f32 %v1450, %v1456
    %v1458 = vadd.f32 %v1451, %v1456
    %v1459 = vadd.f32 %v1452, %v1456
    %v1460 = vsel %vm220, %v1457, 0.0
    %1461 = vadd.xlane.f32.xlu0 %v1460
    %v1462 = vpop.xlane.xlu0 %1461
    %v1463 = vsel %vm220, %v1458, 0.0
    %1464 = vadd.xlane.f32.xlu0 %v1463
    %v1465 = vpop.xlane.xlu0 %1464
    %v1466 = vsel %vm227, %v1459, 0.0
    %1467 = vadd.xlane.f32.xlu0 %v1466
    %v1468 = vpop.xlane.xlu0 %1467
    %v1469 = vmul.f32 %v1462, %v231
    %v1470 = vmul.f32 %v1465, %v231
    %v1471 = vmul.f32 %v1468, %v231
    %v1472 = vsub.f32 %v1457, %v1469
    %v1473 = vsub.f32 %v1458, %v1470
    %v1474 = vsub.f32 %v1459, %v1471
    %v1475 = vmul.f32 %v1472, %v1472
    %v1476 = vmul.f32 %v1473, %v1473
    %v1477 = vmul.f32 %v1474, %v1474
    %v1478 = vsel %vm220, %v1475, 0.0
    %1479 = vadd.xlane.f32.xlu0 %v1478
    %v1480 = vpop.xlane.xlu0 %1479
    %v1481 = vsel %vm220, %v1476, 0.0
    %1482 = vadd.xlane.f32.xlu0 %v1481
    %v1483 = vpop.xlane.xlu0 %1482
    %v1484 = vsel %vm227, %v1477, 0.0
    %1485 = vadd.xlane.f32.xlu0 %v1484
    %v1486 = vpop.xlane.xlu0 %1485
    %v1487 = vmul.f32 %v1480, %v231
    %v1488 = vmul.f32 %v1483, %v231
    %v1489 = vmul.f32 %v1486, %v231
    %v1490 = vadd.f32 %v1487, 1e-05
    %v1491 = vadd.f32 %v1488, 1e-05
    %v1492 = vadd.f32 %v1489, 1e-05
    %v1493 = vrsqrt.pop %v1490
    %v1494 = vrsqrt.pop %v1491
    %v1495 = vrsqrt.pop %v1492
    %v1496 = vmul.f32 %v1472, %v1493
    %v1497 = vmul.f32 %v1473, %v1494
    %v1498 = vmul.f32 %v1474, %v1495
    %v1499 = vlaneseq
    %v1500 = vshrl.u32 %v1499, 7
    %v1501 = vsub.s32 0, %v1500
    %v1502 = vrot.slane %v216, %v1501
    %v1503 = vmul.f32 %v1496, %v1502
    %v1504 = vmul.f32 %v1497, %v1502
    %v1505 = vmul.f32 %v1498, %v1502
    %v1506 = vlaneseq
    %v1507 = vshrl.u32 %v1506, 7
    %v1508 = vsub.s32 0, %v1507
    %v1509 = vrot.slane %v217, %v1508
    %v1510 = vadd.f32 %v1503, %v1509
    %v1511 = vadd.f32 %v1504, %v1509
    %v1512 = vadd.f32 %v1505, %v1509
    %v1513 = vlaneseq
    %v1514 = vshrl.u32 %v1513, 7
    %v1515 = vsub.s32 0, %v1514
    %v1516 = vrot.slane %v213, %v1515
    %v1518 = vsel %vm220, %v1510, 0
    %v1521 = vsel %vm220, %v1511, 0
    %v1524 = vsel %vm220, %v1512, 0
    %1526 = vmatprep.subr.mxu0 0.0
    %1527 = vmatpush1.msra.mxu0 %v204
    %1528 = vmatprep.subr.mxu0 0.0
    %1529 = vmatpush1.msra.mxu0 %v205
    %1530 = vmatprep.subr.mxu0 0.0
    %1531 = vmatpush1.msra.mxu0 %v206
    %1532 = vmatprep.subr.mxu0 0.0
    %1533 = vmatpush1.msra.mxu0 %v207
    %1534 = vmatprep.subr.mxu0 0.0
    %1535 = vmatpush1.msra.mxu0 0.0
    %1536 = vmatprep.subr.mxu0 0.0
    %1537 = vmatpush1.msra.mxu0 0.0
    %1538 = vmatprep.subr.mxu0 0.0
    %1539 = vmatpush1.msra.mxu0 0.0
    %1540 = vmatprep.subr.mxu0 0.0
    %1541 = vmatpush1.msra.mxu0 0.0
    %1542 = vmatprep.subr.mxu0 0.0
    %1543 = vmatpush1.msra.mxu0 0.0
    %1544 = vmatprep.subr.mxu0 0.0
    %1545 = vmatpush1.msra.mxu0 0.0
    %1546 = vmatprep.subr.mxu0 0.0
    %1547 = vmatpush1.msra.mxu0 0.0
    %1548 = vmatprep.subr.mxu0 0.0
    %1549 = vmatpush1.msra.mxu0 0.0
    %1550 = vmatprep.subr.mxu0 0.0
    %1551 = vmatpush1.msra.mxu0 0.0
    %1552 = vmatprep.subr.mxu0 0.0
    %1553 = vmatpush1.msra.mxu0 0.0
    %1554 = vmatprep.subr.mxu0 0.0
    %1555 = vmatpush1.msra.mxu0 0.0
    %1556 = vmatprep.subr.mxu0 0.0
    %1557 = vmatpush1.msra.mxu0 0.0
    %1558 = vmatprep.subr.mxu0 0.0
    %1559 = vmatpush1.msra.mxu0 0.0
    %1560 = vmatprep.subr.mxu0 0.0
    %1561 = vmatpush1.msra.mxu0 0.0
    %1562 = vmatprep.subr.mxu0 0.0
    %1563 = vmatpush1.msra.mxu0 0.0
    %1564 = vmatprep.subr.mxu0 0.0
    %1565 = vmatpush1.msra.mxu0 0.0
    %1566 = vmatprep.subr.mxu0 0.0
    %1567 = vmatpush1.msra.mxu0 0.0
    %1568 = vmatprep.subr.mxu0 0.0
    %1569 = vmatpush1.msra.mxu0 0.0
    %1570 = vmatprep.subr.mxu0 0.0
    %1571 = vmatpush1.msra.mxu0 0.0
    %1572 = vmatprep.subr.mxu0 0.0
    %1573 = vmatpush1.msra.mxu0 0.0
    %1574 = vmatprep.subr.mxu0 0.0
    %1575 = vmatpush1.msra.mxu0 0.0
    %1576 = vmatprep.subr.mxu0 0.0
    %1577 = vmatpush1.msra.mxu0 0.0
    %1578 = vmatprep.subr.mxu0 0.0
    %1579 = vmatpush1.msra.mxu0 0.0
    %1580 = vmatprep.subr.mxu0 0.0
    %1581 = vmatpush1.msra.mxu0 0.0
    %1582 = vmatprep.subr.mxu0 0.0
    %1583 = vmatpush1.msra.mxu0 0.0
    %1584 = vmatprep.subr.mxu0 0.0
    %1585 = vmatpush1.msra.mxu0 0.0
    %1586 = vmatprep.subr.mxu0 0.0
    %1587 = vmatpush1.msra.mxu0 0.0
    %1588 = vmatprep.subr.mxu0 0.0
    %1589 = vmatpush1.msra.mxu0 0.0
    %1590 = vmatprep.mubr.f32.mxu0 0.0
    %1591 = vmatmul.mubr.f32.gmra.mrb[0].mxu0 %v1518
    %v1592 = vpop.f32.mrb[0].mxu0
    %v1593 = vadd.f32 %v1516, %v1592
    %v1594 = vpop.f32.mrb[0].mxu0
    %1595 = vmatprep.mubr.f32.mxu0 0.0
    %1596 = vmatmul.mubr.f32.gmra.mrb[0].mxu0 %v1521
    %v1597 = vpop.f32.mrb[0].mxu0
    %v1598 = vadd.f32 %v1516, %v1597
    %v1599 = vpop.f32.mrb[0].mxu0
    %1600 = vmatprep.mubr.f32.mxu0 0.0
    %1601 = vmatmul.mubr.f32.gmra.mrb[0].mxu0 %v1524
    %v1602 = vpop.f32.mrb[0].mxu0
    %v1603 = vadd.f32 %v1516, %v1602
    %v1604 = vpop.f32.mrb[0].mxu0
    %1605 = vdwg.mxu0
    %v1606 = vmax.f32 %v1593, 0.0
    %v1607 = vmax.f32 %v1598, 0.0
    %v1608 = vmax.f32 %v1603, 0.0
    %vm1609 = vcmask 523264
    %v1611 = vsel %vm1609, %v1606, 0
    %v1614 = vsel %vm1609, %v1607, 0
    %v1617 = vsel %vm1609, %v1608, 0
    %v1620 = vsel %vm1609, %v208, 0
    %v1623 = vsel %vm1609, %v209, 0
    %v1626 = vsel %vm1609, %v210, 0
    %v1629 = vsel %vm1609, %v211, 0
    %1631 = vmatprep.subr.mxu0 0.0
    %1632 = vmatpush1.xpose.msra.mxu0 %v1620
    %1633 = vmatprep.subr.mxu0 0.0
    %1634 = vmatpush1.xpose.msra.mxu0 %v1623
    %1635 = vmatprep.subr.mxu0 0.0
    %1636 = vmatpush1.xpose.msra.mxu0 %v1626
    %1637 = vmatprep.subr.mxu0 0.0
    %1638 = vmatpush1.xpose.msra.mxu0 %v1629
    %1639 = vmatprep.subr.mxu0 0.0
    %1640 = vmatpush1.xpose.msra.mxu0 0.0
    %1641 = vmatprep.subr.mxu0 0.0
    %1642 = vmatpush1.xpose.msra.mxu0 0.0
    %1643 = vmatprep.subr.mxu0 0.0
    %1644 = vmatpush1.xpose.msra.mxu0 0.0
    %1645 = vmatprep.subr.mxu0 0.0
    %1646 = vmatpush1.xpose.msra.mxu0 0.0
    %1647 = vmatprep.subr.mxu0 0.0
    %1648 = vmatpush1.xpose.msra.mxu0 0.0
    %1649 = vmatprep.subr.mxu0 0.0
    %1650 = vmatpush1.xpose.msra.mxu0 0.0
    %1651 = vmatprep.subr.mxu0 0.0
    %1652 = vmatpush1.xpose.msra.mxu0 0.0
    %1653 = vmatprep.subr.mxu0 0.0
    %1654 = vmatpush1.xpose.msra.mxu0 0.0
    %1655 = vmatprep.subr.mxu0 0.0
    %1656 = vmatpush1.xpose.msra.mxu0 0.0
    %1657 = vmatprep.subr.mxu0 0.0
    %1658 = vmatpush1.xpose.msra.mxu0 0.0
    %1659 = vmatprep.subr.mxu0 0.0
    %1660 = vmatpush1.xpose.msra.mxu0 0.0
    %1661 = vmatprep.subr.mxu0 0.0
    %1662 = vmatpush1.xpose.msra.mxu0 0.0
    %1663 = vmatprep.subr.mxu0 0.0
    %1664 = vmatpush1.xpose.msra.mxu0 0.0
    %1665 = vmatprep.subr.mxu0 0.0
    %1666 = vmatpush1.xpose.msra.mxu0 0.0
    %1667 = vmatprep.subr.mxu0 0.0
    %1668 = vmatpush1.xpose.msra.mxu0 0.0
    %1669 = vmatprep.subr.mxu0 0.0
    %1670 = vmatpush1.xpose.msra.mxu0 0.0
    %1671 = vmatprep.subr.mxu0 0.0
    %1672 = vmatpush1.xpose.msra.mxu0 0.0
    %1673 = vmatprep.subr.mxu0 0.0
    %1674 = vmatpush1.xpose.msra.mxu0 0.0
    %1675 = vmatprep.subr.mxu0 0.0
    %1676 = vmatpush1.xpose.msra.mxu0 0.0
    %1677 = vmatprep.subr.mxu0 0.0
    %1678 = vmatpush1.xpose.msra.mxu0 0.0
    %1679 = vmatprep.subr.mxu0 0.0
    %1680 = vmatpush1.xpose.msra.mxu0 0.0
    %1681 = vmatprep.subr.mxu0 0.0
    %1682 = vmatpush1.xpose.msra.mxu0 0.0
    %1683 = vmatprep.subr.mxu0 0.0
    %1684 = vmatpush1.xpose.msra.mxu0 0.0
    %1685 = vmatprep.subr.mxu0 0.0
    %1686 = vmatpush1.xpose.msra.mxu0 0.0
    %1687 = vmatprep.subr.mxu0 0.0
    %1688 = vmatpush1.xpose.msra.mxu0 0.0
    %1689 = vmatprep.subr.mxu0 0.0
    %1690 = vmatpush1.xpose.msra.mxu0 0.0
    %1691 = vmatprep.subr.mxu0 0.0
    %1692 = vmatpush1.xpose.msra.mxu0 0.0
    %1693 = vmatprep.subr.mxu0 0.0
    %1694 = vmatpush1.xpose.msra.mxu0 0.0
    %1695 = vmatprep.mubr.f32.mxu0 0.0
    %1696 = vmatmul.mubr.f32.gmra.mrb[0].mxu0 %v1611
    %v1697 = vpop.f32.mrb[0].mxu0
    %v1698 = vadd.f32 0.0, %v1697
    %v1699 = vpop.f32.mrb[0].mxu0
    %1700 = vmatprep.mubr.f32.mxu0 0.0
    %1701 = vmatmul.mubr.f32.gmra.mrb[0].mxu0 %v1614
    %v1702 = vpop.f32.mrb[0].mxu0
    %v1703 = vadd.f32 0.0, %v1702
    %v1704 = vpop.f32.mrb[0].mxu0
    %1705 = vmatprep.mubr.f32.mxu0 0.0
    %1706 = vmatmul.mubr.f32.gmra.mrb[0].mxu0 %v1617
    %v1707 = vpop.f32.mrb[0].mxu0
    %v1708 = vadd.f32 0.0, %v1707
    %v1709 = vpop.f32.mrb[0].mxu0
    %1710 = vdwg.mxu0
    %v1711 = vadd.f32 %v1457, %v1698
    %v1712 = vadd.f32 %v1458, %v1703
    %v1713 = vadd.f32 %v1459, %v1708
    %v1714 = vlaneseq
    %v1715 = vshrl.u32 %v1714, 7
    %v1716 = vsub.s32 0, %v1715
    %v1717 = vrot.slane %v219, %v1716
    %v1718 = vadd.f32 %v1711, %v1717
    %v1719 = vadd.f32 %v1712, %v1717
    %v1720 = vadd.f32 %v1713, %v1717
    %s1721 = scalar_lea.vmem [#allocation2], 136
    %v1722 = vld [vmem:[%s1721] sm:$0xff]
    %v1723 = vld [vmem:[%s1721 + $0x8] sm:$0xff]
    %v1724 = vld [vmem:[%s1721 + $0x10] sm:$0xff]
    %v1725 = vld [vmem:[%s1721 + $0x18] sm:$0xff]
    %v1726 = vld [vmem:[%s1721 + $0x20] sm:$0xff]
    %v1727 = vld [vmem:[%s1721 + $0x28] sm:$0xff]
    %v1728 = vld [vmem:[%s1721 + $0x30] sm:$0xff]
    %v1729 = vld [vmem:[%s1721 + $0x38] sm:$0xff]
    %v1730 = vld [vmem:[%s1721 + $0x40] sm:$0xff]
    %v1731 = vld [vmem:[%s1721 + $0x48] sm:$0xff]
    %v1732 = vld [vmem:[%s1721 + $0x50] sm:$0xff]
    %v1733 = vld [vmem:[%s1721 + $0x58] sm:$0xff]
    %v1734 = vld [vmem:[%s1721 + $0x60] sm:$0xff]
    %v1735 = vld [vmem:[%s1721 + $0x68] sm:$0xff]
    %v1736 = vld [vmem:[%s1721 + $0x70] sm:$0xff]
    %v1737 = vld [vmem:[%s1721 + $0x78] sm:$0xff]
    %v1738 = vld [vmem:[%s1721 + $0x80] sm:$0x1]
    %v1739 = vld [vmem:[%s1721 + $0x81] sm:$0x1]
    %v1740 = vld [vmem:[%s1721 + $0x82] sm:$0x1]
    %v1741 = vld [vmem:[%s1721 + $0x83] sm:$0x1]
    %v1742 = vld [vmem:[%s1721 + $0x84] sm:$0x1]
    %v1743 = vld [vmem:[%s1721 + $0x85] sm:$0x1]
    %v1744 = vld [vmem:[%s1721 + $0x86] sm:$0x1]
    %v1745 = vld [vmem:[%s1721 + $0x87] sm:$0x1]
    %v1746 = vsel %vm220, %v1718, 0.0
    %1747 = vadd.xlane.f32.xlu0 %v1746
    %v1748 = vpop.xlane.xlu0 %1747
    %v1749 = vsel %vm220, %v1719, 0.0
    %1750 = vadd.xlane.f32.xlu0 %v1749
    %v1751 = vpop.xlane.xlu0 %1750
    %v1752 = vsel %vm227, %v1720, 0.0
    %1753 = vadd.xlane.f32.xlu0 %v1752
    %v1754 = vpop.xlane.xlu0 %1753
    %v1755 = vmul.f32 %v1748, %v231
    %v1756 = vmul.f32 %v1751, %v231
    %v1757 = vmul.f32 %v1754, %v231
    %v1758 = vsub.f32 %v1718, %v1755
    %v1759 = vsub.f32 %v1719, %v1756
    %v1760 = vsub.f32 %v1720, %v1757
    %v1761 = vmul.f32 %v1758, %v1758
    %v1762 = vmul.f32 %v1759, %v1759
    %v1763 = vmul.f32 %v1760, %v1760
    %v1764 = vsel %vm220, %v1761, 0.0
    %1765 = vadd.xlane.f32.xlu0 %v1764
    %v1766 = vpop.xlane.xlu0 %1765
    %v1767 = vsel %vm220, %v1762, 0.0
    %1768 = vadd.xlane.f32.xlu0 %v1767
    %v1769 = vpop.xlane.xlu0 %1768
    %v1770 = vsel %vm227, %v1763, 0.0
    %1771 = vadd.xlane.f32.xlu0 %v1770
    %v1772 = vpop.xlane.xlu0 %1771
    %v1773 = vmul.f32 %v1766, %v231
    %v1774 = vmul.f32 %v1769, %v231
    %v1775 = vmul.f32 %v1772, %v231
    %v1776 = vadd.f32 %v1773, 1e-05
    %v1777 = vadd.f32 %v1774, 1e-05
    %v1778 = vadd.f32 %v1775, 1e-05
    %v1779 = vrsqrt.pop %v1776
    %v1780 = vrsqrt.pop %v1777
    %v1781 = vrsqrt.pop %v1778
    %v1782 = vmul.f32 %v1758, %v1779
    %v1783 = vmul.f32 %v1759, %v1780
    %v1784 = vmul.f32 %v1760, %v1781
    %v1785 = vlaneseq
    %v1786 = vshrl.u32 %v1785, 7
    %v1787 = vsub.s32 0, %v1786
    %v1788 = vrot.slane %v1740, %v1787
    %v1789 = vmul.f32 %v1782, %v1788
    %v1790 = vmul.f32 %v1783, %v1788
    %v1791 = vmul.f32 %v1784, %v1788
    %v1792 = vlaneseq
    %v1793 = vshrl.u32 %v1792, 7
    %v1794 = vsub.s32 0, %v1793
    %v1795 = vrot.slane %v1741, %v1794
    %v1796 = vadd.f32 %v1789, %v1795
    %v1797 = vadd.f32 %v1790, %v1795
    %v1798 = vadd.f32 %v1791, %v1795
    %v1799 = vlaneseq
    %v1800 = vshrl.u32 %v1799, 7
    %v1801 = vsub.s32 0, %v1800
    %v1802 = vrot.slane %v1738, %v1801
    %v1804 = vsel %vm220, %v1796, 0
    %v1807 = vsel %vm220, %v1797, 0
    %v1810 = vsel %vm220, %v1798, 0
    %1812 = vmatprep.subr.mxu0 0.0
    %1813 = vmatpush1.msra.mxu0 %v1722
    %1814 = vmatprep.subr.mxu0 0.0
    %1815 = vmatpush1.msra.mxu0 %v1723
    %1816 = vmatprep.subr.mxu0 0.0
    %1817 = vmatpush1.msra.mxu0 %v1724
    %1818 = vmatprep.subr.mxu0 0.0
    %1819 = vmatpush1.msra.mxu0 %v1725
    %1820 = vmatprep.subr.mxu0 0.0
    %1821 = vmatpush1.msra.mxu0 0.0
    %1822 = vmatprep.subr.mxu0 0.0
    %1823 = vmatpush1.msra.mxu0 0.0
    %1824 = vmatprep.subr.mxu0 0.0
    %1825 = vmatpush1.msra.mxu0 0.0
    %1826 = vmatprep.subr.mxu0 0.0
    %1827 = vmatpush1.msra.mxu0 0.0
    %1828 = vmatprep.subr.mxu0 0.0
    %1829 = vmatpush1.msra.mxu0 0.0
    %1830 = vmatprep.subr.mxu0 0.0
    %1831 = vmatpush1.msra.mxu0 0.0
    %1832 = vmatprep.subr.mxu0 0.0
    %1833 = vmatpush1.msra.mxu0 0.0
    %1834 = vmatprep.subr.mxu0 0.0
    %1835 = vmatpush1.msra.mxu0 0.0
    %1836 = vmatprep.subr.mxu0 0.0
    %1837 = vmatpush1.msra.mxu0 0.0
    %1838 = vmatprep.subr.mxu0 0.0
    %1839 = vmatpush1.msra.mxu0 0.0
    %1840 = vmatprep.subr.mxu0 0.0
    %1841 = vmatpush1.msra.mxu0 0.0
    %1842 = vmatprep.subr.mxu0 0.0
    %1843 = vmatpush1.msra.mxu0 0.0
    %1844 = vmatprep.subr.mxu0 0.0
    %1845 = vmatpush1.msra.mxu0 0.0
    %1846 = vmatprep.subr.mxu0 0.0
    %1847 = vmatpush1.msra.mxu0 0.0
    %1848 = vmatprep.subr.mxu0 0.0
    %1849 = vmatpush1.msra.mxu0 0.0
    %1850 = vmatprep.subr.mxu0 0.0
    %1851 = vmatpush1.msra.mxu0 0.0
    %1852 = vmatprep.subr.mxu0 0.0
    %1853 = vmatpush1.msra.mxu0 0.0
    %1854 = vmatprep.subr.mxu0 0.0
    %1855 = vmatpush1.msra.mxu0 0.0
    %1856 = vmatprep.subr.mxu0 0.0
    %1857 = vmatpush1.msra.mxu0 0.0
    %1858 = vmatprep.subr.mxu0 0.0
    %1859 = vmatpush1.msra.mxu0 0.0
    %1860 = vmatprep.subr.mxu0 0.0
    %1861 = vmatpush1.msra.mxu0 0.0
    %1862 = vmatprep.subr.mxu0 0.0
    %1863 = vmatpush1.msra.mxu0 0.0
    %1864 = vmatprep.subr.mxu0 0.0
    %1865 = vmatpush1.msra.mxu0 0.0
    %1866 = vmatprep.subr.mxu0 0.0
    %1867 = vmatpush1.msra.mxu0 0.0
    %1868 = vmatprep.subr.mxu0 0.0
    %1869 = vmatpush1.msra.mxu0 0.0
    %1870 = vmatprep.subr.mxu0 0.0
    %1871 = vmatpush1.msra.mxu0 0.0
    %1872 = vmatprep.subr.mxu0 0.0
    %1873 = vmatpush1.msra.mxu0 0.0
    %1874 = vmatprep.subr.mxu0 0.0
    %1875 = vmatpush1.msra.mxu0 0.0
    %1876 = vmatprep.mubr.f32.mxu0 0.0
    %1877 = vmatmul.mubr.f32.gmra.mrb[0].mxu0 %v1804
    %v1878 = vpop.f32.mrb[0].mxu0
    %v1879 = vadd.f32 %v1802, %v1878
    %v1880 = vpop.f32.mrb[0].mxu0
    %1881 = vmatprep.mubr.f32.mxu0 0.0
    %1882 = vmatmul.mubr.f32.gmra.mrb[0].mxu0 %v1807
    %v1883 = vpop.f32.mrb[0].mxu0
    %v1884 = vadd.f32 %v1802, %v1883
    %v1885 = vpop.f32.mrb[0].mxu0
    %1886 = vmatprep.mubr.f32.mxu0 0.0
    %1887 = vmatmul.mubr.f32.gmra.mrb[0].mxu0 %v1810
    %v1888 = vpop.f32.mrb[0].mxu0
    %v1889 = vadd.f32 %v1802, %v1888
    %v1890 = vpop.f32.mrb[0].mxu0
    %1891 = vdwg.mxu0
    %1895 = vrot.lane.b32.xlu0 %v1879, 96
    %v1896 = vpop.permute.xlu0 %1895
    %1897 = vrot.lane.b32.xlu0 %v1884, 96
    %v1898 = vpop.permute.xlu0 %1897
    %1899 = vrot.lane.b32.xlu0 %v1889, 96
    %v1900 = vpop.permute.xlu0 %1899
    %v1901 = vsel %vm378, %v1879, 0
    %v1903 = vsel %vm378, %v1884, 0
    %v1905 = vsel %vm378, %v1889, 0
    %v1907 = vsel %vm378, %v1896, 0
    %v1909 = vsel %vm378, %v1898, 0
    %v1911 = vsel %vm378, %v1900, 0
    %1913 = vmatprep.subr.mxu0 0.0
    %1914 = vmatpush1.xpose.msra.mxu0 %v1907
    %1915 = vmatprep.subr.mxu0 0.0
    %1916 = vmatpush1.xpose.msra.mxu0 %v1909
    %1917 = vmatprep.subr.mxu0 0.0
    %1918 = vmatpush1.xpose.msra.mxu0 %v1911
    %1919 = vmatprep.subr.mxu0 0.0
    %1920 = vmatpush1.xpose.msra.mxu0 0.0
    %1921 = vmatprep.subr.mxu0 0.0
    %1922 = vmatpush1.xpose.msra.mxu0 0.0
    %1923 = vmatprep.subr.mxu0 0.0
    %1924 = vmatpush1.xpose.msra.mxu0 0.0
    %1925 = vmatprep.subr.mxu0 0.0
    %1926 = vmatpush1.xpose.msra.mxu0 0.0
    %1927 = vmatprep.subr.mxu0 0.0
    %1928 = vmatpush1.xpose.msra.mxu0 0.0
    %1929 = vmatprep.subr.mxu0 0.0
    %1930 = vmatpush1.xpose.msra.mxu0 0.0
    %1931 = vmatprep.subr.mxu0 0.0
    %1932 = vmatpush1.xpose.msra.mxu0 0.0
    %1933 = vmatprep.subr.mxu0 0.0
    %1934 = vmatpush1.xpose.msra.mxu0 0.0
    %1935 = vmatprep.subr.mxu0 0.0
    %1936 = vmatpush1.xpose.msra.mxu0 0.0
    %1937 = vmatprep.subr.mxu0 0.0
    %1938 = vmatpush1.xpose.msra.mxu0 0.0
    %1939 = vmatprep.subr.mxu0 0.0
    %1940 = vmatpush1.xpose.msra.mxu0 0.0
    %1941 = vmatprep.subr.mxu0 0.0
    %1942 = vmatpush1.xpose.msra.mxu0 0.0
    %1943 = vmatprep.subr.mxu0 0.0
    %1944 = vmatpush1.xpose.msra.mxu0 0.0
    %1945 = vmatprep.subr.mxu0 0.0
    %1946 = vmatpush1.xpose.msra.mxu0 0.0
    %1947 = vmatprep.subr.mxu0 0.0
    %1948 = vmatpush1.xpose.msra.mxu0 0.0
    %1949 = vmatprep.subr.mxu0 0.0
    %1950 = vmatpush1.xpose.msra.mxu0 0.0
    %1951 = vmatprep.subr.mxu0 0.0
    %1952 = vmatpush1.xpose.msra.mxu0 0.0
    %1953 = vmatprep.subr.mxu0 0.0
    %1954 = vmatpush1.xpose.msra.mxu0 0.0
    %1955 = vmatprep.subr.mxu0 0.0
    %1956 = vmatpush1.xpose.msra.mxu0 0.0
    %1957 = vmatprep.subr.mxu0 0.0
    %1958 = vmatpush1.xpose.msra.mxu0 0.0
    %1959 = vmatprep.subr.mxu0 0.0
    %1960 = vmatpush1.xpose.msra.mxu0 0.0
    %1961 = vmatprep.subr.mxu0 0.0
    %1962 = vmatpush1.xpose.msra.mxu0 0.0
    %1963 = vmatprep.subr.mxu0 0.0
    %1964 = vmatpush1.xpose.msra.mxu0 0.0
    %1965 = vmatprep.subr.mxu0 0.0
    %1966 = vmatpush1.xpose.msra.mxu0 0.0
    %1967 = vmatprep.subr.mxu0 0.0
    %1968 = vmatpush1.xpose.msra.mxu0 0.0
    %1969 = vmatprep.subr.mxu0 0.0
    %1970 = vmatpush1.xpose.msra.mxu0 0.0
    %1971 = vmatprep.subr.mxu0 0.0
    %1972 = vmatpush1.xpose.msra.mxu0 0.0
    %1973 = vmatprep.subr.mxu0 0.0
    %1974 = vmatpush1.xpose.msra.mxu0 0.0
    %1975 = vmatprep.subr.mxu0 0.0
    %1976 = vmatpush1.xpose.msra.mxu0 0.0
    %1977 = vmatprep.mubr.f32.mxu0 0.0
    %1978 = vmatmul.mubr.f32.gmra.mrb[0].mxu0 %v1901
    %v1979 = vpop.f32.mrb[0].mxu0
    %v1980 = vadd.f32 %v79, %v1979
    %v1981 = vpop.f32.mrb[0].mxu0
    %1982 = vmatprep.mubr.f32.mxu0 0.0
    %1983 = vmatmul.mubr.f32.gmra.mrb[0].mxu0 %v1903
    %v1984 = vpop.f32.mrb[0].mxu0
    %v1985 = vadd.f32 %v80, %v1984
    %v1986 = vpop.f32.mrb[0].mxu0
    %1987 = vmatprep.mubr.f32.mxu0 0.0
    %1988 = vmatmul.mubr.f32.gmra.mrb[0].mxu0 %v1905
    %v1989 = vpop.f32.mrb[0].mxu0
    %v1990 = vadd.f32 %v81, %v1989
    %v1991 = vpop.f32.mrb[0].mxu0
    %1992 = vdwg.mxu0
    %v1993 = vsel %vm471, %v1980, -inf
    %1994 = vmax.xlane.f32.xlu0 %v1993
    %v1995 = vpop.xlane.xlu0 %1994
    %v1996 = vsel %vm471, %v1985, -inf
    %1997 = vmax.xlane.f32.xlu0 %v1996
    %v1998 = vpop.xlane.xlu0 %1997
    %v1999 = vsel %vm478, %v1990, -inf
    %2000 = vmax.xlane.f32.xlu0 %v1999
    %v2001 = vpop.xlane.xlu0 %2000
    %v2002 = vsub.f32 %v1980, %v1995
    %v2003 = vsub.f32 %v1985, %v1998
    %v2004 = vsub.f32 %v1990, %v2001
    %v2005 = vmul.f32 %v2002, 1.442695
    %v2006 = vpow.pop %v2005
    %v2007 = vmul.f32 %v2003, 1.442695
    %v2008 = vpow.pop %v2007
    %v2009 = vmul.f32 %v2004, 1.442695
    %v2010 = vpow.pop %v2009
    %v2011 = vsel %vm471, %v2006, 0.0
    %2012 = vadd.xlane.f32.xlu0 %v2011
    %v2013 = vpop.xlane.xlu0 %2012
    %v2014 = vsel %vm471, %v2008, 0.0
    %2015 = vadd.xlane.f32.xlu0 %v2014
    %v2016 = vpop.xlane.xlu0 %2015
    %v2017 = vsel %vm478, %v2010, 0.0
    %2018 = vadd.xlane.f32.xlu0 %v2017
    %v2019 = vpop.xlane.xlu0 %2018
    %v2020 = vrcp.pop %v2013
    %v2021 = vrcp.pop %v2016
    %v2022 = vrcp.pop %v2019
    %v2023 = vmul.f32 %v2006, %v2020
    %v2024 = vmul.f32 %v2008, %v2021
    %v2025 = vmul.f32 %v2010, %v2022
    %2026 = vrot.lane.b32.xlu0 %v1879, 64
    %v2027 = vpop.permute.xlu0 %2026
    %2028 = vrot.lane.b32.xlu0 %v1884, 64
    %v2029 = vpop.permute.xlu0 %2028
    %2030 = vrot.lane.b32.xlu0 %v1889, 64
    %v2031 = vpop.permute.xlu0 %2030
    %v2035 = vsel %vm471, %v2023, 0
    %v2038 = vsel %vm471, %v2024, 0
    %v2041 = vsel %vm471, %v2025, 0
    %v2043 = vsel %vm523, %v2031, 0
    %2045 = vmatprep.subr.mxu0 0.0
    %2046 = vmatpush1.msra.mxu0 %v2027
    %2047 = vmatprep.subr.mxu0 0.0
    %2048 = vmatpush1.msra.mxu0 %v2029
    %2049 = vmatprep.subr.mxu0 0.0
    %2050 = vmatpush1.msra.mxu0 %v2043
    %2051 = vmatprep.subr.mxu0 0.0
    %2052 = vmatpush1.msra.mxu0 0.0
    %2053 = vmatprep.subr.mxu0 0.0
    %2054 = vmatpush1.msra.mxu0 0.0
    %2055 = vmatprep.subr.mxu0 0.0
    %2056 = vmatpush1.msra.mxu0 0.0
    %2057 = vmatprep.subr.mxu0 0.0
    %2058 = vmatpush1.msra.mxu0 0.0
    %2059 = vmatprep.subr.mxu0 0.0
    %2060 = vmatpush1.msra.mxu0 0.0
    %2061 = vmatprep.subr.mxu0 0.0
    %2062 = vmatpush1.msra.mxu0 0.0
    %2063 = vmatprep.subr.mxu0 0.0
    %2064 = vmatpush1.msra.mxu0 0.0
    %2065 = vmatprep.subr.mxu0 0.0
    %2066 = vmatpush1.msra.mxu0 0.0
    %2067 = vmatprep.subr.mxu0 0.0
    %2068 = vmatpush1.msra.mxu0 0.0
    %2069 = vmatprep.subr.mxu0 0.0
    %2070 = vmatpush1.msra.mxu0 0.0
    %2071 = vmatprep.subr.mxu0 0.0
    %2072 = vmatpush1.msra.mxu0 0.0
    %2073 = vmatprep.subr.mxu0 0.0
    %2074 = vmatpush1.msra.mxu0 0.0
    %2075 = vmatprep.subr.mxu0 0.0
    %2076 = vmatpush1.msra.mxu0 0.0
    %2077 = vmatprep.subr.mxu0 0.0
    %2078 = vmatpush1.msra.mxu0 0.0
    %2079 = vmatprep.subr.mxu0 0.0
    %2080 = vmatpush1.msra.mxu0 0.0
    %2081 = vmatprep.subr.mxu0 0.0
    %2082 = vmatpush1.msra.mxu0 0.0
    %2083 = vmatprep.subr.mxu0 0.0
    %2084 = vmatpush1.msra.mxu0 0.0
    %2085 = vmatprep.subr.mxu0 0.0
    %2086 = vmatpush1.msra.mxu0 0.0
    %2087 = vmatprep.subr.mxu0 0.0
    %2088 = vmatpush1.msra.mxu0 0.0
    %2089 = vmatprep.subr.mxu0 0.0
    %2090 = vmatpush1.msra.mxu0 0.0
    %2091 = vmatprep.subr.mxu0 0.0
    %2092 = vmatpush1.msra.mxu0 0.0
    %2093 = vmatprep.subr.mxu0 0.0
    %2094 = vmatpush1.msra.mxu0 0.0
    %2095 = vmatprep.subr.mxu0 0.0
    %2096 = vmatpush1.msra.mxu0 0.0
    %2097 = vmatprep.subr.mxu0 0.0
    %2098 = vmatpush1.msra.mxu0 0.0
    %2099 = vmatprep.subr.mxu0 0.0
    %2100 = vmatpush1.msra.mxu0 0.0
    %2101 = vmatprep.subr.mxu0 0.0
    %2102 = vmatpush1.msra.mxu0 0.0
    %2103 = vmatprep.subr.mxu0 0.0
    %2104 = vmatpush1.msra.mxu0 0.0
    %2105 = vmatprep.subr.mxu0 0.0
    %2106 = vmatpush1.msra.mxu0 0.0
    %2107 = vmatprep.subr.mxu0 0.0
    %2108 = vmatpush1.msra.mxu0 0.0
    %2109 = vmatprep.mubr.f32.mxu0 0.0
    %2110 = vmatmul.mubr.f32.gmra.mrb[0].mxu0 %v2035
    %v2111 = vpop.f32.mrb[0].mxu0
    %v2112 = vadd.f32 0.0, %v2111
    %v2113 = vpop.f32.mrb[0].mxu0
    %2114 = vmatprep.mubr.f32.mxu0 0.0
    %2115 = vmatmul.mubr.f32.gmra.mrb[0].mxu0 %v2038
    %v2116 = vpop.f32.mrb[0].mxu0
    %v2117 = vadd.f32 0.0, %v2116
    %v2118 = vpop.f32.mrb[0].mxu0
    %2119 = vmatprep.mubr.f32.mxu0 0.0
    %2120 = vmatmul.mubr.f32.gmra.mrb[0].mxu0 %v2041
    %v2121 = vpop.f32.mrb[0].mxu0
    %v2122 = vadd.f32 0.0, %v2121
    %v2123 = vpop.f32.mrb[0].mxu0
    %2124 = vdwg.mxu0
    %2125 = vrot.lane.b32.xlu0 %v1879, 120
    %v2126 = vpop.permute.xlu0 %2125
    %2127 = vrot.lane.b32.xlu0 %v1884, 120
    %v2128 = vpop.permute.xlu0 %2127
    %2129 = vrot.lane.b32.xlu0 %v1889, 120
    %v2130 = vpop.permute.xlu0 %2129
    %2131 = vrot.lane.b32.xlu0 %v1879, 88
    %v2132 = vpop.permute.xlu0 %2131
    %2133 = vrot.lane.b32.xlu0 %v1884, 88
    %v2134 = vpop.permute.xlu0 %2133
    %2135 = vrot.lane.b32.xlu0 %v1889, 88
    %v2136 = vpop.permute.xlu0 %2135
    %v2137 = vsel %vm378, %v2126, 0
    %v2139 = vsel %vm378, %v2128, 0
    %v2141 = vsel %vm378, %v2130, 0
    %v2143 = vsel %vm378, %v2132, 0
    %v2145 = vsel %vm378, %v2134, 0
    %v2147 = vsel %vm378, %v2136, 0
    %2149 = vmatprep.subr.mxu0 0.0
    %2150 = vmatpush1.xpose.msra.mxu0 %v2143
    %2151 = vmatprep.subr.mxu0 0.0
    %2152 = vmatpush1.xpose.msra.mxu0 %v2145
    %2153 = vmatprep.subr.mxu0 0.0
    %2154 = vmatpush1.xpose.msra.mxu0 %v2147
    %2155 = vmatprep.subr.mxu0 0.0
    %2156 = vmatpush1.xpose.msra.mxu0 0.0
    %2157 = vmatprep.subr.mxu0 0.0
    %2158 = vmatpush1.xpose.msra.mxu0 0.0
    %2159 = vmatprep.subr.mxu0 0.0
    %2160 = vmatpush1.xpose.msra.mxu0 0.0
    %2161 = vmatprep.subr.mxu0 0.0
    %2162 = vmatpush1.xpose.msra.mxu0 0.0
    %2163 = vmatprep.subr.mxu0 0.0
    %2164 = vmatpush1.xpose.msra.mxu0 0.0
    %2165 = vmatprep.subr.mxu0 0.0
    %2166 = vmatpush1.xpose.msra.mxu0 0.0
    %2167 = vmatprep.subr.mxu0 0.0
    %2168 = vmatpush1.xpose.msra.mxu0 0.0
    %2169 = vmatprep.subr.mxu0 0.0
    %2170 = vmatpush1.xpose.msra.mxu0 0.0
    %2171 = vmatprep.subr.mxu0 0.0
    %2172 = vmatpush1.xpose.msra.mxu0 0.0
    %2173 = vmatprep.subr.mxu0 0.0
    %2174 = vmatpush1.xpose.msra.mxu0 0.0
    %2175 = vmatprep.subr.mxu0 0.0
    %2176 = vmatpush1.xpose.msra.mxu0 0.0
    %2177 = vmatprep.subr.mxu0 0.0
    %2178 = vmatpush1.xpose.msra.mxu0 0.0
    %2179 = vmatprep.subr.mxu0 0.0
    %2180 = vmatpush1.xpose.msra.mxu0 0.0
    %2181 = vmatprep.subr.mxu0 0.0
    %2182 = vmatpush1.xpose.msra.mxu0 0.0
    %2183 = vmatprep.subr.mxu0 0.0
    %2184 = vmatpush1.xpose.msra.mxu0 0.0
    %2185 = vmatprep.subr.mxu0 0.0
    %2186 = vmatpush1.xpose.msra.mxu0 0.0
    %2187 = vmatprep.subr.mxu0 0.0
    %2188 = vmatpush1.xpose.msra.mxu0 0.0
    %2189 = vmatprep.subr.mxu0 0.0
    %2190 = vmatpush1.xpose.msra.mxu0 0.0
    %2191 = vmatprep.subr.mxu0 0.0
    %2192 = vmatpush1.xpose.msra.mxu0 0.0
    %2193 = vmatprep.subr.mxu0 0.0
    %2194 = vmatpush1.xpose.msra.mxu0 0.0
    %2195 = vmatprep.subr.mxu0 0.0
    %2196 = vmatpush1.xpose.msra.mxu0 0.0
    %2197 = vmatprep.subr.mxu0 0.0
    %2198 = vmatpush1.xpose.msra.mxu0 0.0
    %2199 = vmatprep.subr.mxu0 0.0
    %2200 = vmatpush1.xpose.msra.mxu0 0.0
    %2201 = vmatprep.subr.mxu0 0.0
    %2202 = vmatpush1.xpose.msra.mxu0 0.0
    %2203 = vmatprep.subr.mxu0 0.0
    %2204 = vmatpush1.xpose.msra.mxu0 0.0
    %2205 = vmatprep.subr.mxu0 0.0
    %2206 = vmatpush1.xpose.msra.mxu0 0.0
    %2207 = vmatprep.subr.mxu0 0.0
    %2208 = vmatpush1.xpose.msra.mxu0 0.0
    %2209 = vmatprep.subr.mxu0 0.0
    %2210 = vmatpush1.xpose.msra.mxu0 0.0
    %2211 = vmatprep.subr.mxu0 0.0
    %2212 = vmatpush1.xpose.msra.mxu0 0.0
    %2213 = vmatprep.mubr.f32.mxu0 0.0
    %2214 = vmatmul.mubr.f32.gmra.mrb[0].mxu0 %v2137
    %v2215 = vpop.f32.mrb[0].mxu0
    %v2216 = vadd.f32 %v79, %v2215
    %v2217 = vpop.f32.mrb[0].mxu0
    %2218 = vmatprep.mubr.f32.mxu0 0.0
    %2219 = vmatmul.mubr.f32.gmra.mrb[0].mxu0 %v2139
    %v2220 = vpop.f32.mrb[0].mxu0
    %v2221 = vadd.f32 %v80, %v2220
    %v2222 = vpop.f32.mrb[0].mxu0
    %2223 = vmatprep.mubr.f32.mxu0 0.0
    %2224 = vmatmul.mubr.f32.gmra.mrb[0].mxu0 %v2141
    %v2225 = vpop.f32.mrb[0].mxu0
    %v2226 = vadd.f32 %v81, %v2225
    %v2227 = vpop.f32.mrb[0].mxu0
    %2228 = vdwg.mxu0
    %v2229 = vsel %vm471, %v2216, -inf
    %2230 = vmax.xlane.f32.xlu0 %v2229
    %v2231 = vpop.xlane.xlu0 %2230
    %v2232 = vsel %vm471, %v2221, -inf
    %2233 = vmax.xlane.f32.xlu0 %v2232
    %v2234 = vpop.xlane.xlu0 %2233
    %v2235 = vsel %vm478, %v2226, -inf
    %2236 = vmax.xlane.f32.xlu0 %v2235
    %v2237 = vpop.xlane.xlu0 %2236
    %v2238 = vsub.f32 %v2216, %v2231
    %v2239 = vsub.f32 %v2221, %v2234
    %v2240 = vsub.f32 %v2226, %v2237
    %v2241 = vmul.f32 %v2238, 1.442695
    %v2242 = vpow.pop %v2241
    %v2243 = vmul.f32 %v2239, 1.442695
    %v2244 = vpow.pop %v2243
    %v2245 = vmul.f32 %v2240, 1.442695
    %v2246 = vpow.pop %v2245
    %v2247 = vsel %vm471, %v2242, 0.0
    %2248 = vadd.xlane.f32.xlu0 %v2247
    %v2249 = vpop.xlane.xlu0 %2248
    %v2250 = vsel %vm471, %v2244, 0.0
    %2251 = vadd.xlane.f32.xlu0 %v2250
    %v2252 = vpop.xlane.xlu0 %2251
    %v2253 = vsel %vm478, %v2246, 0.0
    %2254 = vadd.xlane.f32.xlu0 %v2253
    %v2255 = vpop.xlane.xlu0 %2254
    %v2256 = vrcp.pop %v2249
    %v2257 = vrcp.pop %v2252
    %v2258 = vrcp.pop %v2255
    %v2259 = vmul.f32 %v2242, %v2256
    %v2260 = vmul.f32 %v2244, %v2257
    %v2261 = vmul.f32 %v2246, %v2258
    %2262 = vrot.lane.b32.xlu0 %v1879, 56
    %v2263 = vpop.permute.xlu0 %2262
    %2264 = vrot.lane.b32.xlu0 %v1884, 56
    %v2265 = vpop.permute.xlu0 %2264
    %2266 = vrot.lane.b32.xlu0 %v1889, 56
    %v2267 = vpop.permute.xlu0 %2266
    %v2271 = vsel %vm471, %v2259, 0
    %v2274 = vsel %vm471, %v2260, 0
    %v2277 = vsel %vm471, %v2261, 0
    %v2279 = vsel %vm523, %v2267, 0
    %2281 = vmatprep.subr.mxu0 0.0
    %2282 = vmatpush1.msra.mxu0 %v2263
    %2283 = vmatprep.subr.mxu0 0.0
    %2284 = vmatpush1.msra.mxu0 %v2265
    %2285 = vmatprep.subr.mxu0 0.0
    %2286 = vmatpush1.msra.mxu0 %v2279
    %2287 = vmatprep.subr.mxu0 0.0
    %2288 = vmatpush1.msra.mxu0 0.0
    %2289 = vmatprep.subr.mxu0 0.0
    %2290 = vmatpush1.msra.mxu0 0.0
    %2291 = vmatprep.subr.mxu0 0.0
    %2292 = vmatpush1.msra.mxu0 0.0
    %2293 = vmatprep.subr.mxu0 0.0
    %2294 = vmatpush1.msra.mxu0 0.0
    %2295 = vmatprep.subr.mxu0 0.0
    %2296 = vmatpush1.msra.mxu0 0.0
    %2297 = vmatprep.subr.mxu0 0.0
    %2298 = vmatpush1.msra.mxu0 0.0
    %2299 = vmatprep.subr.mxu0 0.0
    %2300 = vmatpush1.msra.mxu0 0.0
    %2301 = vmatprep.subr.mxu0 0.0
    %2302 = vmatpush1.msra.mxu0 0.0
    %2303 = vmatprep.subr.mxu0 0.0
    %2304 = vmatpush1.msra.mxu0 0.0
    %2305 = vmatprep.subr.mxu0 0.0
    %2306 = vmatpush1.msra.mxu0 0.0
    %2307 = vmatprep.subr.mxu0 0.0
    %2308 = vmatpush1.msra.mxu0 0.0
    %2309 = vmatprep.subr.mxu0 0.0
    %2310 = vmatpush1.msra.mxu0 0.0
    %2311 = vmatprep.subr.mxu0 0.0
    %2312 = vmatpush1.msra.mxu0 0.0
    %2313 = vmatprep.subr.mxu0 0.0
    %2314 = vmatpush1.msra.mxu0 0.0
    %2315 = vmatprep.subr.mxu0 0.0
    %2316 = vmatpush1.msra.mxu0 0.0
    %2317 = vmatprep.subr.mxu0 0.0
    %2318 = vmatpush1.msra.mxu0 0.0
    %2319 = vmatprep.subr.mxu0 0.0
    %2320 = vmatpush1.msra.mxu0 0.0
    %2321 = vmatprep.subr.mxu0 0.0
    %2322 = vmatpush1.msra.mxu0 0.0
    %2323 = vmatprep.subr.mxu0 0.0
    %2324 = vmatpush1.msra.mxu0 0.0
    %2325 = vmatprep.subr.mxu0 0.0
    %2326 = vmatpush1.msra.mxu0 0.0
    %2327 = vmatprep.subr.mxu0 0.0
    %2328 = vmatpush1.msra.mxu0 0.0
    %2329 = vmatprep.subr.mxu0 0.0
    %2330 = vmatpush1.msra.mxu0 0.0
    %2331 = vmatprep.subr.mxu0 0.0
    %2332 = vmatpush1.msra.mxu0 0.0
    %2333 = vmatprep.subr.mxu0 0.0
    %2334 = vmatpush1.msra.mxu0 0.0
    %2335 = vmatprep.subr.mxu0 0.0
    %2336 = vmatpush1.msra.mxu0 0.0
    %2337 = vmatprep.subr.mxu0 0.0
    %2338 = vmatpush1.msra.mxu0 0.0
    %2339 = vmatprep.subr.mxu0 0.0
    %2340 = vmatpush1.msra.mxu0 0.0
    %2341 = vmatprep.subr.mxu0 0.0
    %2342 = vmatpush1.msra.mxu0 0.0
    %2343 = vmatprep.subr.mxu0 0.0
    %2344 = vmatpush1.msra.mxu0 0.0
    %2345 = vmatprep.mubr.f32.mxu0 0.0
    %2346 = vmatmul.mubr.f32.gmra.mrb[0].mxu0 %v2271
    %v2347 = vpop.f32.mrb[0].mxu0
    %v2348 = vadd.f32 0.0, %v2347
    %v2349 = vpop.f32.mrb[0].mxu0
    %2350 = vmatprep.mubr.f32.mxu0 0.0
    %2351 = vmatmul.mubr.f32.gmra.mrb[0].mxu0 %v2274
    %v2352 = vpop.f32.mrb[0].mxu0
    %v2353 = vadd.f32 0.0, %v2352
    %v2354 = vpop.f32.mrb[0].mxu0
    %2355 = vmatprep.mubr.f32.mxu0 0.0
    %2356 = vmatmul.mubr.f32.gmra.mrb[0].mxu0 %v2277
    %v2357 = vpop.f32.mrb[0].mxu0
    %v2358 = vadd.f32 0.0, %v2357
    %v2359 = vpop.f32.mrb[0].mxu0
    %2360 = vdwg.mxu0
    %2361 = vrot.lane.b32.xlu0 %v1879, 112
    %v2362 = vpop.permute.xlu0 %2361
    %2363 = vrot.lane.b32.xlu0 %v1884, 112
    %v2364 = vpop.permute.xlu0 %2363
    %2365 = vrot.lane.b32.xlu0 %v1889, 112
    %v2366 = vpop.permute.xlu0 %2365
    %2367 = vrot.lane.b32.xlu0 %v1879, 80
    %v2368 = vpop.permute.xlu0 %2367
    %2369 = vrot.lane.b32.xlu0 %v1884, 80
    %v2370 = vpop.permute.xlu0 %2369
    %2371 = vrot.lane.b32.xlu0 %v1889, 80
    %v2372 = vpop.permute.xlu0 %2371
    %v2373 = vsel %vm378, %v2362, 0
    %v2375 = vsel %vm378, %v2364, 0
    %v2377 = vsel %vm378, %v2366, 0
    %v2379 = vsel %vm378, %v2368, 0
    %v2381 = vsel %vm378, %v2370, 0
    %v2383 = vsel %vm378, %v2372, 0
    %2385 = vmatprep.subr.mxu0 0.0
    %2386 = vmatpush1.xpose.msra.mxu0 %v2379
    %2387 = vmatprep.subr.mxu0 0.0
    %2388 = vmatpush1.xpose.msra.mxu0 %v2381
    %2389 = vmatprep.subr.mxu0 0.0
    %2390 = vmatpush1.xpose.msra.mxu0 %v2383
    %2391 = vmatprep.subr.mxu0 0.0
    %2392 = vmatpush1.xpose.msra.mxu0 0.0
    %2393 = vmatprep.subr.mxu0 0.0
    %2394 = vmatpush1.xpose.msra.mxu0 0.0
    %2395 = vmatprep.subr.mxu0 0.0
    %2396 = vmatpush1.xpose.msra.mxu0 0.0
    %2397 = vmatprep.subr.mxu0 0.0
    %2398 = vmatpush1.xpose.msra.mxu0 0.0
    %2399 = vmatprep.subr.mxu0 0.0
    %2400 = vmatpush1.xpose.msra.mxu0 0.0
    %2401 = vmatprep.subr.mxu0 0.0
    %2402 = vmatpush1.xpose.msra.mxu0 0.0
    %2403 = vmatprep.subr.mxu0 0.0
    %2404 = vmatpush1.xpose.msra.mxu0 0.0
    %2405 = vmatprep.subr.mxu0 0.0
    %2406 = vmatpush1.xpose.msra.mxu0 0.0
    %2407 = vmatprep.subr.mxu0 0.0
    %2408 = vmatpush1.xpose.msra.mxu0 0.0
    %2409 = vmatprep.subr.mxu0 0.0
    %2410 = vmatpush1.xpose.msra.mxu0 0.0
    %2411 = vmatprep.subr.mxu0 0.0
    %2412 = vmatpush1.xpose.msra.mxu0 0.0
    %2413 = vmatprep.subr.mxu0 0.0
    %2414 = vmatpush1.xpose.msra.mxu0 0.0
    %2415 = vmatprep.subr.mxu0 0.0
    %2416 = vmatpush1.xpose.msra.mxu0 0.0
    %2417 = vmatprep.subr.mxu0 0.0
    %2418 = vmatpush1.xpose.msra.mxu0 0.0
    %2419 = vmatprep.subr.mxu0 0.0
    %2420 = vmatpush1.xpose.msra.mxu0 0.0
    %2421 = vmatprep.subr.mxu0 0.0
    %2422 = vmatpush1.xpose.msra.mxu0 0.0
    %2423 = vmatprep.subr.mxu0 0.0
    %2424 = vmatpush1.xpose.msra.mxu0 0.0
    %2425 = vmatprep.subr.mxu0 0.0
    %2426 = vmatpush1.xpose.msra.mxu0 0.0
    %2427 = vmatprep.subr.mxu0 0.0
    %2428 = vmatpush1.xpose.msra.mxu0 0.0
    %2429 = vmatprep.subr.mxu0 0.0
    %2430 = vmatpush1.xpose.msra.mxu0 0.0
    %2431 = vmatprep.subr.mxu0 0.0
    %2432 = vmatpush1.xpose.msra.mxu0 0.0
    %2433 = vmatprep.subr.mxu0 0.0
    %2434 = vmatpush1.xpose.msra.mxu0 0.0
    %2435 = vmatprep.subr.mxu0 0.0
    %2436 = vmatpush1.xpose.msra.mxu0 0.0
    %2437 = vmatprep.subr.mxu0 0.0
    %2438 = vmatpush1.xpose.msra.mxu0 0.0
    %2439 = vmatprep.subr.mxu0 0.0
    %2440 = vmatpush1.xpose.msra.mxu0 0.0
    %2441 = vmatprep.subr.mxu0 0.0
    %2442 = vmatpush1.xpose.msra.mxu0 0.0
    %2443 = vmatprep.subr.mxu0 0.0
    %2444 = vmatpush1.xpose.msra.mxu0 0.0
    %2445 = vmatprep.subr.mxu0 0.0
    %2446 = vmatpush1.xpose.msra.mxu0 0.0
    %2447 = vmatprep.subr.mxu0 0.0
    %2448 = vmatpush1.xpose.msra.mxu0 0.0
    %2449 = vmatprep.mubr.f32.mxu0 0.0
    %2450 = vmatmul.mubr.f32.gmra.mrb[0].mxu0 %v2373
    %v2451 = vpop.f32.mrb[0].mxu0
    %v2452 = vadd.f32 %v79, %v2451
    %v2453 = vpop.f32.mrb[0].mxu0
    %2454 = vmatprep.mubr.f32.mxu0 0.0
    %2455 = vmatmul.mubr.f32.gmra.mrb[0].mxu0 %v2375
    %v2456 = vpop.f32.mrb[0].mxu0
    %v2457 = vadd.f32 %v80, %v2456
    %v2458 = vpop.f32.mrb[0].mxu0
    %2459 = vmatprep.mubr.f32.mxu0 0.0
    %2460 = vmatmul.mubr.f32.gmra.mrb[0].mxu0 %v2377
    %v2461 = vpop.f32.mrb[0].mxu0
    %v2462 = vadd.f32 %v81, %v2461
    %v2463 = vpop.f32.mrb[0].mxu0
    %2464 = vdwg.mxu0
    %v2465 = vsel %vm471, %v2452, -inf
    %2466 = vmax.xlane.f32.xlu0 %v2465
    %v2467 = vpop.xlane.xlu0 %2466
    %v2468 = vsel %vm471, %v2457, -inf
    %2469 = vmax.xlane.f32.xlu0 %v2468
    %v2470 = vpop.xlane.xlu0 %2469
    %v2471 = vsel %vm478, %v2462, -inf
    %2472 = vmax.xlane.f32.xlu0 %v2471
    %v2473 = vpop.xlane.xlu0 %2472
    %v2474 = vsub.f32 %v2452, %v2467
    %v2475 = vsub.f32 %v2457, %v2470
    %v2476 = vsub.f32 %v2462, %v2473
    %v2477 = vmul.f32 %v2474, 1.442695
    %v2478 = vpow.pop %v2477
    %v2479 = vmul.f32 %v2475, 1.442695
    %v2480 = vpow.pop %v2479
    %v2481 = vmul.f32 %v2476, 1.442695
    %v2482 = vpow.pop %v2481
    %v2483 = vsel %vm471, %v2478, 0.0
    %2484 = vadd.xlane.f32.xlu0 %v2483
    %v2485 = vpop.xlane.xlu0 %2484
    %v2486 = vsel %vm471, %v2480, 0.0
    %2487 = vadd.xlane.f32.xlu0 %v2486
    %v2488 = vpop.xlane.xlu0 %2487
    %v2489 = vsel %vm478, %v2482, 0.0
    %2490 = vadd.xlane.f32.xlu0 %v2489
    %v2491 = vpop.xlane.xlu0 %2490
    %v2492 = vrcp.pop %v2485
    %v2493 = vrcp.pop %v2488
    %v2494 = vrcp.pop %v2491
    %v2495 = vmul.f32 %v2478, %v2492
    %v2496 = vmul.f32 %v2480, %v2493
    %v2497 = vmul.f32 %v2482, %v2494
    %2498 = vrot.lane.b32.xlu0 %v1879, 48
    %v2499 = vpop.permute.xlu0 %2498
    %2500 = vrot.lane.b32.xlu0 %v1884, 48
    %v2501 = vpop.permute.xlu0 %2500
    %2502 = vrot.lane.b32.xlu0 %v1889, 48
    %v2503 = vpop.permute.xlu0 %2502
    %v2507 = vsel %vm471, %v2495, 0
    %v2510 = vsel %vm471, %v2496, 0
    %v2513 = vsel %vm471, %v2497, 0
    %v2515 = vsel %vm523, %v2503, 0
    %2517 = vmatprep.subr.mxu0 0.0
    %2518 = vmatpush1.msra.mxu0 %v2499
    %2519 = vmatprep.subr.mxu0 0.0
    %2520 = vmatpush1.msra.mxu0 %v2501
    %2521 = vmatprep.subr.mxu0 0.0
    %2522 = vmatpush1.msra.mxu0 %v2515
    %2523 = vmatprep.subr.mxu0 0.0
    %2524 = vmatpush1.msra.mxu0 0.0
    %2525 = vmatprep.subr.mxu0 0.0
    %2526 = vmatpush1.msra.mxu0 0.0
    %2527 = vmatprep.subr.mxu0 0.0
    %2528 = vmatpush1.msra.mxu0 0.0
    %2529 = vmatprep.subr.mxu0 0.0
    %2530 = vmatpush1.msra.mxu0 0.0
    %2531 = vmatprep.subr.mxu0 0.0
    %2532 = vmatpush1.msra.mxu0 0.0
    %2533 = vmatprep.subr.mxu0 0.0
    %2534 = vmatpush1.msra.mxu0 0.0
    %2535 = vmatprep.subr.mxu0 0.0
    %2536 = vmatpush1.msra.mxu0 0.0
    %2537 = vmatprep.subr.mxu0 0.0
    %2538 = vmatpush1.msra.mxu0 0.0
    %2539 = vmatprep.subr.mxu0 0.0
    %2540 = vmatpush1.msra.mxu0 0.0
    %2541 = vmatprep.subr.mxu0 0.0
    %2542 = vmatpush1.msra.mxu0 0.0
    %2543 = vmatprep.subr.mxu0 0.0
    %2544 = vmatpush1.msra.mxu0 0.0
    %2545 = vmatprep.subr.mxu0 0.0
    %2546 = vmatpush1.msra.mxu0 0.0
    %2547 = vmatprep.subr.mxu0 0.0
    %2548 = vmatpush1.msra.mxu0 0.0
    %2549 = vmatprep.subr.mxu0 0.0
    %2550 = vmatpush1.msra.mxu0 0.0
    %2551 = vmatprep.subr.mxu0 0.0
    %2552 = vmatpush1.msra.mxu0 0.0
    %2553 = vmatprep.subr.mxu0 0.0
    %2554 = vmatpush1.msra.mxu0 0.0
    %2555 = vmatprep.subr.mxu0 0.0
    %2556 = vmatpush1.msra.mxu0 0.0
    %2557 = vmatprep.subr.mxu0 0.0
    %2558 = vmatpush1.msra.mxu0 0.0
    %2559 = vmatprep.subr.mxu0 0.0
    %2560 = vmatpush1.msra.mxu0 0.0
    %2561 = vmatprep.subr.mxu0 0.0
    %2562 = vmatpush1.msra.mxu0 0.0
    %2563 = vmatprep.subr.mxu0 0.0
    %2564 = vmatpush1.msra.mxu0 0.0
    %2565 = vmatprep.subr.mxu0 0.0
    %2566 = vmatpush1.msra.mxu0 0.0
    %2567 = vmatprep.subr.mxu0 0.0
    %2568 = vmatpush1.msra.mxu0 0.0
    %2569 = vmatprep.subr.mxu0 0.0
    %2570 = vmatpush1.msra.mxu0 0.0
    %2571 = vmatprep.subr.mxu0 0.0
    %2572 = vmatpush1.msra.mxu0 0.0
    %2573 = vmatprep.subr.mxu0 0.0
    %2574 = vmatpush1.msra.mxu0 0.0
    %2575 = vmatprep.subr.mxu0 0.0
    %2576 = vmatpush1.msra.mxu0 0.0
    %2577 = vmatprep.subr.mxu0 0.0
    %2578 = vmatpush1.msra.mxu0 0.0
    %2579 = vmatprep.subr.mxu0 0.0
    %2580 = vmatpush1.msra.mxu0 0.0
    %2581 = vmatprep.mubr.f32.mxu0 0.0
    %2582 = vmatmul.mubr.f32.gmra.mrb[0].mxu0 %v2507
    %v2583 = vpop.f32.mrb[0].mxu0
    %v2584 = vadd.f32 0.0, %v2583
    %v2585 = vpop.f32.mrb[0].mxu0
    %2586 = vmatprep.mubr.f32.mxu0 0.0
    %2587 = vmatmul.mubr.f32.gmra.mrb[0].mxu0 %v2510
    %v2588 = vpop.f32.mrb[0].mxu0
    %v2589 = vadd.f32 0.0, %v2588
    %v2590 = vpop.f32.mrb[0].mxu0
    %2591 = vmatprep.mubr.f32.mxu0 0.0
    %2592 = vmatmul.mubr.f32.gmra.mrb[0].mxu0 %v2513
    %v2593 = vpop.f32.mrb[0].mxu0
    %v2594 = vadd.f32 0.0, %v2593
    %v2595 = vpop.f32.mrb[0].mxu0
    %2596 = vdwg.mxu0
    %2597 = vrot.lane.b32.xlu0 %v1879, 104
    %v2598 = vpop.permute.xlu0 %2597
    %2599 = vrot.lane.b32.xlu0 %v1884, 104
    %v2600 = vpop.permute.xlu0 %2599
    %2601 = vrot.lane.b32.xlu0 %v1889, 104
    %v2602 = vpop.permute.xlu0 %2601
    %2603 = vrot.lane.b32.xlu0 %v1879, 72
    %v2604 = vpop.permute.xlu0 %2603
    %2605 = vrot.lane.b32.xlu0 %v1884, 72
    %v2606 = vpop.permute.xlu0 %2605
    %2607 = vrot.lane.b32.xlu0 %v1889, 72
    %v2608 = vpop.permute.xlu0 %2607
    %v2609 = vsel %vm378, %v2598, 0
    %v2611 = vsel %vm378, %v2600, 0
    %v2613 = vsel %vm378, %v2602, 0
    %v2615 = vsel %vm378, %v2604, 0
    %v2617 = vsel %vm378, %v2606, 0
    %v2619 = vsel %vm378, %v2608, 0
    %2621 = vmatprep.subr.mxu0 0.0
    %2622 = vmatpush1.xpose.msra.mxu0 %v2615
    %2623 = vmatprep.subr.mxu0 0.0
    %2624 = vmatpush1.xpose.msra.mxu0 %v2617
    %2625 = vmatprep.subr.mxu0 0.0
    %2626 = vmatpush1.xpose.msra.mxu0 %v2619
    %2627 = vmatprep.subr.mxu0 0.0
    %2628 = vmatpush1.xpose.msra.mxu0 0.0
    %2629 = vmatprep.subr.mxu0 0.0
    %2630 = vmatpush1.xpose.msra.mxu0 0.0
    %2631 = vmatprep.subr.mxu0 0.0
    %2632 = vmatpush1.xpose.msra.mxu0 0.0
    %2633 = vmatprep.subr.mxu0 0.0
    %2634 = vmatpush1.xpose.msra.mxu0 0.0
    %2635 = vmatprep.subr.mxu0 0.0
    %2636 = vmatpush1.xpose.msra.mxu0 0.0
    %2637 = vmatprep.subr.mxu0 0.0
    %2638 = vmatpush1.xpose.msra.mxu0 0.0
    %2639 = vmatprep.subr.mxu0 0.0
    %2640 = vmatpush1.xpose.msra.mxu0 0.0
    %2641 = vmatprep.subr.mxu0 0.0
    %2642 = vmatpush1.xpose.msra.mxu0 0.0
    %2643 = vmatprep.subr.mxu0 0.0
    %2644 = vmatpush1.xpose.msra.mxu0 0.0
    %2645 = vmatprep.subr.mxu0 0.0
    %2646 = vmatpush1.xpose.msra.mxu0 0.0
    %2647 = vmatprep.subr.mxu0 0.0
    %2648 = vmatpush1.xpose.msra.mxu0 0.0
    %2649 = vmatprep.subr.mxu0 0.0
    %2650 = vmatpush1.xpose.msra.mxu0 0.0
    %2651 = vmatprep.subr.mxu0 0.0
    %2652 = vmatpush1.xpose.msra.mxu0 0.0
    %2653 = vmatprep.subr.mxu0 0.0
    %2654 = vmatpush1.xpose.msra.mxu0 0.0
    %2655 = vmatprep.subr.mxu0 0.0
    %2656 = vmatpush1.xpose.msra.mxu0 0.0
    %2657 = vmatprep.subr.mxu0 0.0
    %2658 = vmatpush1.xpose.msra.mxu0 0.0
    %2659 = vmatprep.subr.mxu0 0.0
    %2660 = vmatpush1.xpose.msra.mxu0 0.0
    %2661 = vmatprep.subr.mxu0 0.0
    %2662 = vmatpush1.xpose.msra.mxu0 0.0
    %2663 = vmatprep.subr.mxu0 0.0
    %2664 = vmatpush1.xpose.msra.mxu0 0.0
    %2665 = vmatprep.subr.mxu0 0.0
    %2666 = vmatpush1.xpose.msra.mxu0 0.0
    %2667 = vmatprep.subr.mxu0 0.0
    %2668 = vmatpush1.xpose.msra.mxu0 0.0
    %2669 = vmatprep.subr.mxu0 0.0
    %2670 = vmatpush1.xpose.msra.mxu0 0.0
    %2671 = vmatprep.subr.mxu0 0.0
    %2672 = vmatpush1.xpose.msra.mxu0 0.0
    %2673 = vmatprep.subr.mxu0 0.0
    %2674 = vmatpush1.xpose.msra.mxu0 0.0
    %2675 = vmatprep.subr.mxu0 0.0
    %2676 = vmatpush1.xpose.msra.mxu0 0.0
    %2677 = vmatprep.subr.mxu0 0.0
    %2678 = vmatpush1.xpose.msra.mxu0 0.0
    %2679 = vmatprep.subr.mxu0 0.0
    %2680 = vmatpush1.xpose.msra.mxu0 0.0
    %2681 = vmatprep.subr.mxu0 0.0
    %2682 = vmatpush1.xpose.msra.mxu0 0.0
    %2683 = vmatprep.subr.mxu0 0.0
    %2684 = vmatpush1.xpose.msra.mxu0 0.0
    %2685 = vmatprep.mubr.f32.mxu0 0.0
    %2686 = vmatmul.mubr.f32.gmra.mrb[0].mxu0 %v2609
    %v2687 = vpop.f32.mrb[0].mxu0
    %v2688 = vadd.f32 %v79, %v2687
    %v2689 = vpop.f32.mrb[0].mxu0
    %2690 = vmatprep.mubr.f32.mxu0 0.0
    %2691 = vmatmul.mubr.f32.gmra.mrb[0].mxu0 %v2611
    %v2692 = vpop.f32.mrb[0].mxu0
    %v2693 = vadd.f32 %v80, %v2692
    %v2694 = vpop.f32.mrb[0].mxu0
    %2695 = vmatprep.mubr.f32.mxu0 0.0
    %2696 = vmatmul.mubr.f32.gmra.mrb[0].mxu0 %v2613
    %v2697 = vpop.f32.mrb[0].mxu0
    %v2698 = vadd.f32 %v81, %v2697
    %v2699 = vpop.f32.mrb[0].mxu0
    %2700 = vdwg.mxu0
    %v2701 = vsel %vm471, %v2688, -inf
    %2702 = vmax.xlane.f32.xlu0 %v2701
    %v2703 = vpop.xlane.xlu0 %2702
    %v2704 = vsel %vm471, %v2693, -inf
    %2705 = vmax.xlane.f32.xlu0 %v2704
    %v2706 = vpop.xlane.xlu0 %2705
    %v2707 = vsel %vm478, %v2698, -inf
    %2708 = vmax.xlane.f32.xlu0 %v2707
    %v2709 = vpop.xlane.xlu0 %2708
    %v2710 = vsub.f32 %v2688, %v2703
    %v2711 = vsub.f32 %v2693, %v2706
    %v2712 = vsub.f32 %v2698, %v2709
    %v2713 = vmul.f32 %v2710, 1.442695
    %v2714 = vpow.pop %v2713
    %v2715 = vmul.f32 %v2711, 1.442695
    %v2716 = vpow.pop %v2715
    %v2717 = vmul.f32 %v2712, 1.442695
    %v2718 = vpow.pop %v2717
    %v2719 = vsel %vm471, %v2714, 0.0
    %2720 = vadd.xlane.f32.xlu0 %v2719
    %v2721 = vpop.xlane.xlu0 %2720
    %v2722 = vsel %vm471, %v2716, 0.0
    %2723 = vadd.xlane.f32.xlu0 %v2722
    %v2724 = vpop.xlane.xlu0 %2723
    %v2725 = vsel %vm478, %v2718, 0.0
    %2726 = vadd.xlane.f32.xlu0 %v2725
    %v2727 = vpop.xlane.xlu0 %2726
    %v2728 = vrcp.pop %v2721
    %v2729 = vrcp.pop %v2724
    %v2730 = vrcp.pop %v2727
    %v2731 = vmul.f32 %v2714, %v2728
    %v2732 = vmul.f32 %v2716, %v2729
    %v2733 = vmul.f32 %v2718, %v2730
    %2734 = vrot.lane.b32.xlu0 %v1879, 40
    %v2735 = vpop.permute.xlu0 %2734
    %2736 = vrot.lane.b32.xlu0 %v1884, 40
    %v2737 = vpop.permute.xlu0 %2736
    %2738 = vrot.lane.b32.xlu0 %v1889, 40
    %v2739 = vpop.permute.xlu0 %2738
    %v2743 = vsel %vm471, %v2731, 0
    %v2746 = vsel %vm471, %v2732, 0
    %v2749 = vsel %vm471, %v2733, 0
    %v2751 = vsel %vm523, %v2739, 0
    %2753 = vmatprep.subr.mxu0 0.0
    %2754 = vmatpush1.msra.mxu0 %v2735
    %2755 = vmatprep.subr.mxu0 0.0
    %2756 = vmatpush1.msra.mxu0 %v2737
    %2757 = vmatprep.subr.mxu0 0.0
    %2758 = vmatpush1.msra.mxu0 %v2751
    %2759 = vmatprep.subr.mxu0 0.0
    %2760 = vmatpush1.msra.mxu0 0.0
    %2761 = vmatprep.subr.mxu0 0.0
    %2762 = vmatpush1.msra.mxu0 0.0
    %2763 = vmatprep.subr.mxu0 0.0
    %2764 = vmatpush1.msra.mxu0 0.0
    %2765 = vmatprep.subr.mxu0 0.0
    %2766 = vmatpush1.msra.mxu0 0.0
    %2767 = vmatprep.subr.mxu0 0.0
    %2768 = vmatpush1.msra.mxu0 0.0
    %2769 = vmatprep.subr.mxu0 0.0
    %2770 = vmatpush1.msra.mxu0 0.0
    %2771 = vmatprep.subr.mxu0 0.0
    %2772 = vmatpush1.msra.mxu0 0.0
    %2773 = vmatprep.subr.mxu0 0.0
    %2774 = vmatpush1.msra.mxu0 0.0
    %2775 = vmatprep.subr.mxu0 0.0
    %2776 = vmatpush1.msra.mxu0 0.0
    %2777 = vmatprep.subr.mxu0 0.0
    %2778 = vmatpush1.msra.mxu0 0.0
    %2779 = vmatprep.subr.mxu0 0.0
    %2780 = vmatpush1.msra.mxu0 0.0
    %2781 = vmatprep.subr.mxu0 0.0
    %2782 = vmatpush1.msra.mxu0 0.0
    %2783 = vmatprep.subr.mxu0 0.0
    %2784 = vmatpush1.msra.mxu0 0.0
    %2785 = vmatprep.subr.mxu0 0.0
    %2786 = vmatpush1.msra.mxu0 0.0
    %2787 = vmatprep.subr.mxu0 0.0
    %2788 = vmatpush1.msra.mxu0 0.0
    %2789 = vmatprep.subr.mxu0 0.0
    %2790 = vmatpush1.msra.mxu0 0.0
    %2791 = vmatprep.subr.mxu0 0.0
    %2792 = vmatpush1.msra.mxu0 0.0
    %2793 = vmatprep.subr.mxu0 0.0
    %2794 = vmatpush1.msra.mxu0 0.0
    %2795 = vmatprep.subr.mxu0 0.0
    %2796 = vmatpush1.msra.mxu0 0.0
    %2797 = vmatprep.subr.mxu0 0.0
    %2798 = vmatpush1.msra.mxu0 0.0
    %2799 = vmatprep.subr.mxu0 0.0
    %2800 = vmatpush1.msra.mxu0 0.0
    %2801 = vmatprep.subr.mxu0 0.0
    %2802 = vmatpush1.msra.mxu0 0.0
    %2803 = vmatprep.subr.mxu0 0.0
    %2804 = vmatpush1.msra.mxu0 0.0
    %2805 = vmatprep.subr.mxu0 0.0
    %2806 = vmatpush1.msra.mxu0 0.0
    %2807 = vmatprep.subr.mxu0 0.0
    %2808 = vmatpush1.msra.mxu0 0.0
    %2809 = vmatprep.subr.mxu0 0.0
    %2810 = vmatpush1.msra.mxu0 0.0
    %2811 = vmatprep.subr.mxu0 0.0
    %2812 = vmatpush1.msra.mxu0 0.0
    %2813 = vmatprep.subr.mxu0 0.0
    %2814 = vmatpush1.msra.mxu0 0.0
    %2815 = vmatprep.subr.mxu0 0.0
    %2816 = vmatpush1.msra.mxu0 0.0
    %2817 = vmatprep.mubr.f32.mxu0 0.0
    %2818 = vmatmul.mubr.f32.gmra.mrb[0].mxu0 %v2743
    %v2819 = vpop.f32.mrb[0].mxu0
    %v2820 = vadd.f32 0.0, %v2819
    %v2821 = vpop.f32.mrb[0].mxu0
    %2822 = vmatprep.mubr.f32.mxu0 0.0
    %2823 = vmatmul.mubr.f32.gmra.mrb[0].mxu0 %v2746
    %v2824 = vpop.f32.mrb[0].mxu0
    %v2825 = vadd.f32 0.0, %v2824
    %v2826 = vpop.f32.mrb[0].mxu0
    %2827 = vmatprep.mubr.f32.mxu0 0.0
    %2828 = vmatmul.mubr.f32.gmra.mrb[0].mxu0 %v2749
    %v2829 = vpop.f32.mrb[0].mxu0
    %v2830 = vadd.f32 0.0, %v2829
    %v2831 = vpop.f32.mrb[0].mxu0
    %2832 = vdwg.mxu0
    %2836 = vrot.lane.b32.xlu0 %v2348, 8
    %v2837 = vpop.permute.xlu0 %2836
    %2838 = vrot.lane.b32.xlu0 %v2353, 8
    %v2839 = vpop.permute.xlu0 %2838
    %2840 = vrot.lane.b32.xlu0 %v2358, 8
    %v2841 = vpop.permute.xlu0 %2840
    %2848 = vrot.lane.b32.xlu0 %v2584, 16
    %v2849 = vpop.permute.xlu0 %2848
    %2850 = vrot.lane.b32.xlu0 %v2589, 16
    %v2851 = vpop.permute.xlu0 %2850
    %2852 = vrot.lane.b32.xlu0 %v2594, 16
    %v2853 = vpop.permute.xlu0 %2852
    %2860 = vrot.lane.b32.xlu0 %v2820, 24
    %v2861 = vpop.permute.xlu0 %2860
    %2862 = vrot.lane.b32.xlu0 %v2825, 24
    %v2863 = vpop.permute.xlu0 %2862
    %2864 = vrot.lane.b32.xlu0 %v2830, 24
    %v2865 = vpop.permute.xlu0 %2864
    %v2869 = vsel %vm378, %v2112, %v2837
    %v2870 = vsel %vm378, %v2117, %v2839
    %v2871 = vsel %vm378, %v2122, %v2841
    %v2872 = vsel %vm1353, %v2869, %v2849
    %v2873 = vsel %vm1353, %v2870, %v2851
    %v2874 = vsel %vm1353, %v2871, %v2853
    %v2875 = vsel %vm1357, %v2872, %v2861
    %v2876 = vsel %vm1357, %v2873, %v2863
    %v2877 = vsel %vm1357, %v2874, %v2865
    %v2879 = vsel %vm220, %v2875, 0
    %v2882 = vsel %vm220, %v2876, 0
    %v2885 = vsel %vm220, %v2877, 0
    %2887 = vmatprep.subr.mxu0 0.0
    %2888 = vmatpush1.msra.mxu0 %v1726
    %2889 = vmatprep.subr.mxu0 0.0
    %2890 = vmatpush1.msra.mxu0 %v1727
    %2891 = vmatprep.subr.mxu0 0.0
    %2892 = vmatpush1.msra.mxu0 %v1728
    %2893 = vmatprep.subr.mxu0 0.0
    %2894 = vmatpush1.msra.mxu0 %v1729
    %2895 = vmatprep.subr.mxu0 0.0
    %2896 = vmatpush1.msra.mxu0 0.0
    %2897 = vmatprep.subr.mxu0 0.0
    %2898 = vmatpush1.msra.mxu0 0.0
    %2899 = vmatprep.subr.mxu0 0.0
    %2900 = vmatpush1.msra.mxu0 0.0
    %2901 = vmatprep.subr.mxu0 0.0
    %2902 = vmatpush1.msra.mxu0 0.0
    %2903 = vmatprep.subr.mxu0 0.0
    %2904 = vmatpush1.msra.mxu0 0.0
    %2905 = vmatprep.subr.mxu0 0.0
    %2906 = vmatpush1.msra.mxu0 0.0
    %2907 = vmatprep.subr.mxu0 0.0
    %2908 = vmatpush1.msra.mxu0 0.0
    %2909 = vmatprep.subr.mxu0 0.0
    %2910 = vmatpush1.msra.mxu0 0.0
    %2911 = vmatprep.subr.mxu0 0.0
    %2912 = vmatpush1.msra.mxu0 0.0
    %2913 = vmatprep.subr.mxu0 0.0
    %2914 = vmatpush1.msra.mxu0 0.0
    %2915 = vmatprep.subr.mxu0 0.0
    %2916 = vmatpush1.msra.mxu0 0.0
    %2917 = vmatprep.subr.mxu0 0.0
    %2918 = vmatpush1.msra.mxu0 0.0
    %2919 = vmatprep.subr.mxu0 0.0
    %2920 = vmatpush1.msra.mxu0 0.0
    %2921 = vmatprep.subr.mxu0 0.0
    %2922 = vmatpush1.msra.mxu0 0.0
    %2923 = vmatprep.subr.mxu0 0.0
    %2924 = vmatpush1.msra.mxu0 0.0
    %2925 = vmatprep.subr.mxu0 0.0
    %2926 = vmatpush1.msra.mxu0 0.0
    %2927 = vmatprep.subr.mxu0 0.0
    %2928 = vmatpush1.msra.mxu0 0.0
    %2929 = vmatprep.subr.mxu0 0.0
    %2930 = vmatpush1.msra.mxu0 0.0
    %2931 = vmatprep.subr.mxu0 0.0
    %2932 = vmatpush1.msra.mxu0 0.0
    %2933 = vmatprep.subr.mxu0 0.0
    %2934 = vmatpush1.msra.mxu0 0.0
    %2935 = vmatprep.subr.mxu0 0.0
    %2936 = vmatpush1.msra.mxu0 0.0
    %2937 = vmatprep.subr.mxu0 0.0
    %2938 = vmatpush1.msra.mxu0 0.0
    %2939 = vmatprep.subr.mxu0 0.0
    %2940 = vmatpush1.msra.mxu0 0.0
    %2941 = vmatprep.subr.mxu0 0.0
    %2942 = vmatpush1.msra.mxu0 0.0
    %2943 = vmatprep.subr.mxu0 0.0
    %2944 = vmatpush1.msra.mxu0 0.0
    %2945 = vmatprep.subr.mxu0 0.0
    %2946 = vmatpush1.msra.mxu0 0.0
    %2947 = vmatprep.subr.mxu0 0.0
    %2948 = vmatpush1.msra.mxu0 0.0
    %2949 = vmatprep.subr.mxu0 0.0
    %2950 = vmatpush1.msra.mxu0 0.0
    %2951 = vmatprep.mubr.f32.mxu0 0.0
    %2952 = vmatmul.mubr.f32.gmra.mrb[0].mxu0 %v2879
    %v2953 = vpop.f32.mrb[0].mxu0
    %v2954 = vadd.f32 0.0, %v2953
    %v2955 = vpop.f32.mrb[0].mxu0
    %2956 = vmatprep.mubr.f32.mxu0 0.0
    %2957 = vmatmul.mubr.f32.gmra.mrb[0].mxu0 %v2882
    %v2958 = vpop.f32.mrb[0].mxu0
    %v2959 = vadd.f32 0.0, %v2958
    %v2960 = vpop.f32.mrb[0].mxu0
    %2961 = vmatprep.mubr.f32.mxu0 0.0
    %2962 = vmatmul.mubr.f32.gmra.mrb[0].mxu0 %v2885
    %v2963 = vpop.f32.mrb[0].mxu0
    %v2964 = vadd.f32 0.0, %v2963
    %v2965 = vpop.f32.mrb[0].mxu0
    %2966 = vdwg.mxu0
    %v2967 = vadd.f32 %v1718, %v2954
    %v2968 = vadd.f32 %v1719, %v2959
    %v2969 = vadd.f32 %v1720, %v2964
    %v2970 = vlaneseq
    %v2971 = vshrl.u32 %v2970, 7
    %v2972 = vsub.s32 0, %v2971
    %v2973 = vrot.slane %v1744, %v2972
    %v2974 = vadd.f32 %v2967, %v2973
    %v2975 = vadd.f32 %v2968, %v2973
    %v2976 = vadd.f32 %v2969, %v2973
    %v2977 = vsel %vm220, %v2974, 0.0
    %2978 = vadd.xlane.f32.xlu0 %v2977
    %v2979 = vpop.xlane.xlu0 %2978
    %v2980 = vsel %vm220, %v2975, 0.0
    %2981 = vadd.xlane.f32.xlu0 %v2980
    %v2982 = vpop.xlane.xlu0 %2981
    %v2983 = vsel %vm227, %v2976, 0.0
    %2984 = vadd.xlane.f32.xlu0 %v2983
    %v2985 = vpop.xlane.xlu0 %2984
    %v2986 = vmul.f32 %v2979, %v231
    %v2987 = vmul.f32 %v2982, %v231
    %v2988 = vmul.f32 %v2985, %v231
    %v2989 = vsub.f32 %v2974, %v2986
    %v2990 = vsub.f32 %v2975, %v2987
    %v2991 = vsub.f32 %v2976, %v2988
    %v2992 = vmul.f32 %v2989, %v2989
    %v2993 = vmul.f32 %v2990, %v2990
    %v2994 = vmul.f32 %v2991, %v2991
    %v2995 = vsel %vm220, %v2992, 0.0
    %2996 = vadd.xlane.f32.xlu0 %v2995
    %v2997 = vpop.xlane.xlu0 %2996
    %v2998 = vsel %vm220, %v2993, 0.0
    %2999 = vadd.xlane.f32.xlu0 %v2998
    %v3000 = vpop.xlane.xlu0 %2999
    %v3001 = vsel %vm227, %v2994, 0.0
    %3002 = vadd.xlane.f32.xlu0 %v3001
    %v3003 = vpop.xlane.xlu0 %3002
    %v3004 = vmul.f32 %v2997, %v231
    %v3005 = vmul.f32 %v3000, %v231
    %v3006 = vmul.f32 %v3003, %v231
    %v3007 = vadd.f32 %v3004, 1e-05
    %v3008 = vadd.f32 %v3005, 1e-05
    %v3009 = vadd.f32 %v3006, 1e-05
    %v3010 = vrsqrt.pop %v3007
    %v3011 = vrsqrt.pop %v3008
    %v3012 = vrsqrt.pop %v3009
    %v3013 = vmul.f32 %v2989, %v3010
    %v3014 = vmul.f32 %v2990, %v3011
    %v3015 = vmul.f32 %v2991, %v3012
    %v3016 = vlaneseq
    %v3017 = vshrl.u32 %v3016, 7
    %v3018 = vsub.s32 0, %v3017
    %v3019 = vrot.slane %v1742, %v3018
    %v3020 = vmul.f32 %v3013, %v3019
    %v3021 = vmul.f32 %v3014, %v3019
    %v3022 = vmul.f32 %v3015, %v3019
    %v3023 = vlaneseq
    %v3024 = vshrl.u32 %v3023, 7
    %v3025 = vsub.s32 0, %v3024
    %v3026 = vrot.slane %v1743, %v3025
    %v3027 = vadd.f32 %v3020, %v3026
    %v3028 = vadd.f32 %v3021, %v3026
    %v3029 = vadd.f32 %v3022, %v3026
    %v3030 = vlaneseq
    %v3031 = vshrl.u32 %v3030, 7
    %v3032 = vsub.s32 0, %v3031
    %v3033 = vrot.slane %v1739, %v3032
    %v3035 = vsel %vm220, %v3027, 0
    %v3038 = vsel %vm220, %v3028, 0
    %v3041 = vsel %vm220, %v3029, 0
    %3043 = vmatprep.subr.mxu0 0.0
    %3044 = vmatpush1.msra.mxu0 %v1730
    %3045 = vmatprep.subr.mxu0 0.0
    %3046 = vmatpush1.msra.mxu0 %v1731
    %3047 = vmatprep.subr.mxu0 0.0
    %3048 = vmatpush1.msra.mxu0 %v1732
    %3049 = vmatprep.subr.mxu0 0.0
    %3050 = vmatpush1.msra.mxu0 %v1733
    %3051 = vmatprep.subr.mxu0 0.0
    %3052 = vmatpush1.msra.mxu0 0.0
    %3053 = vmatprep.subr.mxu0 0.0
    %3054 = vmatpush1.msra.mxu0 0.0
    %3055 = vmatprep.subr.mxu0 0.0
    %3056 = vmatpush1.msra.mxu0 0.0
    %3057 = vmatprep.subr.mxu0 0.0
    %3058 = vmatpush1.msra.mxu0 0.0
    %3059 = vmatprep.subr.mxu0 0.0
    %3060 = vmatpush1.msra.mxu0 0.0
    %3061 = vmatprep.subr.mxu0 0.0
    %3062 = vmatpush1.msra.mxu0 0.0
    %3063 = vmatprep.subr.mxu0 0.0
    %3064 = vmatpush1.msra.mxu0 0.0
    %3065 = vmatprep.subr.mxu0 0.0
    %3066 = vmatpush1.msra.mxu0 0.0
    %3067 = vmatprep.subr.mxu0 0.0
    %3068 = vmatpush1.msra.mxu0 0.0
    %3069 = vmatprep.subr.mxu0 0.0
    %3070 = vmatpush1.msra.mxu0 0.0
    %3071 = vmatprep.subr.mxu0 0.0
    %3072 = vmatpush1.msra.mxu0 0.0
    %3073 = vmatprep.subr.mxu0 0.0
    %3074 = vmatpush1.msra.mxu0 0.0
    %3075 = vmatprep.subr.mxu0 0.0
    %3076 = vmatpush1.msra.mxu0 0.0
    %3077 = vmatprep.subr.mxu0 0.0
    %3078 = vmatpush1.msra.mxu0 0.0
    %3079 = vmatprep.subr.mxu0 0.0
    %3080 = vmatpush1.msra.mxu0 0.0
    %3081 = vmatprep.subr.mxu0 0.0
    %3082 = vmatpush1.msra.mxu0 0.0
    %3083 = vmatprep.subr.mxu0 0.0
    %3084 = vmatpush1.msra.mxu0 0.0
    %3085 = vmatprep.subr.mxu0 0.0
    %3086 = vmatpush1.msra.mxu0 0.0
    %3087 = vmatprep.subr.mxu0 0.0
    %3088 = vmatpush1.msra.mxu0 0.0
    %3089 = vmatprep.subr.mxu0 0.0
    %3090 = vmatpush1.msra.mxu0 0.0
    %3091 = vmatprep.subr.mxu0 0.0
    %3092 = vmatpush1.msra.mxu0 0.0
    %3093 = vmatprep.subr.mxu0 0.0
    %3094 = vmatpush1.msra.mxu0 0.0
    %3095 = vmatprep.subr.mxu0 0.0
    %3096 = vmatpush1.msra.mxu0 0.0
    %3097 = vmatprep.subr.mxu0 0.0
    %3098 = vmatpush1.msra.mxu0 0.0
    %3099 = vmatprep.subr.mxu0 0.0
    %3100 = vmatpush1.msra.mxu0 0.0
    %3101 = vmatprep.subr.mxu0 0.0
    %3102 = vmatpush1.msra.mxu0 0.0
    %3103 = vmatprep.subr.mxu0 0.0
    %3104 = vmatpush1.msra.mxu0 0.0
    %3105 = vmatprep.subr.mxu0 0.0
    %3106 = vmatpush1.msra.mxu0 0.0
    %3107 = vmatprep.mubr.f32.mxu0 0.0
    %3108 = vmatmul.mubr.f32.gmra.mrb[0].mxu0 %v3035
    %v3109 = vpop.f32.mrb[0].mxu0
    %v3110 = vadd.f32 %v3033, %v3109
    %v3111 = vpop.f32.mrb[0].mxu0
    %3112 = vmatprep.mubr.f32.mxu0 0.0
    %3113 = vmatmul.mubr.f32.gmra.mrb[0].mxu0 %v3038
    %v3114 = vpop.f32.mrb[0].mxu0
    %v3115 = vadd.f32 %v3033, %v3114
    %v3116 = vpop.f32.mrb[0].mxu0
    %3117 = vmatprep.mubr.f32.mxu0 0.0
    %3118 = vmatmul.mubr.f32.gmra.mrb[0].mxu0 %v3041
    %v3119 = vpop.f32.mrb[0].mxu0
    %v3120 = vadd.f32 %v3033, %v3119
    %v3121 = vpop.f32.mrb[0].mxu0
    %3122 = vdwg.mxu0
    %v3123 = vmax.f32 %v3110, 0.0
    %v3124 = vmax.f32 %v3115, 0.0
    %v3125 = vmax.f32 %v3120, 0.0
    %v3127 = vsel %vm1609, %v3123, 0
    %v3130 = vsel %vm1609, %v3124, 0
    %v3133 = vsel %vm1609, %v3125, 0
    %v3136 = vsel %vm1609, %v1734, 0
    %v3139 = vsel %vm1609, %v1735, 0
    %v3142 = vsel %vm1609, %v1736, 0
    %v3145 = vsel %vm1609, %v1737, 0
    %3147 = vmatprep.subr.mxu0 0.0
    %3148 = vmatpush1.xpose.msra.mxu0 %v3136
    %3149 = vmatprep.subr.mxu0 0.0
    %3150 = vmatpush1.xpose.msra.mxu0 %v3139
    %3151 = vmatprep.subr.mxu0 0.0
    %3152 = vmatpush1.xpose.msra.mxu0 %v3142
    %3153 = vmatprep.subr.mxu0 0.0
    %3154 = vmatpush1.xpose.msra.mxu0 %v3145
    %3155 = vmatprep.subr.mxu0 0.0
    %3156 = vmatpush1.xpose.msra.mxu0 0.0
    %3157 = vmatprep.subr.mxu0 0.0
    %3158 = vmatpush1.xpose.msra.mxu0 0.0
    %3159 = vmatprep.subr.mxu0 0.0
    %3160 = vmatpush1.xpose.msra.mxu0 0.0
    %3161 = vmatprep.subr.mxu0 0.0
    %3162 = vmatpush1.xpose.msra.mxu0 0.0
    %3163 = vmatprep.subr.mxu0 0.0
    %3164 = vmatpush1.xpose.msra.mxu0 0.0
    %3165 = vmatprep.subr.mxu0 0.0
    %3166 = vmatpush1.xpose.msra.mxu0 0.0
    %3167 = vmatprep.subr.mxu0 0.0
    %3168 = vmatpush1.xpose.msra.mxu0 0.0
    %3169 = vmatprep.subr.mxu0 0.0
    %3170 = vmatpush1.xpose.msra.mxu0 0.0
    %3171 = vmatprep.subr.mxu0 0.0
    %3172 = vmatpush1.xpose.msra.mxu0 0.0
    %3173 = vmatprep.subr.mxu0 0.0
    %3174 = vmatpush1.xpose.msra.mxu0 0.0
    %3175 = vmatprep.subr.mxu0 0.0
    %3176 = vmatpush1.xpose.msra.mxu0 0.0
    %3177 = vmatprep.subr.mxu0 0.0
    %3178 = vmatpush1.xpose.msra.mxu0 0.0
    %3179 = vmatprep.subr.mxu0 0.0
    %3180 = vmatpush1.xpose.msra.mxu0 0.0
    %3181 = vmatprep.subr.mxu0 0.0
    %3182 = vmatpush1.xpose.msra.mxu0 0.0
    %3183 = vmatprep.subr.mxu0 0.0
    %3184 = vmatpush1.xpose.msra.mxu0 0.0
    %3185 = vmatprep.subr.mxu0 0.0
    %3186 = vmatpush1.xpose.msra.mxu0 0.0
    %3187 = vmatprep.subr.mxu0 0.0
    %3188 = vmatpush1.xpose.msra.mxu0 0.0
    %3189 = vmatprep.subr.mxu0 0.0
    %3190 = vmatpush1.xpose.msra.mxu0 0.0
    %3191 = vmatprep.subr.mxu0 0.0
    %3192 = vmatpush1.xpose.msra.mxu0 0.0
    %3193 = vmatprep.subr.mxu0 0.0
    %3194 = vmatpush1.xpose.msra.mxu0 0.0
    %3195 = vmatprep.subr.mxu0 0.0
    %3196 = vmatpush1.xpose.msra.mxu0 0.0
    %3197 = vmatprep.subr.mxu0 0.0
    %3198 = vmatpush1.xpose.msra.mxu0 0.0
    %3199 = vmatprep.subr.mxu0 0.0
    %3200 = vmatpush1.xpose.msra.mxu0 0.0
    %3201 = vmatprep.subr.mxu0 0.0
    %3202 = vmatpush1.xpose.msra.mxu0 0.0
    %3203 = vmatprep.subr.mxu0 0.0
    %3204 = vmatpush1.xpose.msra.mxu0 0.0
    %3205 = vmatprep.subr.mxu0 0.0
    %3206 = vmatpush1.xpose.msra.mxu0 0.0
    %3207 = vmatprep.subr.mxu0 0.0
    %3208 = vmatpush1.xpose.msra.mxu0 0.0
    %3209 = vmatprep.subr.mxu0 0.0
    %3210 = vmatpush1.xpose.msra.mxu0 0.0
    %3211 = vmatprep.mubr.f32.mxu0 0.0
    %3212 = vmatmul.mubr.f32.gmra.mrb[0].mxu0 %v3127
    %v3213 = vpop.f32.mrb[0].mxu0
    %v3214 = vadd.f32 0.0, %v3213
    %v3215 = vpop.f32.mrb[0].mxu0
    %3216 = vmatprep.mubr.f32.mxu0 0.0
    %3217 = vmatmul.mubr.f32.gmra.mrb[0].mxu0 %v3130
    %v3218 = vpop.f32.mrb[0].mxu0
    %v3219 = vpop.f32.mrb[0].mxu0
    %3220 = vmatprep.mubr.f32.mxu0 0.0
    %3221 = vmatmul.mubr.f32.gmra.mrb[0].mxu0 %v3133
    %v3222 = vpop.f32.mrb[0].mxu0
    %v3223 = vpop.f32.mrb[0].mxu0
    %3224 = vdwg.mxu0
    %v3225 = vadd.f32 %v2974, %v3214
    %v3226 = vlaneseq
    %v3227 = vshrl.u32 %v3226, 7
    %v3228 = vsub.s32 0, %v3227
    %v3229 = vrot.slane %v1745, %v3228
    %v3230 = vadd.f32 %v3225, %v3229
    %v3231 = vsel %vm227, %v3230, 0.0
    %3232 = vadd.xlane.f32.xlu0 %v3231
    %v3233 = vpop.xlane.xlu0 %3232
    %v3234 = vmul.f32 %v3233, %v231
    %v3235 = vsub.f32 %v3230, %v3234
    %v3236 = vmul.f32 %v3235, %v3235
    %v3237 = vsel %vm227, %v3236, 0.0
    %3238 = vadd.xlane.f32.xlu0 %v3237
    %v3239 = vpop.xlane.xlu0 %3238
    %v3240 = vmul.f32 %v3239, %v231
    %v3241 = vadd.f32 %v3240, 1e-05
    %v3242 = vrsqrt.pop %v3241
    %v3243 = vmul.f32 %v3235, %v3242
    %v3244 = vlaneseq
    %v3245 = vshrl.u32 %v3244, 7
    %v3246 = vsub.s32 0, %v3245
    %v3247 = vrot.slane %v90, %v3246
    %v3248 = vmul.f32 %v3243, %v3247
    %v3249 = vlaneseq
    %v3250 = vshrl.u32 %v3249, 7
    %v3251 = vsub.s32 0, %v3250
    %v3252 = vrot.slane %v91, %v3251
    %v3253 = vadd.f32 %v3248, %v3252
    %3254 = vst.msk [vmem:[#allocation5] sm:$0x3] %vm227, %v3253
    // Predicated region
    $region22: #{esm_bottleneck_forward.1} parent=1 // pred_check
      _
    $region23: #{esm_bottleneck_forward.1} parent=1 // pred_check_branch
      %3256 = sbr.rel (0) target = $region25
    $region24: #{esm_bottleneck_forward.1} parent=1 // pred_region
      %s3258 = ssub.s32 32, 32
      %3259 = vsyncadd [#allocation4], %s3258
      %s3261 = sshll.u32 [#allocation5], 4
      %s3262 = int_to_ptr.vmem [resolvable:$true] %s3261
      %3264 = dma.vmem_to_hbm [thread:$0]  %s3262, 32, %s4, [#allocation4]
    $region25: #{esm_bottleneck_forward.1} parent=1 // pred_fallthru
      _
    // Predicated region
    $region26: #{esm_bottleneck_forward.1} parent=1 // pred_check
      _
    $region27: #{esm_bottleneck_forward.1} parent=1 // pred_check_branch
      %3266 = sbr.rel (0) target = $region29
    $region28: #{esm_bottleneck_forward.1} parent=1 // pred_region
      %3267 = dma.done [#allocation4], 32
    $region29: #{esm_bottleneck_forward.1} parent=1 // pred_fallthru
      _
    %3268 = vsyncpa [#allocation3], 1
    %3269 = vsyncpa [#allocation4], 1

</llo_original>
